<compile_context>
chip_gen: v7x
topology: tpu7x:2x2x1
jax: 0.10.0
libtpu: 0.0.40
codegen_flags: <defaults>
</compile_context>

<pallas_src>
import functools

import jax
import jax.numpy as jnp
from jax.experimental import pallas as pl
from jax.experimental.pallas import tpu as pltpu


# ----------------------------------------------------------------------------
# small helpers
# ----------------------------------------------------------------------------
def _round_up(x, m):
    return (x + m - 1) // m * m


def _pick_tile(dim, candidates=(512, 256, 128)):
    """Largest candidate that divides dim (dim is a multiple of 128)."""
    for c in candidates:
        if dim % c == 0:
            return c
    return dim


def _choose_rows(m, cap):
    """Pad M to 8 (or to `cap`) and pick the row-tile size."""
    mp = _round_up(m, 8)
    if mp <= cap:
        return mp, mp
    mp = _round_up(m, cap)
    return mp, cap


def _pad2d(a, mp, np_):
    m, n = a.shape
    if m == mp and n == np_:
        return a
    return jnp.pad(a, ((0, mp - m), (0, np_ - n)))


_VMEM_LIMIT = 32 * 1024 * 1024  # explicit scoped-VMEM budget; tiles use << this
                                # (safe on v5e/v6e 128 MiB and v7x 64 MiB parts)


# ----------------------------------------------------------------------------
# Pallas kernel 1: tiled matmul + folded-BN shift + optional residual + ReLU
# ----------------------------------------------------------------------------
def _mm_fused_kernel(*refs, relu, has_res):
    if has_res:
        x_ref, w_ref, shift_ref, res_ref, o_ref, acc_ref = refs
    else:
        x_ref, w_ref, shift_ref, o_ref, acc_ref = refs
        res_ref = None

    @pl.when(pl.program_id(2) == 0)
    def _init():
        acc_ref[...] = jnp.zeros_like(acc_ref)

    acc_ref[...] += jnp.dot(x_ref[...], w_ref[...],
                            preferred_element_type=jnp.float32)

    @pl.when(pl.program_id(2) == pl.num_programs(2) - 1)
    def _epilogue():
        y = acc_ref[...] + shift_ref[...]           # BN scale already in weights
        if has_res:
            y = y + res_ref[...]                    # fused residual add
        if relu:
            y = jnp.maximum(y, 0.0)
        o_ref[...] = y.astype(o_ref.dtype)


def matmul_fused(x, w, shift, residual=None, relu=False):
    """(M,K) @ (K,N) on the MXU in bf16, fused shift (+residual) (+ReLU) epilogue.

    M is padded to a multiple of 8 (tile = full M up to 512, else 512-row tiles),
    K and N are padded to multiples of 128 (lane-dense, stem K=147 -> 256).
    """
    M, K = x.shape
    K2, N = w.shape
    assert K == K2

    Mp, tm = _choose_rows(M, 512)
    Kp = _round_up(K, 128)
    Np = _round_up(N, 128)
    tk = _pick_tile(Kp)
    tn = _pick_tile(Np)

    xb = _pad2d(x.astype(jnp.bfloat16), Mp, Kp)
    wb = _pad2d(w.astype(jnp.bfloat16), Kp, Np)
    sh = _pad2d(shift.reshape(1, N).astype(jnp.float32), 1, Np)

    has_res = residual is not None
    grid = (Mp // tm, Np // tn, Kp // tk)

    in_specs = [
        pl.BlockSpec((tm, tk), lambda i, j, k: (i, k)),
        pl.BlockSpec((tk, tn), lambda i, j, k: (k, j)),
        pl.BlockSpec((1, tn), lambda i, j, k: (0, j)),
    ]
    args = [xb, wb, sh]
    if has_res:
        # constant across k -> fetched once per (i, j) output tile
        in_specs.append(pl.BlockSpec((tm, tn), lambda i, j, k: (i, j)))
        args.append(_pad2d(residual.astype(jnp.float32), Mp, Np))

    kern = functools.partial(_mm_fused_kernel, relu=relu, has_res=has_res)
    out = pl.pallas_call(
        kern,
        out_shape=jax.ShapeDtypeStruct((Mp, Np), jnp.float32),
        grid=grid,
        in_specs=in_specs,
        out_specs=pl.BlockSpec((tm, tn), lambda i, j, k: (i, j)),
        scratch_shapes=[pltpu.VMEM((tm, tn), jnp.float32)],
        compiler_params=pltpu.CompilerParams(
            dimension_semantics=("parallel", "parallel", "arbitrary"),
            vmem_limit_bytes=_VMEM_LIMIT,
        ),
    )(*args)
    return out[:M, :N]


# ----------------------------------------------------------------------------
# Pallas kernel 2: maxpool reduction (max over 9 taps), row-tiled & lane-dense
# ----------------------------------------------------------------------------
def _max9_kernel(p_ref, o_ref):
    out = p_ref[0]
    for k in range(1, 9):
        out = jnp.maximum(out, p_ref[k])
    o_ref[...] = out


def max_over_9(p):
    """p: (9, M, C) -> elementwise max over leading axis -> (M, C)."""
    _, M, C = p.shape
    Mp, tm = _choose_rows(M, 1024)
    Cp = _round_up(C, 128)
    pp = jnp.pad(p, ((0, 0), (0, Mp - M), (0, Cp - C)))
    out = pl.pallas_call(
        _max9_kernel,
        out_shape=jax.ShapeDtypeStruct((Mp, Cp), jnp.float32),
        grid=(Mp // tm,),
        in_specs=[pl.BlockSpec((9, tm, Cp), lambda i: (0, i, 0))],
        out_specs=pl.BlockSpec((tm, Cp), lambda i: (i, 0)),
        compiler_params=pltpu.CompilerParams(
            dimension_semantics=("parallel",),
            vmem_limit_bytes=_VMEM_LIMIT,
        ),
    )(pp)
    return out[:M, :C]


# ----------------------------------------------------------------------------
# Glue: im2col, conv+bn wrapper, maxpool, bottleneck blocks
# ----------------------------------------------------------------------------
def _im2col(x, kh, kw, stride, pad):
    # TODO(synk): fully fuse im2col into the matmul kernel (stream padded NHWC
    # row tiles and iterate kh*kw taps on the K grid axis) to remove the
    # kh*kw x HBM patch materialization; patches are built directly in bf16
    # here to at least halve that traffic.
    B, H, W, C = x.shape
    xp = jnp.pad(x, ((0, 0), (pad, pad), (pad, pad), (0, 0)))
    Ho = (H + 2 * pad - kh) // stride + 1
    Wo = (W + 2 * pad - kw) // stride + 1
    cols = []
    for ki in range(kh):
        for kj in range(kw):
            cols.append(xp[:, ki:ki + stride * Ho:stride,
                           kj:kj + stride * Wo:stride, :])
    patches = jnp.stack(cols, axis=3)            # (B, Ho, Wo, kh*kw, C)
    return patches.reshape(B * Ho * Wo, kh * kw * C), Ho, Wo


def conv_bn(x, p, *, stride, pad, relu, residual=None):
    """x: NHWC f32. p['w'] is PyTorch-convention (O, Cin, kh, kw).

    Inference BatchNorm is folded: scale into the weight matrix, shift as the
    single per-channel epilogue operand. Optional residual + ReLU are fused.
    """
    w = p["w"]
    O, Cin, kh, kw = w.shape
    B, H, W, C = x.shape
    assert C == Cin
    if kh == 1 and kw == 1 and pad == 0:
        xs = x[:, ::stride, ::stride, :] if stride > 1 else x
        Ho, Wo = xs.shape[1], xs.shape[2]
        cols = xs.reshape(B * Ho * Wo, C).astype(jnp.bfloat16)
    else:
        cols, Ho, Wo = _im2col(x.astype(jnp.bfloat16), kh, kw, stride, pad)

    inv = p["gamma"] * jax.lax.rsqrt(p["var"] + 1e-5)       # f32 fold
    shift = p["beta"] - p["mean"] * inv
    w2d = jnp.transpose(w, (2, 3, 1, 0)).reshape(kh * kw * Cin, O)
    w2d = (w2d * inv[None, :]).astype(jnp.bfloat16)         # BN scale folded in

    res2d = None
    if residual is not None:
        res2d = residual.reshape(B * Ho * Wo, O)

    y = matmul_fused(cols, w2d, shift, residual=res2d, relu=relu)
    return y.reshape(B, Ho, Wo, O)


def maxpool_3x3_s2_p1(x):
    # TODO(synk): read the 9 shifted windows from a padded row tile inside the
    # kernel instead of materializing the stacked taps in HBM.
    B, H, W, C = x.shape
    xp = jnp.pad(x, ((0, 0), (1, 1), (1, 1), (0, 0)),
                 constant_values=-jnp.inf)
    Ho = (H + 2 - 3) // 2 + 1
    Wo = (W + 2 - 3) // 2 + 1
    slices = [xp[:, ki:ki + 2 * Ho:2, kj:kj + 2 * Wo:2, :]
              for ki in range(3) for kj in range(3)]
    stacked = jnp.stack(slices, axis=0).reshape(9, B * Ho * Wo, C)
    return max_over_9(stacked).reshape(B, Ho, Wo, C)


def bottleneck(x, p, *, stride):
    if "down" in p:
        identity = conv_bn(x, p["down"], stride=stride, pad=0, relu=False)
    else:
        identity = x
    out = conv_bn(x, p["conv1"], stride=1, pad=0, relu=True)
    out = conv_bn(out, p["conv2"], stride=stride, pad=1, relu=True)
    # conv3 + BN + residual add + ReLU all fused into one Pallas kernel call.
    out = conv_bn(out, p["conv3"], stride=1, pad=0, relu=True, residual=identity)
    return out


# ----------------------------------------------------------------------------
# Deterministic synthetic parameters (resnet-style stem + bottleneck layers)
# ----------------------------------------------------------------------------
def _init_conv_bn(key, cin, cout, k):
    kw_, kg, kb, km, kv = jax.random.split(key, 5)
    fan_in = cin * k * k
    return {
        "w": jax.random.normal(kw_, (cout, cin, k, k), jnp.float32) / (fan_in ** 0.5),
        "gamma": 1.0 + 0.05 * jax.random.normal(kg, (cout,), jnp.float32),
        "beta": 0.05 * jax.random.normal(kb, (cout,), jnp.float32),
        "mean": 0.05 * jax.random.normal(km, (cout,), jnp.float32),
        "var": 1.0 + 0.05 * jax.random.uniform(kv, (cout,), jnp.float32),
    }


def init_patch_embed_params(key, in_ch=3, base=8, blocks=(1, 1, 1)):
    # TODO(synk): the real PatchEmbed wraps torchvision resnet101(pretrained=True)
    # truncated at children()[:-3] (base width 64, bottleneck counts (3,4,23),
    # pretrained weights). The structure (conv7x7/2 + bn + relu + maxpool3x3/2 +
    # 3 bottleneck stages) is reproduced here, but depth/width are scaled down
    # and weights are synthetic/deterministic for this small demo.
    kit = iter(jax.random.split(key, 64))
    params = {"stem": _init_conv_bn(next(kit), in_ch, base, 7), "layers": []}
    inplanes = base
    for li, nblocks in enumerate(blocks):
        width = base * (2 ** li)
        first_stride = 1 if li == 0 else 2
        layer = []
        for bi in range(nblocks):
            s = first_stride if bi == 0 else 1
            bp = {
                "conv1": _init_conv_bn(next(kit), inplanes, width, 1),
                "conv2": _init_conv_bn(next(kit), width, width, 3),
                "conv3": _init_conv_bn(next(kit), width, width * 4, 1),
            }
            if s != 1 or inplanes != width * 4:
                bp["down"] = _init_conv_bn(next(kit), inplanes, width * 4, 1)
            inplanes = width * 4
            layer.append(bp)
        params["layers"].append(layer)
    return params


# ----------------------------------------------------------------------------
# PatchEmbed forward
# ----------------------------------------------------------------------------
def patch_embed_forward(x_nchw, params, *, img_size):
    B, C, H, W = x_nchw.shape
    assert H == img_size and W == img_size, (
        f"Input image size ({H}*{W}) doesn't match model ({img_size}*{img_size}).")
    x = jnp.transpose(x_nchw, (0, 2, 3, 1)).astype(jnp.float32)  # NCHW -> NHWC
    x = conv_bn(x, params["stem"], stride=2, pad=3, relu=True)   # conv1+bn1+relu
    x = maxpool_3x3_s2_p1(x)                                     # maxpool
    layer_strides = (1, 2, 2)                                    # layer1..layer3
    for layer, stride in zip(params["layers"], layer_strides):
        for bi, bp in enumerate(layer):
            x = bottleneck(x, bp, stride=stride if bi == 0 else 1)
    B_, Ho, Wo, Cf = x.shape
    # PyTorch:  embed(x).flatten(2).transpose(1, 2)  on NCHW  ==  NHWC reshape
    return x.reshape(B_, Ho * Wo, Cf)


if __name__ == "__main__":
    img_size, patch_size, base = 32, 16, 8
    num_patches = (img_size // patch_size) ** 2          # total stride /16 -> 4

    key = jax.random.PRNGKey(0)
    kx, kp = jax.random.split(key)
    x = jax.random.normal(kx, (2, 3, img_size, img_size), jnp.float32)
    params = init_patch_embed_params(kp, in_ch=3, base=base, blocks=(1, 1, 1))

    fwd = jax.jit(functools.partial(patch_embed_forward, img_size=img_size))
    out = jax.block_until_ready(fwd(x, params))

    expected_channels = base * 4 * 4                      # layer3 bottleneck out
    assert out.shape == (2, num_patches, expected_channels), out.shape
    assert bool(jnp.all(jnp.isfinite(out)))
    print("KERNEL_OK")
</pallas_src>

<mosaic_0001>
module attributes {stable_mosaic.version = 11 : i64} {
  func.func @_mm_fused_kernel(%arg0: i32, %arg1: i32, %arg2: i32, %arg3: memref<512x256xbf16, #tpu.memory_space<vmem>>, %arg4: memref<256x128xbf16, #tpu.memory_space<vmem>>, %arg5: memref<1x128xf32, #tpu.memory_space<vmem>>, %arg6: memref<512x128xf32, #tpu.memory_space<vmem>>, %arg7: memref<512x128xf32, #tpu.memory_space<vmem>>) attributes {dimension_semantics = [#tpu.dimension_semantics<parallel>, #tpu.dimension_semantics<parallel>, #tpu.dimension_semantics<arbitrary>], iteration_bounds = array<i64: 1, 1, 1>, scalar_prefetch = 0 : i64, scratch_operands = 1 : i64, tpu.core_type = #tpu.core_type<tc>, window_params = [{transform_indices = @transform_0, window_bounds = array<i64: 512, 256>}, {transform_indices = @transform_1, window_bounds = array<i64: 256, 128>}, {transform_indices = @transform_2, window_bounds = array<i64: 1, 128>}, {transform_indices = @transform_3, window_bounds = array<i64: 512, 128>}]} {
    %c0_i32 = arith.constant 0 : i32
    %0 = arith.cmpi eq, %arg2, %c0_i32 : i32
    %1 = arith.extui %0 : i1 to i32
    %c0_i32_0 = arith.constant 0 : i32
    %2 = arith.cmpi ne, %1, %c0_i32_0 : i32
    scf.if %2 {
      %cst_10 = arith.constant 0.000000e+00 : f32
      %12 = vector.broadcast %cst_10 : f32 to vector<512x128xf32>
      %c0_11 = arith.constant 0 : index
      %c0_12 = arith.constant 0 : index
      %13 = vector.load %arg7[%c0_11, %c0_12] : memref<512x128xf32, #tpu.memory_space<vmem>>, vector<512x128xf32>
      tpu.vector_store %arg7[%c0_11, %c0_12], %12 {strides = array<i32>} : memref<512x128xf32, #tpu.memory_space<vmem>>, vector<512x128xf32>,
    } else {
    }
    %c0 = arith.constant 0 : index
    %c0_1 = arith.constant 0 : index
    %3 = vector.load %arg7[%c0, %c0_1] : memref<512x128xf32, #tpu.memory_space<vmem>>, vector<512x128xf32>
    %c0_2 = arith.constant 0 : index
    %c0_3 = arith.constant 0 : index
    %4 = vector.load %arg3[%c0_2, %c0_3] : memref<512x256xbf16, #tpu.memory_space<vmem>>, vector<512x256xbf16>
    %c0_4 = arith.constant 0 : index
    %c0_5 = arith.constant 0 : index
    %5 = vector.load %arg4[%c0_4, %c0_5] : memref<256x128xbf16, #tpu.memory_space<vmem>>, vector<256x128xbf16>
    %cst = arith.constant dense<0.000000e+00> : vector<512x128xf32>
    %6 = tpu.matmul %4, %5, %cst {dimension_numbers = #tpu.dot_dimension_numbers<[1], [0], [0], [1], [0, 0, 1, 1], [], []>} : vector<512x256xbf16>, vector<256x128xbf16>, vector<512x128xf32> -> vector<512x128xf32>
    %7 = arith.addf %3, %6 : vector<512x128xf32>
    %c0_6 = arith.constant 0 : index
    %c0_7 = arith.constant 0 : index
    %8 = vector.load %arg7[%c0_6, %c0_7] : memref<512x128xf32, #tpu.memory_space<vmem>>, vector<512x128xf32>
    tpu.vector_store %arg7[%c0_6, %c0_7], %7 {strides = array<i32>} : memref<512x128xf32, #tpu.memory_space<vmem>>, vector<512x128xf32>,
    %c0_i32_8 = arith.constant 0 : i32
    %9 = arith.cmpi eq, %arg2, %c0_i32_8 : i32
    %10 = arith.extui %9 : i1 to i32
    %c0_i32_9 = arith.constant 0 : i32
    %11 = arith.cmpi ne, %10, %c0_i32_9 : i32
    scf.if %11 {
      %c0_10 = arith.constant 0 : index
      %c0_11 = arith.constant 0 : index
      %12 = vector.load %arg7[%c0_10, %c0_11] : memref<512x128xf32, #tpu.memory_space<vmem>>, vector<512x128xf32>
      %c0_12 = arith.constant 0 : index
      %c0_13 = arith.constant 0 : index
      %13 = vector.load %arg5[%c0_12, %c0_13] : memref<1x128xf32, #tpu.memory_space<vmem>>, vector<1x128xf32>
      %14 = vector.broadcast %13 : vector<1x128xf32> to vector<512x128xf32>
      %15 = arith.addf %12, %14 : vector<512x128xf32>
      %cst_14 = arith.constant 0.000000e+00 : f32
      %16 = vector.broadcast %cst_14 : f32 to vector<512x128xf32>
      %17 = arith.maximumf %15, %16 : vector<512x128xf32>
      %c0_15 = arith.constant 0 : index
      %c0_16 = arith.constant 0 : index
      %18 = vector.load %arg6[%c0_15, %c0_16] : memref<512x128xf32, #tpu.memory_space<vmem>>, vector<512x128xf32>
      tpu.vector_store %arg6[%c0_15, %c0_16], %17 {strides = array<i32>} : memref<512x128xf32, #tpu.memory_space<vmem>>, vector<512x128xf32>,
    } else {
    }
    return
  }
  func.func @transform_0(%arg0: i32, %arg1: i32, %arg2: i32) -> (i32, i32) {
    %c0_i32 = arith.constant 0 : i32
    return %arg0, %arg2 : i32, i32
  }
  func.func @transform_1(%arg0: i32, %arg1: i32, %arg2: i32) -> (i32, i32) {
    %c0_i32 = arith.constant 0 : i32
    return %arg2, %arg1 : i32, i32
  }
  func.func @transform_2(%arg0: i32, %arg1: i32, %arg2: i32) -> (i32, i32) {
    %c0_i32 = arith.constant 0 : i32
    %c0_i32_0 = arith.constant 0 : i32
    return %c0_i32, %arg1 : i32, i32
  }
  func.func @transform_3(%arg0: i32, %arg1: i32, %arg2: i32) -> (i32, i32) {
    %c0_i32 = arith.constant 0 : i32
    return %arg0, %arg1 : i32, i32
  }
}

module attributes {stable_mosaic.version = 11 : i64} {
  func.func @_max9_kernel(%arg0: i32, %arg1: memref<9x128x128xf32, #tpu.memory_space<vmem>>, %arg2: memref<128x128xf32, #tpu.memory_space<vmem>>) attributes {dimension_semantics = [#tpu.dimension_semantics<parallel>], iteration_bounds = array<i64: 1>, scalar_prefetch = 0 : i64, scratch_operands = 0 : i64, tpu.core_type = #tpu.core_type<tc>, window_params = [{transform_indices = @transform_0, window_bounds = array<i64: 9, 128, 128>}, {transform_indices = @transform_1, window_bounds = array<i64: 128, 128>}]} {
    %c0 = arith.constant 0 : index
    %c0_0 = arith.constant 0 : index
    %c0_1 = arith.constant 0 : index
    %0 = vector.load %arg1[%c0, %c0_0, %c0_1] : memref<9x128x128xf32, #tpu.memory_space<vmem>>, vector<1x128x128xf32>
    %1 = vector.shape_cast %0 : vector<1x128x128xf32> to vector<128x128xf32>
    %c1 = arith.constant 1 : index
    %c0_2 = arith.constant 0 : index
    %c0_3 = arith.constant 0 : index
    %2 = vector.load %arg1[%c1, %c0_2, %c0_3] : memref<9x128x128xf32, #tpu.memory_space<vmem>>, vector<1x128x128xf32>
    %3 = vector.shape_cast %2 : vector<1x128x128xf32> to vector<128x128xf32>
    %4 = arith.maximumf %1, %3 : vector<128x128xf32>
    %c2 = arith.constant 2 : index
    %c0_4 = arith.constant 0 : index
    %c0_5 = arith.constant 0 : index
    %5 = vector.load %arg1[%c2, %c0_4, %c0_5] : memref<9x128x128xf32, #tpu.memory_space<vmem>>, vector<1x128x128xf32>
    %6 = vector.shape_cast %5 : vector<1x128x128xf32> to vector<128x128xf32>
    %7 = arith.maximumf %4, %6 : vector<128x128xf32>
    %c3 = arith.constant 3 : index
    %c0_6 = arith.constant 0 : index
    %c0_7 = arith.constant 0 : index
    %8 = vector.load %arg1[%c3, %c0_6, %c0_7] : memref<9x128x128xf32, #tpu.memory_space<vmem>>, vector<1x128x128xf32>
    %9 = vector.shape_cast %8 : vector<1x128x128xf32> to vector<128x128xf32>
    %10 = arith.maximumf %7, %9 : vector<128x128xf32>
    %c4 = arith.constant 4 : index
    %c0_8 = arith.constant 0 : index
    %c0_9 = arith.constant 0 : index
    %11 = vector.load %arg1[%c4, %c0_8, %c0_9] : memref<9x128x128xf32, #tpu.memory_space<vmem>>, vector<1x128x128xf32>
    %12 = vector.shape_cast %11 : vector<1x128x128xf32> to vector<128x128xf32>
    %13 = arith.maximumf %10, %12 : vector<128x128xf32>
    %c5 = arith.constant 5 : index
    %c0_10 = arith.constant 0 : index
    %c0_11 = arith.constant 0 : index
    %14 = vector.load %arg1[%c5, %c0_10, %c0_11] : memref<9x128x128xf32, #tpu.memory_space<vmem>>, vector<1x128x128xf32>
    %15 = vector.shape_cast %14 : vector<1x128x128xf32> to vector<128x128xf32>
    %16 = arith.maximumf %13, %15 : vector<128x128xf32>
    %c6 = arith.constant 6 : index
    %c0_12 = arith.constant 0 : index
    %c0_13 = arith.constant 0 : index
    %17 = vector.load %arg1[%c6, %c0_12, %c0_13] : memref<9x128x128xf32, #tpu.memory_space<vmem>>, vector<1x128x128xf32>
    %18 = vector.shape_cast %17 : vector<1x128x128xf32> to vector<128x128xf32>
    %19 = arith.maximumf %16, %18 : vector<128x128xf32>
    %c7 = arith.constant 7 : index
    %c0_14 = arith.constant 0 : index
    %c0_15 = arith.constant 0 : index
    %20 = vector.load %arg1[%c7, %c0_14, %c0_15] : memref<9x128x128xf32, #tpu.memory_space<vmem>>, vector<1x128x128xf32>
    %21 = vector.shape_cast %20 : vector<1x128x128xf32> to vector<128x128xf32>
    %22 = arith.maximumf %19, %21 : vector<128x128xf32>
    %c8 = arith.constant 8 : index
    %c0_16 = arith.constant 0 : index
    %c0_17 = arith.constant 0 : index
    %23 = vector.load %arg1[%c8, %c0_16, %c0_17] : memref<9x128x128xf32, #tpu.memory_space<vmem>>, vector<1x128x128xf32>
    %24 = vector.shape_cast %23 : vector<1x128x128xf32> to vector<128x128xf32>
    %25 = arith.maximumf %22, %24 : vector<128x128xf32>
    %c0_18 = arith.constant 0 : index
    %c0_19 = arith.constant 0 : index
    %26 = vector.load %arg2[%c0_18, %c0_19] : memref<128x128xf32, #tpu.memory_space<vmem>>, vector<128x128xf32>
    tpu.vector_store %arg2[%c0_18, %c0_19], %25 {strides = array<i32>} : memref<128x128xf32, #tpu.memory_space<vmem>>, vector<128x128xf32>,
    return
  }
  func.func @transform_0(%arg0: i32) -> (i32, i32, i32) {
    %c0_i32 = arith.constant 0 : i32
    %c0_i32_0 = arith.constant 0 : i32
    %c0_i32_1 = arith.constant 0 : i32
    return %c0_i32, %arg0, %c0_i32_0 : i32, i32, i32
  }
  func.func @transform_1(%arg0: i32) -> (i32, i32) {
    %c0_i32 = arith.constant 0 : i32
    %c0_i32_0 = arith.constant 0 : i32
    return %arg0, %c0_i32 : i32, i32
  }
}

module attributes {stable_mosaic.version = 11 : i64} {
  func.func @_mm_fused_kernel(%arg0: i32, %arg1: i32, %arg2: i32, %arg3: memref<128x128xbf16, #tpu.memory_space<vmem>>, %arg4: memref<128x128xbf16, #tpu.memory_space<vmem>>, %arg5: memref<1x128xf32, #tpu.memory_space<vmem>>, %arg6: memref<128x128xf32, #tpu.memory_space<vmem>>, %arg7: memref<128x128xf32, #tpu.memory_space<vmem>>) attributes {dimension_semantics = [#tpu.dimension_semantics<parallel>, #tpu.dimension_semantics<parallel>, #tpu.dimension_semantics<arbitrary>], iteration_bounds = array<i64: 1, 1, 1>, scalar_prefetch = 0 : i64, scratch_operands = 1 : i64, tpu.core_type = #tpu.core_type<tc>, window_params = [{transform_indices = @transform_0, window_bounds = array<i64: 128, 128>}, {transform_indices = @transform_1, window_bounds = array<i64: 128, 128>}, {transform_indices = @transform_2, window_bounds = array<i64: 1, 128>}, {transform_indices = @transform_3, window_bounds = array<i64: 128, 128>}]} {
    %c0_i32 = arith.constant 0 : i32
    %0 = arith.cmpi eq, %arg2, %c0_i32 : i32
    %1 = arith.extui %0 : i1 to i32
    %c0_i32_0 = arith.constant 0 : i32
    %2 = arith.cmpi ne, %1, %c0_i32_0 : i32
    scf.if %2 {
      %cst_10 = arith.constant 0.000000e+00 : f32
      %12 = vector.broadcast %cst_10 : f32 to vector<128x128xf32>
      %c0_11 = arith.constant 0 : index
      %c0_12 = arith.constant 0 : index
      %13 = vector.load %arg7[%c0_11, %c0_12] : memref<128x128xf32, #tpu.memory_space<vmem>>, vector<128x128xf32>
      tpu.vector_store %arg7[%c0_11, %c0_12], %12 {strides = array<i32>} : memref<128x128xf32, #tpu.memory_space<vmem>>, vector<128x128xf32>,
    } else {
    }
    %c0 = arith.constant 0 : index
    %c0_1 = arith.constant 0 : index
    %3 = vector.load %arg7[%c0, %c0_1] : memref<128x128xf32, #tpu.memory_space<vmem>>, vector<128x128xf32>
    %c0_2 = arith.constant 0 : index
    %c0_3 = arith.constant 0 : index
    %4 = vector.load %arg3[%c0_2, %c0_3] : memref<128x128xbf16, #tpu.memory_space<vmem>>, vector<128x128xbf16>
    %c0_4 = arith.constant 0 : index
    %c0_5 = arith.constant 0 : index
    %5 = vector.load %arg4[%c0_4, %c0_5] : memref<128x128xbf16, #tpu.memory_space<vmem>>, vector<128x128xbf16>
    %cst = arith.constant dense<0.000000e+00> : vector<128x128xf32>
    %6 = tpu.matmul %4, %5, %cst {dimension_numbers = #tpu.dot_dimension_numbers<[1], [0], [0], [1], [0, 0, 1, 1], [], []>} : vector<128x128xbf16>, vector<128x128xbf16>, vector<128x128xf32> -> vector<128x128xf32>
    %7 = arith.addf %3, %6 : vector<128x128xf32>
    %c0_6 = arith.constant 0 : index
    %c0_7 = arith.constant 0 : index
    %8 = vector.load %arg7[%c0_6, %c0_7] : memref<128x128xf32, #tpu.memory_space<vmem>>, vector<128x128xf32>
    tpu.vector_store %arg7[%c0_6, %c0_7], %7 {strides = array<i32>} : memref<128x128xf32, #tpu.memory_space<vmem>>, vector<128x128xf32>,
    %c0_i32_8 = arith.constant 0 : i32
    %9 = arith.cmpi eq, %arg2, %c0_i32_8 : i32
    %10 = arith.extui %9 : i1 to i32
    %c0_i32_9 = arith.constant 0 : i32
    %11 = arith.cmpi ne, %10, %c0_i32_9 : i32
    scf.if %11 {
      %c0_10 = arith.constant 0 : index
      %c0_11 = arith.constant 0 : index
      %12 = vector.load %arg7[%c0_10, %c0_11] : memref<128x128xf32, #tpu.memory_space<vmem>>, vector<128x128xf32>
      %c0_12 = arith.constant 0 : index
      %c0_13 = arith.constant 0 : index
      %13 = vector.load %arg5[%c0_12, %c0_13] : memref<1x128xf32, #tpu.memory_space<vmem>>, vector<1x128xf32>
      %14 = vector.broadcast %13 : vector<1x128xf32> to vector<128x128xf32>
      %15 = arith.addf %12, %14 : vector<128x128xf32>
      %cst_14 = arith.constant 0.000000e+00 : f32
      %16 = vector.broadcast %cst_14 : f32 to vector<128x128xf32>
      %17 = arith.maximumf %15, %16 : vector<128x128xf32>
      %c0_15 = arith.constant 0 : index
      %c0_16 = arith.constant 0 : index
      %18 = vector.load %arg6[%c0_15, %c0_16] : memref<128x128xf32, #tpu.memory_space<vmem>>, vector<128x128xf32>
      tpu.vector_store %arg6[%c0_15, %c0_16], %17 {strides = array<i32>} : memref<128x128xf32, #tpu.memory_space<vmem>>, vector<128x128xf32>,
    } else {
    }
    return
  }
  func.func @transform_0(%arg0: i32, %arg1: i32, %arg2: i32) -> (i32, i32) {
    %c0_i32 = arith.constant 0 : i32
    return %arg0, %arg2 : i32, i32
  }
  func.func @transform_1(%arg0: i32, %arg1: i32, %arg2: i32) -> (i32, i32) {
    %c0_i32 = arith.constant 0 : i32
    return %arg2, %arg1 : i32, i32
  }
  func.func @transform_2(%arg0: i32, %arg1: i32, %arg2: i32) -> (i32, i32) {
    %c0_i32 = arith.constant 0 : i32
    %c0_i32_0 = arith.constant 0 : i32
    return %c0_i32, %arg1 : i32, i32
  }
  func.func @transform_3(%arg0: i32, %arg1: i32, %arg2: i32) -> (i32, i32) {
    %c0_i32 = arith.constant 0 : i32
    return %arg0, %arg1 : i32, i32
  }
}

module attributes {stable_mosaic.version = 11 : i64} {
  func.func @_mm_fused_kernel(%arg0: i32, %arg1: i32, %arg2: i32, %arg3: memref<128x128xbf16, #tpu.memory_space<vmem>>, %arg4: memref<128x128xbf16, #tpu.memory_space<vmem>>, %arg5: memref<1x128xf32, #tpu.memory_space<vmem>>, %arg6: memref<128x128xf32, #tpu.memory_space<vmem>>, %arg7: memref<128x128xf32, #tpu.memory_space<vmem>>) attributes {dimension_semantics = [#tpu.dimension_semantics<parallel>, #tpu.dimension_semantics<parallel>, #tpu.dimension_semantics<arbitrary>], iteration_bounds = array<i64: 1, 1, 1>, scalar_prefetch = 0 : i64, scratch_operands = 1 : i64, tpu.core_type = #tpu.core_type<tc>, window_params = [{transform_indices = @transform_0, window_bounds = array<i64: 128, 128>}, {transform_indices = @transform_1, window_bounds = array<i64: 128, 128>}, {transform_indices = @transform_2, window_bounds = array<i64: 1, 128>}, {transform_indices = @transform_3, window_bounds = array<i64: 128, 128>}]} {
    %c0_i32 = arith.constant 0 : i32
    %0 = arith.cmpi eq, %arg2, %c0_i32 : i32
    %1 = arith.extui %0 : i1 to i32
    %c0_i32_0 = arith.constant 0 : i32
    %2 = arith.cmpi ne, %1, %c0_i32_0 : i32
    scf.if %2 {
      %cst_10 = arith.constant 0.000000e+00 : f32
      %12 = vector.broadcast %cst_10 : f32 to vector<128x128xf32>
      %c0_11 = arith.constant 0 : index
      %c0_12 = arith.constant 0 : index
      %13 = vector.load %arg7[%c0_11, %c0_12] : memref<128x128xf32, #tpu.memory_space<vmem>>, vector<128x128xf32>
      tpu.vector_store %arg7[%c0_11, %c0_12], %12 {strides = array<i32>} : memref<128x128xf32, #tpu.memory_space<vmem>>, vector<128x128xf32>,
    } else {
    }
    %c0 = arith.constant 0 : index
    %c0_1 = arith.constant 0 : index
    %3 = vector.load %arg7[%c0, %c0_1] : memref<128x128xf32, #tpu.memory_space<vmem>>, vector<128x128xf32>
    %c0_2 = arith.constant 0 : index
    %c0_3 = arith.constant 0 : index
    %4 = vector.load %arg3[%c0_2, %c0_3] : memref<128x128xbf16, #tpu.memory_space<vmem>>, vector<128x128xbf16>
    %c0_4 = arith.constant 0 : index
    %c0_5 = arith.constant 0 : index
    %5 = vector.load %arg4[%c0_4, %c0_5] : memref<128x128xbf16, #tpu.memory_space<vmem>>, vector<128x128xbf16>
    %cst = arith.constant dense<0.000000e+00> : vector<128x128xf32>
    %6 = tpu.matmul %4, %5, %cst {dimension_numbers = #tpu.dot_dimension_numbers<[1], [0], [0], [1], [0, 0, 1, 1], [], []>} : vector<128x128xbf16>, vector<128x128xbf16>, vector<128x128xf32> -> vector<128x128xf32>
    %7 = arith.addf %3, %6 : vector<128x128xf32>
    %c0_6 = arith.constant 0 : index
    %c0_7 = arith.constant 0 : index
    %8 = vector.load %arg7[%c0_6, %c0_7] : memref<128x128xf32, #tpu.memory_space<vmem>>, vector<128x128xf32>
    tpu.vector_store %arg7[%c0_6, %c0_7], %7 {strides = array<i32>} : memref<128x128xf32, #tpu.memory_space<vmem>>, vector<128x128xf32>,
    %c0_i32_8 = arith.constant 0 : i32
    %9 = arith.cmpi eq, %arg2, %c0_i32_8 : i32
    %10 = arith.extui %9 : i1 to i32
    %c0_i32_9 = arith.constant 0 : i32
    %11 = arith.cmpi ne, %10, %c0_i32_9 : i32
    scf.if %11 {
      %c0_10 = arith.constant 0 : index
      %c0_11 = arith.constant 0 : index
      %12 = vector.load %arg7[%c0_10, %c0_11] : memref<128x128xf32, #tpu.memory_space<vmem>>, vector<128x128xf32>
      %c0_12 = arith.constant 0 : index
      %c0_13 = arith.constant 0 : index
      %13 = vector.load %arg5[%c0_12, %c0_13] : memref<1x128xf32, #tpu.memory_space<vmem>>, vector<1x128xf32>
      %14 = vector.broadcast %13 : vector<1x128xf32> to vector<128x128xf32>
      %15 = arith.addf %12, %14 : vector<128x128xf32>
      %c0_14 = arith.constant 0 : index
      %c0_15 = arith.constant 0 : index
      %16 = vector.load %arg6[%c0_14, %c0_15] : memref<128x128xf32, #tpu.memory_space<vmem>>, vector<128x128xf32>
      tpu.vector_store %arg6[%c0_14, %c0_15], %15 {strides = array<i32>} : memref<128x128xf32, #tpu.memory_space<vmem>>, vector<128x128xf32>,
    } else {
    }
    return
  }
  func.func @transform_0(%arg0: i32, %arg1: i32, %arg2: i32) -> (i32, i32) {
    %c0_i32 = arith.constant 0 : i32
    return %arg0, %arg2 : i32, i32
  }
  func.func @transform_1(%arg0: i32, %arg1: i32, %arg2: i32) -> (i32, i32) {
    %c0_i32 = arith.constant 0 : i32
    return %arg2, %arg1 : i32, i32
  }
  func.func @transform_2(%arg0: i32, %arg1: i32, %arg2: i32) -> (i32, i32) {
    %c0_i32 = arith.constant 0 : i32
    %c0_i32_0 = arith.constant 0 : i32
    return %c0_i32, %arg1 : i32, i32
  }
  func.func @transform_3(%arg0: i32, %arg1: i32, %arg2: i32) -> (i32, i32) {
    %c0_i32 = arith.constant 0 : i32
    return %arg0, %arg1 : i32, i32
  }
}

module attributes {stable_mosaic.version = 11 : i64} {
  func.func @_mm_fused_kernel(%arg0: i32, %arg1: i32, %arg2: i32, %arg3: memref<128x128xbf16, #tpu.memory_space<vmem>>, %arg4: memref<128x128xbf16, #tpu.memory_space<vmem>>, %arg5: memref<1x128xf32, #tpu.memory_space<vmem>>, %arg6: memref<128x128xf32, #tpu.memory_space<vmem>>, %arg7: memref<128x128xf32, #tpu.memory_space<vmem>>, %arg8: memref<128x128xf32, #tpu.memory_space<vmem>>) attributes {dimension_semantics = [#tpu.dimension_semantics<parallel>, #tpu.dimension_semantics<parallel>, #tpu.dimension_semantics<arbitrary>], iteration_bounds = array<i64: 1, 1, 1>, scalar_prefetch = 0 : i64, scratch_operands = 1 : i64, tpu.core_type = #tpu.core_type<tc>, window_params = [{transform_indices = @transform_0, window_bounds = array<i64: 128, 128>}, {transform_indices = @transform_1, window_bounds = array<i64: 128, 128>}, {transform_indices = @transform_2, window_bounds = array<i64: 1, 128>}, {transform_indices = @transform_3, window_bounds = array<i64: 128, 128>}, {transform_indices = @transform_4, window_bounds = array<i64: 128, 128>}]} {
    %c0_i32 = arith.constant 0 : i32
    %0 = arith.cmpi eq, %arg2, %c0_i32 : i32
    %1 = arith.extui %0 : i1 to i32
    %c0_i32_0 = arith.constant 0 : i32
    %2 = arith.cmpi ne, %1, %c0_i32_0 : i32
    scf.if %2 {
      %cst_10 = arith.constant 0.000000e+00 : f32
      %12 = vector.broadcast %cst_10 : f32 to vector<128x128xf32>
      %c0_11 = arith.constant 0 : index
      %c0_12 = arith.constant 0 : index
      %13 = vector.load %arg8[%c0_11, %c0_12] : memref<128x128xf32, #tpu.memory_space<vmem>>, vector<128x128xf32>
      tpu.vector_store %arg8[%c0_11, %c0_12], %12 {strides = array<i32>} : memref<128x128xf32, #tpu.memory_space<vmem>>, vector<128x128xf32>,
    } else {
    }
    %c0 = arith.constant 0 : index
    %c0_1 = arith.constant 0 : index
    %3 = vector.load %arg8[%c0, %c0_1] : memref<128x128xf32, #tpu.memory_space<vmem>>, vector<128x128xf32>
    %c0_2 = arith.constant 0 : index
    %c0_3 = arith.constant 0 : index
    %4 = vector.load %arg3[%c0_2, %c0_3] : memref<128x128xbf16, #tpu.memory_space<vmem>>, vector<128x128xbf16>
    %c0_4 = arith.constant 0 : index
    %c0_5 = arith.constant 0 : index
    %5 = vector.load %arg4[%c0_4, %c0_5] : memref<128x128xbf16, #tpu.memory_space<vmem>>, vector<128x128xbf16>
    %cst = arith.constant dense<0.000000e+00> : vector<128x128xf32>
    %6 = tpu.matmul %4, %5, %cst {dimension_numbers = #tpu.dot_dimension_numbers<[1], [0], [0], [1], [0, 0, 1, 1], [], []>} : vector<128x128xbf16>, vector<128x128xbf16>, vector<128x128xf32> -> vector<128x128xf32>
    %7 = arith.addf %3, %6 : vector<128x128xf32>
    %c0_6 = arith.constant 0 : index
    %c0_7 = arith.constant 0 : index
    %8 = vector.load %arg8[%c0_6, %c0_7] : memref<128x128xf32, #tpu.memory_space<vmem>>, vector<128x128xf32>
    tpu.vector_store %arg8[%c0_6, %c0_7], %7 {strides = array<i32>} : memref<128x128xf32, #tpu.memory_space<vmem>>, vector<128x128xf32>,
    %c0_i32_8 = arith.constant 0 : i32
    %9 = arith.cmpi eq, %arg2, %c0_i32_8 : i32
    %10 = arith.extui %9 : i1 to i32
    %c0_i32_9 = arith.constant 0 : i32
    %11 = arith.cmpi ne, %10, %c0_i32_9 : i32
    scf.if %11 {
      %c0_10 = arith.constant 0 : index
      %c0_11 = arith.constant 0 : index
      %12 = vector.load %arg8[%c0_10, %c0_11] : memref<128x128xf32, #tpu.memory_space<vmem>>, vector<128x128xf32>
      %c0_12 = arith.constant 0 : index
      %c0_13 = arith.constant 0 : index
      %13 = vector.load %arg5[%c0_12, %c0_13] : memref<1x128xf32, #tpu.memory_space<vmem>>, vector<1x128xf32>
      %14 = vector.broadcast %13 : vector<1x128xf32> to vector<128x128xf32>
      %15 = arith.addf %12, %14 : vector<128x128xf32>
      %c0_14 = arith.constant 0 : index
      %c0_15 = arith.constant 0 : index
      %16 = vector.load %arg6[%c0_14, %c0_15] : memref<128x128xf32, #tpu.memory_space<vmem>>, vector<128x128xf32>
      %17 = arith.addf %15, %16 : vector<128x128xf32>
      %cst_16 = arith.constant 0.000000e+00 : f32
      %18 = vector.broadcast %cst_16 : f32 to vector<128x128xf32>
      %19 = arith.maximumf %17, %18 : vector<128x128xf32>
      %c0_17 = arith.constant 0 : index
      %c0_18 = arith.constant 0 : index
      %20 = vector.load %arg7[%c0_17, %c0_18] : memref<128x128xf32, #tpu.memory_space<vmem>>, vector<128x128xf32>
      tpu.vector_store %arg7[%c0_17, %c0_18], %19 {strides = array<i32>} : memref<128x128xf32, #tpu.memory_space<vmem>>, vector<128x128xf32>,
    } else {
    }
    return
  }
  func.func @transform_0(%arg0: i32, %arg1: i32, %arg2: i32) -> (i32, i32) {
    %c0_i32 = arith.constant 0 : i32
    return %arg0, %arg2 : i32, i32
  }
  func.func @transform_1(%arg0: i32, %arg1: i32, %arg2: i32) -> (i32, i32) {
    %c0_i32 = arith.constant 0 : i32
    return %arg2, %arg1 : i32, i32
  }
  func.func @transform_2(%arg0: i32, %arg1: i32, %arg2: i32) -> (i32, i32) {
    %c0_i32 = arith.constant 0 : i32
    %c0_i32_0 = arith.constant 0 : i32
    return %c0_i32, %arg1 : i32, i32
  }
  func.func @transform_3(%arg0: i32, %arg1: i32, %arg2: i32) -> (i32, i32) {
    %c0_i32 = arith.constant 0 : i32
    return %arg0, %arg1 : i32, i32
  }
  func.func @transform_4(%arg0: i32, %arg1: i32, %arg2: i32) -> (i32, i32) {
    %c0_i32 = arith.constant 0 : i32
    return %arg0, %arg1 : i32, i32
  }
}

module attributes {stable_mosaic.version = 11 : i64} {
  func.func @_mm_fused_kernel(%arg0: i32, %arg1: i32, %arg2: i32, %arg3: memref<32x256xbf16, #tpu.memory_space<vmem>>, %arg4: memref<256x128xbf16, #tpu.memory_space<vmem>>, %arg5: memref<1x128xf32, #tpu.memory_space<vmem>>, %arg6: memref<32x128xf32, #tpu.memory_space<vmem>>, %arg7: memref<32x128xf32, #tpu.memory_space<vmem>>) attributes {dimension_semantics = [#tpu.dimension_semantics<parallel>, #tpu.dimension_semantics<parallel>, #tpu.dimension_semantics<arbitrary>], iteration_bounds = array<i64: 1, 1, 1>, scalar_prefetch = 0 : i64, scratch_operands = 1 : i64, tpu.core_type = #tpu.core_type<tc>, window_params = [{transform_indices = @transform_0, window_bounds = array<i64: 32, 256>}, {transform_indices = @transform_1, window_bounds = array<i64: 256, 128>}, {transform_indices = @transform_2, window_bounds = array<i64: 1, 128>}, {transform_indices = @transform_3, window_bounds = array<i64: 32, 128>}]} {
    %c0_i32 = arith.constant 0 : i32
    %0 = arith.cmpi eq, %arg2, %c0_i32 : i32
    %1 = arith.extui %0 : i1 to i32
    %c0_i32_0 = arith.constant 0 : i32
    %2 = arith.cmpi ne, %1, %c0_i32_0 : i32
    scf.if %2 {
      %cst_10 = arith.constant 0.000000e+00 : f32
      %12 = vector.broadcast %cst_10 : f32 to vector<32x128xf32>
      %c0_11 = arith.constant 0 : index
      %c0_12 = arith.constant 0 : index
      %13 = vector.load %arg7[%c0_11, %c0_12] : memref<32x128xf32, #tpu.memory_space<vmem>>, vector<32x128xf32>
      tpu.vector_store %arg7[%c0_11, %c0_12], %12 {strides = array<i32>} : memref<32x128xf32, #tpu.memory_space<vmem>>, vector<32x128xf32>,
    } else {
    }
    %c0 = arith.constant 0 : index
    %c0_1 = arith.constant 0 : index
    %3 = vector.load %arg7[%c0, %c0_1] : memref<32x128xf32, #tpu.memory_space<vmem>>, vector<32x128xf32>
    %c0_2 = arith.constant 0 : index
    %c0_3 = arith.constant 0 : index
    %4 = vector.load %arg3[%c0_2, %c0_3] : memref<32x256xbf16, #tpu.memory_space<vmem>>, vector<32x256xbf16>
    %c0_4 = arith.constant 0 : index
    %c0_5 = arith.constant 0 : index
    %5 = vector.load %arg4[%c0_4, %c0_5] : memref<256x128xbf16, #tpu.memory_space<vmem>>, vector<256x128xbf16>
    %cst = arith.constant dense<0.000000e+00> : vector<32x128xf32>
    %6 = tpu.matmul %4, %5, %cst {dimension_numbers = #tpu.dot_dimension_numbers<[1], [0], [0], [1], [0, 0, 1, 1], [], []>} : vector<32x256xbf16>, vector<256x128xbf16>, vector<32x128xf32> -> vector<32x128xf32>
    %7 = arith.addf %3, %6 : vector<32x128xf32>
    %c0_6 = arith.constant 0 : index
    %c0_7 = arith.constant 0 : index
    %8 = vector.load %arg7[%c0_6, %c0_7] : memref<32x128xf32, #tpu.memory_space<vmem>>, vector<32x128xf32>
    tpu.vector_store %arg7[%c0_6, %c0_7], %7 {strides = array<i32>} : memref<32x128xf32, #tpu.memory_space<vmem>>, vector<32x128xf32>,
    %c0_i32_8 = arith.constant 0 : i32
    %9 = arith.cmpi eq, %arg2, %c0_i32_8 : i32
    %10 = arith.extui %9 : i1 to i32
    %c0_i32_9 = arith.constant 0 : i32
    %11 = arith.cmpi ne, %10, %c0_i32_9 : i32
    scf.if %11 {
      %c0_10 = arith.constant 0 : index
      %c0_11 = arith.constant 0 : index
      %12 = vector.load %arg7[%c0_10, %c0_11] : memref<32x128xf32, #tpu.memory_space<vmem>>, vector<32x128xf32>
      %c0_12 = arith.constant 0 : index
      %c0_13 = arith.constant 0 : index
      %13 = vector.load %arg5[%c0_12, %c0_13] : memref<1x128xf32, #tpu.memory_space<vmem>>, vector<1x128xf32>
      %14 = vector.broadcast %13 : vector<1x128xf32> to vector<32x128xf32>
      %15 = arith.addf %12, %14 : vector<32x128xf32>
      %cst_14 = arith.constant 0.000000e+00 : f32
      %16 = vector.broadcast %cst_14 : f32 to vector<32x128xf32>
      %17 = arith.maximumf %15, %16 : vector<32x128xf32>
      %c0_15 = arith.constant 0 : index
      %c0_16 = arith.constant 0 : index
      %18 = vector.load %arg6[%c0_15, %c0_16] : memref<32x128xf32, #tpu.memory_space<vmem>>, vector<32x128xf32>
      tpu.vector_store %arg6[%c0_15, %c0_16], %17 {strides = array<i32>} : memref<32x128xf32, #tpu.memory_space<vmem>>, vector<32x128xf32>,
    } else {
    }
    return
  }
  func.func @transform_0(%arg0: i32, %arg1: i32, %arg2: i32) -> (i32, i32) {
    %c0_i32 = arith.constant 0 : i32
    return %arg0, %arg2 : i32, i32
  }
  func.func @transform_1(%arg0: i32, %arg1: i32, %arg2: i32) -> (i32, i32) {
    %c0_i32 = arith.constant 0 : i32
    return %arg2, %arg1 : i32, i32
  }
  func.func @transform_2(%arg0: i32, %arg1: i32, %arg2: i32) -> (i32, i32) {
    %c0_i32 = arith.constant 0 : i32
    %c0_i32_0 = arith.constant 0 : i32
    return %c0_i32, %arg1 : i32, i32
  }
  func.func @transform_3(%arg0: i32, %arg1: i32, %arg2: i32) -> (i32, i32) {
    %c0_i32 = arith.constant 0 : i32
    return %arg0, %arg1 : i32, i32
  }
}

module attributes {stable_mosaic.version = 11 : i64} {
  func.func @_mm_fused_kernel(%arg0: i32, %arg1: i32, %arg2: i32, %arg3: memref<32x128xbf16, #tpu.memory_space<vmem>>, %arg4: memref<128x128xbf16, #tpu.memory_space<vmem>>, %arg5: memref<1x128xf32, #tpu.memory_space<vmem>>, %arg6: memref<32x128xf32, #tpu.memory_space<vmem>>, %arg7: memref<32x128xf32, #tpu.memory_space<vmem>>) attributes {dimension_semantics = [#tpu.dimension_semantics<parallel>, #tpu.dimension_semantics<parallel>, #tpu.dimension_semantics<arbitrary>], iteration_bounds = array<i64: 1, 1, 1>, scalar_prefetch = 0 : i64, scratch_operands = 1 : i64, tpu.core_type = #tpu.core_type<tc>, window_params = [{transform_indices = @transform_0, window_bounds = array<i64: 32, 128>}, {transform_indices = @transform_1, window_bounds = array<i64: 128, 128>}, {transform_indices = @transform_2, window_bounds = array<i64: 1, 128>}, {transform_indices = @transform_3, window_bounds = array<i64: 32, 128>}]} {
    %c0_i32 = arith.constant 0 : i32
    %0 = arith.cmpi eq, %arg2, %c0_i32 : i32
    %1 = arith.extui %0 : i1 to i32
    %c0_i32_0 = arith.constant 0 : i32
    %2 = arith.cmpi ne, %1, %c0_i32_0 : i32
    scf.if %2 {
      %cst_10 = arith.constant 0.000000e+00 : f32
      %12 = vector.broadcast %cst_10 : f32 to vector<32x128xf32>
      %c0_11 = arith.constant 0 : index
      %c0_12 = arith.constant 0 : index
      %13 = vector.load %arg7[%c0_11, %c0_12] : memref<32x128xf32, #tpu.memory_space<vmem>>, vector<32x128xf32>
      tpu.vector_store %arg7[%c0_11, %c0_12], %12 {strides = array<i32>} : memref<32x128xf32, #tpu.memory_space<vmem>>, vector<32x128xf32>,
    } else {
    }
    %c0 = arith.constant 0 : index
    %c0_1 = arith.constant 0 : index
    %3 = vector.load %arg7[%c0, %c0_1] : memref<32x128xf32, #tpu.memory_space<vmem>>, vector<32x128xf32>
    %c0_2 = arith.constant 0 : index
    %c0_3 = arith.constant 0 : index
    %4 = vector.load %arg3[%c0_2, %c0_3] : memref<32x128xbf16, #tpu.memory_space<vmem>>, vector<32x128xbf16>
    %c0_4 = arith.constant 0 : index
    %c0_5 = arith.constant 0 : index
    %5 = vector.load %arg4[%c0_4, %c0_5] : memref<128x128xbf16, #tpu.memory_space<vmem>>, vector<128x128xbf16>
    %cst = arith.constant dense<0.000000e+00> : vector<32x128xf32>
    %6 = tpu.matmul %4, %5, %cst {dimension_numbers = #tpu.dot_dimension_numbers<[1], [0], [0], [1], [0, 0, 1, 1], [], []>} : vector<32x128xbf16>, vector<128x128xbf16>, vector<32x128xf32> -> vector<32x128xf32>
    %7 = arith.addf %3, %6 : vector<32x128xf32>
    %c0_6 = arith.constant 0 : index
    %c0_7 = arith.constant 0 : index
    %8 = vector.load %arg7[%c0_6, %c0_7] : memref<32x128xf32, #tpu.memory_space<vmem>>, vector<32x128xf32>
    tpu.vector_store %arg7[%c0_6, %c0_7], %7 {strides = array<i32>} : memref<32x128xf32, #tpu.memory_space<vmem>>, vector<32x128xf32>,
    %c0_i32_8 = arith.constant 0 : i32
    %9 = arith.cmpi eq, %arg2, %c0_i32_8 : i32
    %10 = arith.extui %9 : i1 to i32
    %c0_i32_9 = arith.constant 0 : i32
    %11 = arith.cmpi ne, %10, %c0_i32_9 : i32
    scf.if %11 {
      %c0_10 = arith.constant 0 : index
      %c0_11 = arith.constant 0 : index
      %12 = vector.load %arg7[%c0_10, %c0_11] : memref<32x128xf32, #tpu.memory_space<vmem>>, vector<32x128xf32>
      %c0_12 = arith.constant 0 : index
      %c0_13 = arith.constant 0 : index
      %13 = vector.load %arg5[%c0_12, %c0_13] : memref<1x128xf32, #tpu.memory_space<vmem>>, vector<1x128xf32>
      %14 = vector.broadcast %13 : vector<1x128xf32> to vector<32x128xf32>
      %15 = arith.addf %12, %14 : vector<32x128xf32>
      %c0_14 = arith.constant 0 : index
      %c0_15 = arith.constant 0 : index
      %16 = vector.load %arg6[%c0_14, %c0_15] : memref<32x128xf32, #tpu.memory_space<vmem>>, vector<32x128xf32>
      tpu.vector_store %arg6[%c0_14, %c0_15], %15 {strides = array<i32>} : memref<32x128xf32, #tpu.memory_space<vmem>>, vector<32x128xf32>,
    } else {
    }
    return
  }
  func.func @transform_0(%arg0: i32, %arg1: i32, %arg2: i32) -> (i32, i32) {
    %c0_i32 = arith.constant 0 : i32
    return %arg0, %arg2 : i32, i32
  }
  func.func @transform_1(%arg0: i32, %arg1: i32, %arg2: i32) -> (i32, i32) {
    %c0_i32 = arith.constant 0 : i32
    return %arg2, %arg1 : i32, i32
  }
  func.func @transform_2(%arg0: i32, %arg1: i32, %arg2: i32) -> (i32, i32) {
    %c0_i32 = arith.constant 0 : i32
    %c0_i32_0 = arith.constant 0 : i32
    return %c0_i32, %arg1 : i32, i32
  }
  func.func @transform_3(%arg0: i32, %arg1: i32, %arg2: i32) -> (i32, i32) {
    %c0_i32 = arith.constant 0 : i32
    return %arg0, %arg1 : i32, i32
  }
}

module attributes {stable_mosaic.version = 11 : i64} {
  func.func @_mm_fused_kernel(%arg0: i32, %arg1: i32, %arg2: i32, %arg3: memref<32x128xbf16, #tpu.memory_space<vmem>>, %arg4: memref<128x128xbf16, #tpu.memory_space<vmem>>, %arg5: memref<1x128xf32, #tpu.memory_space<vmem>>, %arg6: memref<32x128xf32, #tpu.memory_space<vmem>>, %arg7: memref<32x128xf32, #tpu.memory_space<vmem>>, %arg8: memref<32x128xf32, #tpu.memory_space<vmem>>) attributes {dimension_semantics = [#tpu.dimension_semantics<parallel>, #tpu.dimension_semantics<parallel>, #tpu.dimension_semantics<arbitrary>], iteration_bounds = array<i64: 1, 1, 1>, scalar_prefetch = 0 : i64, scratch_operands = 1 : i64, tpu.core_type = #tpu.core_type<tc>, window_params = [{transform_indices = @transform_0, window_bounds = array<i64: 32, 128>}, {transform_indices = @transform_1, window_bounds = array<i64: 128, 128>}, {transform_indices = @transform_2, window_bounds = array<i64: 1, 128>}, {transform_indices = @transform_3, window_bounds = array<i64: 32, 128>}, {transform_indices = @transform_4, window_bounds = array<i64: 32, 128>}]} {
    %c0_i32 = arith.constant 0 : i32
    %0 = arith.cmpi eq, %arg2, %c0_i32 : i32
    %1 = arith.extui %0 : i1 to i32
    %c0_i32_0 = arith.constant 0 : i32
    %2 = arith.cmpi ne, %1, %c0_i32_0 : i32
    scf.if %2 {
      %cst_10 = arith.constant 0.000000e+00 : f32
      %12 = vector.broadcast %cst_10 : f32 to vector<32x128xf32>
      %c0_11 = arith.constant 0 : index
      %c0_12 = arith.constant 0 : index
      %13 = vector.load %arg8[%c0_11, %c0_12] : memref<32x128xf32, #tpu.memory_space<vmem>>, vector<32x128xf32>
      tpu.vector_store %arg8[%c0_11, %c0_12], %12 {strides = array<i32>} : memref<32x128xf32, #tpu.memory_space<vmem>>, vector<32x128xf32>,
    } else {
    }
    %c0 = arith.constant 0 : index
    %c0_1 = arith.constant 0 : index
    %3 = vector.load %arg8[%c0, %c0_1] : memref<32x128xf32, #tpu.memory_space<vmem>>, vector<32x128xf32>
    %c0_2 = arith.constant 0 : index
    %c0_3 = arith.constant 0 : index
    %4 = vector.load %arg3[%c0_2, %c0_3] : memref<32x128xbf16, #tpu.memory_space<vmem>>, vector<32x128xbf16>
    %c0_4 = arith.constant 0 : index
    %c0_5 = arith.constant 0 : index
    %5 = vector.load %arg4[%c0_4, %c0_5] : memref<128x128xbf16, #tpu.memory_space<vmem>>, vector<128x128xbf16>
    %cst = arith.constant dense<0.000000e+00> : vector<32x128xf32>
    %6 = tpu.matmul %4, %5, %cst {dimension_numbers = #tpu.dot_dimension_numbers<[1], [0], [0], [1], [0, 0, 1, 1], [], []>} : vector<32x128xbf16>, vector<128x128xbf16>, vector<32x128xf32> -> vector<32x128xf32>
    %7 = arith.addf %3, %6 : vector<32x128xf32>
    %c0_6 = arith.constant 0 : index
    %c0_7 = arith.constant 0 : index
    %8 = vector.load %arg8[%c0_6, %c0_7] : memref<32x128xf32, #tpu.memory_space<vmem>>, vector<32x128xf32>
    tpu.vector_store %arg8[%c0_6, %c0_7], %7 {strides = array<i32>} : memref<32x128xf32, #tpu.memory_space<vmem>>, vector<32x128xf32>,
    %c0_i32_8 = arith.constant 0 : i32
    %9 = arith.cmpi eq, %arg2, %c0_i32_8 : i32
    %10 = arith.extui %9 : i1 to i32
    %c0_i32_9 = arith.constant 0 : i32
    %11 = arith.cmpi ne, %10, %c0_i32_9 : i32
    scf.if %11 {
      %c0_10 = arith.constant 0 : index
      %c0_11 = arith.constant 0 : index
      %12 = vector.load %arg8[%c0_10, %c0_11] : memref<32x128xf32, #tpu.memory_space<vmem>>, vector<32x128xf32>
      %c0_12 = arith.constant 0 : index
      %c0_13 = arith.constant 0 : index
      %13 = vector.load %arg5[%c0_12, %c0_13] : memref<1x128xf32, #tpu.memory_space<vmem>>, vector<1x128xf32>
      %14 = vector.broadcast %13 : vector<1x128xf32> to vector<32x128xf32>
      %15 = arith.addf %12, %14 : vector<32x128xf32>
      %c0_14 = arith.constant 0 : index
      %c0_15 = arith.constant 0 : index
      %16 = vector.load %arg6[%c0_14, %c0_15] : memref<32x128xf32, #tpu.memory_space<vmem>>, vector<32x128xf32>
      %17 = arith.addf %15, %16 : vector<32x128xf32>
      %cst_16 = arith.constant 0.000000e+00 : f32
      %18 = vector.broadcast %cst_16 : f32 to vector<32x128xf32>
      %19 = arith.maximumf %17, %18 : vector<32x128xf32>
      %c0_17 = arith.constant 0 : index
      %c0_18 = arith.constant 0 : index
      %20 = vector.load %arg7[%c0_17, %c0_18] : memref<32x128xf32, #tpu.memory_space<vmem>>, vector<32x128xf32>
      tpu.vector_store %arg7[%c0_17, %c0_18], %19 {strides = array<i32>} : memref<32x128xf32, #tpu.memory_space<vmem>>, vector<32x128xf32>,
    } else {
    }
    return
  }
  func.func @transform_0(%arg0: i32, %arg1: i32, %arg2: i32) -> (i32, i32) {
    %c0_i32 = arith.constant 0 : i32
    return %arg0, %arg2 : i32, i32
  }
  func.func @transform_1(%arg0: i32, %arg1: i32, %arg2: i32) -> (i32, i32) {
    %c0_i32 = arith.constant 0 : i32
    return %arg2, %arg1 : i32, i32
  }
  func.func @transform_2(%arg0: i32, %arg1: i32, %arg2: i32) -> (i32, i32) {
    %c0_i32 = arith.constant 0 : i32
    %c0_i32_0 = arith.constant 0 : i32
    return %c0_i32, %arg1 : i32, i32
  }
  func.func @transform_3(%arg0: i32, %arg1: i32, %arg2: i32) -> (i32, i32) {
    %c0_i32 = arith.constant 0 : i32
    return %arg0, %arg1 : i32, i32
  }
  func.func @transform_4(%arg0: i32, %arg1: i32, %arg2: i32) -> (i32, i32) {
    %c0_i32 = arith.constant 0 : i32
    return %arg0, %arg1 : i32, i32
  }
}

module attributes {stable_mosaic.version = 11 : i64} {
  func.func @_mm_fused_kernel(%arg0: i32, %arg1: i32, %arg2: i32, %arg3: memref<32x128xbf16, #tpu.memory_space<vmem>>, %arg4: memref<128x128xbf16, #tpu.memory_space<vmem>>, %arg5: memref<1x128xf32, #tpu.memory_space<vmem>>, %arg6: memref<32x128xf32, #tpu.memory_space<vmem>>, %arg7: memref<32x128xf32, #tpu.memory_space<vmem>>) attributes {dimension_semantics = [#tpu.dimension_semantics<parallel>, #tpu.dimension_semantics<parallel>, #tpu.dimension_semantics<arbitrary>], iteration_bounds = array<i64: 1, 1, 1>, scalar_prefetch = 0 : i64, scratch_operands = 1 : i64, tpu.core_type = #tpu.core_type<tc>, window_params = [{transform_indices = @transform_0, window_bounds = array<i64: 32, 128>}, {transform_indices = @transform_1, window_bounds = array<i64: 128, 128>}, {transform_indices = @transform_2, window_bounds = array<i64: 1, 128>}, {transform_indices = @transform_3, window_bounds = array<i64: 32, 128>}]} {
    %c0_i32 = arith.constant 0 : i32
    %0 = arith.cmpi eq, %arg2, %c0_i32 : i32
    %1 = arith.extui %0 : i1 to i32
    %c0_i32_0 = arith.constant 0 : i32
    %2 = arith.cmpi ne, %1, %c0_i32_0 : i32
    scf.if %2 {
      %cst_10 = arith.constant 0.000000e+00 : f32
      %12 = vector.broadcast %cst_10 : f32 to vector<32x128xf32>
      %c0_11 = arith.constant 0 : index
      %c0_12 = arith.constant 0 : index
      %13 = vector.load %arg7[%c0_11, %c0_12] : memref<32x128xf32, #tpu.memory_space<vmem>>, vector<32x128xf32>
      tpu.vector_store %arg7[%c0_11, %c0_12], %12 {strides = array<i32>} : memref<32x128xf32, #tpu.memory_space<vmem>>, vector<32x128xf32>,
    } else {
    }
    %c0 = arith.constant 0 : index
    %c0_1 = arith.constant 0 : index
    %3 = vector.load %arg7[%c0, %c0_1] : memref<32x128xf32, #tpu.memory_space<vmem>>, vector<32x128xf32>
    %c0_2 = arith.constant 0 : index
    %c0_3 = arith.constant 0 : index
    %4 = vector.load %arg3[%c0_2, %c0_3] : memref<32x128xbf16, #tpu.memory_space<vmem>>, vector<32x128xbf16>
    %c0_4 = arith.constant 0 : index
    %c0_5 = arith.constant 0 : index
    %5 = vector.load %arg4[%c0_4, %c0_5] : memref<128x128xbf16, #tpu.memory_space<vmem>>, vector<128x128xbf16>
    %cst = arith.constant dense<0.000000e+00> : vector<32x128xf32>
    %6 = tpu.matmul %4, %5, %cst {dimension_numbers = #tpu.dot_dimension_numbers<[1], [0], [0], [1], [0, 0, 1, 1], [], []>} : vector<32x128xbf16>, vector<128x128xbf16>, vector<32x128xf32> -> vector<32x128xf32>
    %7 = arith.addf %3, %6 : vector<32x128xf32>
    %c0_6 = arith.constant 0 : index
    %c0_7 = arith.constant 0 : index
    %8 = vector.load %arg7[%c0_6, %c0_7] : memref<32x128xf32, #tpu.memory_space<vmem>>, vector<32x128xf32>
    tpu.vector_store %arg7[%c0_6, %c0_7], %7 {strides = array<i32>} : memref<32x128xf32, #tpu.memory_space<vmem>>, vector<32x128xf32>,
    %c0_i32_8 = arith.constant 0 : i32
    %9 = arith.cmpi eq, %arg2, %c0_i32_8 : i32
    %10 = arith.extui %9 : i1 to i32
    %c0_i32_9 = arith.constant 0 : i32
    %11 = arith.cmpi ne, %10, %c0_i32_9 : i32
    scf.if %11 {
      %c0_10 = arith.constant 0 : index
      %c0_11 = arith.constant 0 : index
      %12 = vector.load %arg7[%c0_10, %c0_11] : memref<32x128xf32, #tpu.memory_space<vmem>>, vector<32x128xf32>
      %c0_12 = arith.constant 0 : index
      %c0_13 = arith.constant 0 : index
      %13 = vector.load %arg5[%c0_12, %c0_13] : memref<1x128xf32, #tpu.memory_space<vmem>>, vector<1x128xf32>
      %14 = vector.broadcast %13 : vector<1x128xf32> to vector<32x128xf32>
      %15 = arith.addf %12, %14 : vector<32x128xf32>
      %cst_14 = arith.constant 0.000000e+00 : f32
      %16 = vector.broadcast %cst_14 : f32 to vector<32x128xf32>
      %17 = arith.maximumf %15, %16 : vector<32x128xf32>
      %c0_15 = arith.constant 0 : index
      %c0_16 = arith.constant 0 : index
      %18 = vector.load %arg6[%c0_15, %c0_16] : memref<32x128xf32, #tpu.memory_space<vmem>>, vector<32x128xf32>
      tpu.vector_store %arg6[%c0_15, %c0_16], %17 {strides = array<i32>} : memref<32x128xf32, #tpu.memory_space<vmem>>, vector<32x128xf32>,
    } else {
    }
    return
  }
  func.func @transform_0(%arg0: i32, %arg1: i32, %arg2: i32) -> (i32, i32) {
    %c0_i32 = arith.constant 0 : i32
    return %arg0, %arg2 : i32, i32
  }
  func.func @transform_1(%arg0: i32, %arg1: i32, %arg2: i32) -> (i32, i32) {
    %c0_i32 = arith.constant 0 : i32
    return %arg2, %arg1 : i32, i32
  }
  func.func @transform_2(%arg0: i32, %arg1: i32, %arg2: i32) -> (i32, i32) {
    %c0_i32 = arith.constant 0 : i32
    %c0_i32_0 = arith.constant 0 : i32
    return %c0_i32, %arg1 : i32, i32
  }
  func.func @transform_3(%arg0: i32, %arg1: i32, %arg2: i32) -> (i32, i32) {
    %c0_i32 = arith.constant 0 : i32
    return %arg0, %arg1 : i32, i32
  }
}

module attributes {stable_mosaic.version = 11 : i64} {
  func.func @_mm_fused_kernel(%arg0: i32, %arg1: i32, %arg2: i32, %arg3: memref<8x128xbf16, #tpu.memory_space<vmem>>, %arg4: memref<128x128xbf16, #tpu.memory_space<vmem>>, %arg5: memref<1x128xf32, #tpu.memory_space<vmem>>, %arg6: memref<8x128xf32, #tpu.memory_space<vmem>>, %arg7: memref<8x128xf32, #tpu.memory_space<vmem>>) attributes {dimension_semantics = [#tpu.dimension_semantics<parallel>, #tpu.dimension_semantics<parallel>, #tpu.dimension_semantics<arbitrary>], iteration_bounds = array<i64: 1, 1, 3>, scalar_prefetch = 0 : i64, scratch_operands = 1 : i64, tpu.core_type = #tpu.core_type<tc>, window_params = [{transform_indices = @transform_0, window_bounds = array<i64: 8, 128>}, {transform_indices = @transform_1, window_bounds = array<i64: 128, 128>}, {transform_indices = @transform_2, window_bounds = array<i64: 1, 128>}, {transform_indices = @transform_3, window_bounds = array<i64: 8, 128>}]} {
    %c0_i32 = arith.constant 0 : i32
    %0 = arith.cmpi eq, %arg2, %c0_i32 : i32
    %1 = arith.extui %0 : i1 to i32
    %c0_i32_0 = arith.constant 0 : i32
    %2 = arith.cmpi ne, %1, %c0_i32_0 : i32
    scf.if %2 {
      %cst_9 = arith.constant 0.000000e+00 : f32
      %12 = vector.broadcast %cst_9 : f32 to vector<8x128xf32>
      %c0_10 = arith.constant 0 : index
      %c0_11 = arith.constant 0 : index
      %13 = vector.load %arg7[%c0_10, %c0_11] : memref<8x128xf32, #tpu.memory_space<vmem>>, vector<8x128xf32>
      tpu.vector_store %arg7[%c0_10, %c0_11], %12 {strides = array<i32>} : memref<8x128xf32, #tpu.memory_space<vmem>>, vector<8x128xf32>,
    } else {
    }
    %c0 = arith.constant 0 : index
    %c0_1 = arith.constant 0 : index
    %3 = vector.load %arg7[%c0, %c0_1] : memref<8x128xf32, #tpu.memory_space<vmem>>, vector<8x128xf32>
    %c0_2 = arith.constant 0 : index
    %c0_3 = arith.constant 0 : index
    %4 = vector.load %arg3[%c0_2, %c0_3] : memref<8x128xbf16, #tpu.memory_space<vmem>>, vector<8x128xbf16>
    %c0_4 = arith.constant 0 : index
    %c0_5 = arith.constant 0 : index
    %5 = vector.load %arg4[%c0_4, %c0_5] : memref<128x128xbf16, #tpu.memory_space<vmem>>, vector<128x128xbf16>
    %cst = arith.constant dense<0.000000e+00> : vector<8x128xf32>
    %6 = tpu.matmul %4, %5, %cst {dimension_numbers = #tpu.dot_dimension_numbers<[1], [0], [0], [1], [0, 0, 1, 1], [], []>} : vector<8x128xbf16>, vector<128x128xbf16>, vector<8x128xf32> -> vector<8x128xf32>
    %7 = arith.addf %3, %6 : vector<8x128xf32>
    %c0_6 = arith.constant 0 : index
    %c0_7 = arith.constant 0 : index
    %8 = vector.load %arg7[%c0_6, %c0_7] : memref<8x128xf32, #tpu.memory_space<vmem>>, vector<8x128xf32>
    tpu.vector_store %arg7[%c0_6, %c0_7], %7 {strides = array<i32>} : memref<8x128xf32, #tpu.memory_space<vmem>>, vector<8x128xf32>,
    %c2_i32 = arith.constant 2 : i32
    %9 = arith.cmpi eq, %arg2, %c2_i32 : i32
    %10 = arith.extui %9 : i1 to i32
    %c0_i32_8 = arith.constant 0 : i32
    %11 = arith.cmpi ne, %10, %c0_i32_8 : i32
    scf.if %11 {
      %c0_9 = arith.constant 0 : index
      %c0_10 = arith.constant 0 : index
      %12 = vector.load %arg7[%c0_9, %c0_10] : memref<8x128xf32, #tpu.memory_space<vmem>>, vector<8x128xf32>
      %c0_11 = arith.constant 0 : index
      %c0_12 = arith.constant 0 : index
      %13 = vector.load %arg5[%c0_11, %c0_12] : memref<1x128xf32, #tpu.memory_space<vmem>>, vector<1x128xf32>
      %14 = vector.broadcast %13 : vector<1x128xf32> to vector<8x128xf32>
      %15 = arith.addf %12, %14 : vector<8x128xf32>
      %cst_13 = arith.constant 0.000000e+00 : f32
      %16 = vector.broadcast %cst_13 : f32 to vector<8x128xf32>
      %17 = arith.maximumf %15, %16 : vector<8x128xf32>
      %c0_14 = arith.constant 0 : index
      %c0_15 = arith.constant 0 : index
      %18 = vector.load %arg6[%c0_14, %c0_15] : memref<8x128xf32, #tpu.memory_space<vmem>>, vector<8x128xf32>
      tpu.vector_store %arg6[%c0_14, %c0_15], %17 {strides = array<i32>} : memref<8x128xf32, #tpu.memory_space<vmem>>, vector<8x128xf32>,
    } else {
    }
    return
  }
  func.func @transform_0(%arg0: i32, %arg1: i32, %arg2: i32) -> (i32, i32) {
    %c0_i32 = arith.constant 0 : i32
    return %arg0, %arg2 : i32, i32
  }
  func.func @transform_1(%arg0: i32, %arg1: i32, %arg2: i32) -> (i32, i32) {
    %c0_i32 = arith.constant 0 : i32
    return %arg2, %arg1 : i32, i32
  }
  func.func @transform_2(%arg0: i32, %arg1: i32, %arg2: i32) -> (i32, i32) {
    %c0_i32 = arith.constant 0 : i32
    %c0_i32_0 = arith.constant 0 : i32
    return %c0_i32, %arg1 : i32, i32
  }
  func.func @transform_3(%arg0: i32, %arg1: i32, %arg2: i32) -> (i32, i32) {
    %c0_i32 = arith.constant 0 : i32
    return %arg0, %arg1 : i32, i32
  }
}

module attributes {stable_mosaic.version = 11 : i64} {
  func.func @_mm_fused_kernel(%arg0: i32, %arg1: i32, %arg2: i32, %arg3: memref<8x128xbf16, #tpu.memory_space<vmem>>, %arg4: memref<128x128xbf16, #tpu.memory_space<vmem>>, %arg5: memref<1x128xf32, #tpu.memory_space<vmem>>, %arg6: memref<8x128xf32, #tpu.memory_space<vmem>>, %arg7: memref<8x128xf32, #tpu.memory_space<vmem>>) attributes {dimension_semantics = [#tpu.dimension_semantics<parallel>, #tpu.dimension_semantics<parallel>, #tpu.dimension_semantics<arbitrary>], iteration_bounds = array<i64: 1, 1, 1>, scalar_prefetch = 0 : i64, scratch_operands = 1 : i64, tpu.core_type = #tpu.core_type<tc>, window_params = [{transform_indices = @transform_0, window_bounds = array<i64: 8, 128>}, {transform_indices = @transform_1, window_bounds = array<i64: 128, 128>}, {transform_indices = @transform_2, window_bounds = array<i64: 1, 128>}, {transform_indices = @transform_3, window_bounds = array<i64: 8, 128>}]} {
    %c0_i32 = arith.constant 0 : i32
    %0 = arith.cmpi eq, %arg2, %c0_i32 : i32
    %1 = arith.extui %0 : i1 to i32
    %c0_i32_0 = arith.constant 0 : i32
    %2 = arith.cmpi ne, %1, %c0_i32_0 : i32
    scf.if %2 {
      %cst_10 = arith.constant 0.000000e+00 : f32
      %12 = vector.broadcast %cst_10 : f32 to vector<8x128xf32>
      %c0_11 = arith.constant 0 : index
      %c0_12 = arith.constant 0 : index
      %13 = vector.load %arg7[%c0_11, %c0_12] : memref<8x128xf32, #tpu.memory_space<vmem>>, vector<8x128xf32>
      tpu.vector_store %arg7[%c0_11, %c0_12], %12 {strides = array<i32>} : memref<8x128xf32, #tpu.memory_space<vmem>>, vector<8x128xf32>,
    } else {
    }
    %c0 = arith.constant 0 : index
    %c0_1 = arith.constant 0 : index
    %3 = vector.load %arg7[%c0, %c0_1] : memref<8x128xf32, #tpu.memory_space<vmem>>, vector<8x128xf32>
    %c0_2 = arith.constant 0 : index
    %c0_3 = arith.constant 0 : index
    %4 = vector.load %arg3[%c0_2, %c0_3] : memref<8x128xbf16, #tpu.memory_space<vmem>>, vector<8x128xbf16>
    %c0_4 = arith.constant 0 : index
    %c0_5 = arith.constant 0 : index
    %5 = vector.load %arg4[%c0_4, %c0_5] : memref<128x128xbf16, #tpu.memory_space<vmem>>, vector<128x128xbf16>
    %cst = arith.constant dense<0.000000e+00> : vector<8x128xf32>
    %6 = tpu.matmul %4, %5, %cst {dimension_numbers = #tpu.dot_dimension_numbers<[1], [0], [0], [1], [0, 0, 1, 1], [], []>} : vector<8x128xbf16>, vector<128x128xbf16>, vector<8x128xf32> -> vector<8x128xf32>
    %7 = arith.addf %3, %6 : vector<8x128xf32>
    %c0_6 = arith.constant 0 : index
    %c0_7 = arith.constant 0 : index
    %8 = vector.load %arg7[%c0_6, %c0_7] : memref<8x128xf32, #tpu.memory_space<vmem>>, vector<8x128xf32>
    tpu.vector_store %arg7[%c0_6, %c0_7], %7 {strides = array<i32>} : memref<8x128xf32, #tpu.memory_space<vmem>>, vector<8x128xf32>,
    %c0_i32_8 = arith.constant 0 : i32
    %9 = arith.cmpi eq, %arg2, %c0_i32_8 : i32
    %10 = arith.extui %9 : i1 to i32
    %c0_i32_9 = arith.constant 0 : i32
    %11 = arith.cmpi ne, %10, %c0_i32_9 : i32
    scf.if %11 {
      %c0_10 = arith.constant 0 : index
      %c0_11 = arith.constant 0 : index
      %12 = vector.load %arg7[%c0_10, %c0_11] : memref<8x128xf32, #tpu.memory_space<vmem>>, vector<8x128xf32>
      %c0_12 = arith.constant 0 : index
      %c0_13 = arith.constant 0 : index
      %13 = vector.load %arg5[%c0_12, %c0_13] : memref<1x128xf32, #tpu.memory_space<vmem>>, vector<1x128xf32>
      %14 = vector.broadcast %13 : vector<1x128xf32> to vector<8x128xf32>
      %15 = arith.addf %12, %14 : vector<8x128xf32>
      %c0_14 = arith.constant 0 : index
      %c0_15 = arith.constant 0 : index
      %16 = vector.load %arg6[%c0_14, %c0_15] : memref<8x128xf32, #tpu.memory_space<vmem>>, vector<8x128xf32>
      tpu.vector_store %arg6[%c0_14, %c0_15], %15 {strides = array<i32>} : memref<8x128xf32, #tpu.memory_space<vmem>>, vector<8x128xf32>,
    } else {
    }
    return
  }
  func.func @transform_0(%arg0: i32, %arg1: i32, %arg2: i32) -> (i32, i32) {
    %c0_i32 = arith.constant 0 : i32
    return %arg0, %arg2 : i32, i32
  }
  func.func @transform_1(%arg0: i32, %arg1: i32, %arg2: i32) -> (i32, i32) {
    %c0_i32 = arith.constant 0 : i32
    return %arg2, %arg1 : i32, i32
  }
  func.func @transform_2(%arg0: i32, %arg1: i32, %arg2: i32) -> (i32, i32) {
    %c0_i32 = arith.constant 0 : i32
    %c0_i32_0 = arith.constant 0 : i32
    return %c0_i32, %arg1 : i32, i32
  }
  func.func @transform_3(%arg0: i32, %arg1: i32, %arg2: i32) -> (i32, i32) {
    %c0_i32 = arith.constant 0 : i32
    return %arg0, %arg1 : i32, i32
  }
}

module attributes {stable_mosaic.version = 11 : i64} {
  func.func @_mm_fused_kernel(%arg0: i32, %arg1: i32, %arg2: i32, %arg3: memref<8x128xbf16, #tpu.memory_space<vmem>>, %arg4: memref<128x128xbf16, #tpu.memory_space<vmem>>, %arg5: memref<1x128xf32, #tpu.memory_space<vmem>>, %arg6: memref<8x128xf32, #tpu.memory_space<vmem>>, %arg7: memref<8x128xf32, #tpu.memory_space<vmem>>, %arg8: memref<8x128xf32, #tpu.memory_space<vmem>>) attributes {dimension_semantics = [#tpu.dimension_semantics<parallel>, #tpu.dimension_semantics<parallel>, #tpu.dimension_semantics<arbitrary>], iteration_bounds = array<i64: 1, 1, 1>, scalar_prefetch = 0 : i64, scratch_operands = 1 : i64, tpu.core_type = #tpu.core_type<tc>, window_params = [{transform_indices = @transform_0, window_bounds = array<i64: 8, 128>}, {transform_indices = @transform_1, window_bounds = array<i64: 128, 128>}, {transform_indices = @transform_2, window_bounds = array<i64: 1, 128>}, {transform_indices = @transform_3, window_bounds = array<i64: 8, 128>}, {transform_indices = @transform_4, window_bounds = array<i64: 8, 128>}]} {
    %c0_i32 = arith.constant 0 : i32
    %0 = arith.cmpi eq, %arg2, %c0_i32 : i32
    %1 = arith.extui %0 : i1 to i32
    %c0_i32_0 = arith.constant 0 : i32
    %2 = arith.cmpi ne, %1, %c0_i32_0 : i32
    scf.if %2 {
      %cst_10 = arith.constant 0.000000e+00 : f32
      %12 = vector.broadcast %cst_10 : f32 to vector<8x128xf32>
      %c0_11 = arith.constant 0 : index
      %c0_12 = arith.constant 0 : index
      %13 = vector.load %arg8[%c0_11, %c0_12] : memref<8x128xf32, #tpu.memory_space<vmem>>, vector<8x128xf32>
      tpu.vector_store %arg8[%c0_11, %c0_12], %12 {strides = array<i32>} : memref<8x128xf32, #tpu.memory_space<vmem>>, vector<8x128xf32>,
    } else {
    }
    %c0 = arith.constant 0 : index
    %c0_1 = arith.constant 0 : index
    %3 = vector.load %arg8[%c0, %c0_1] : memref<8x128xf32, #tpu.memory_space<vmem>>, vector<8x128xf32>
    %c0_2 = arith.constant 0 : index
    %c0_3 = arith.constant 0 : index
    %4 = vector.load %arg3[%c0_2, %c0_3] : memref<8x128xbf16, #tpu.memory_space<vmem>>, vector<8x128xbf16>
    %c0_4 = arith.constant 0 : index
    %c0_5 = arith.constant 0 : index
    %5 = vector.load %arg4[%c0_4, %c0_5] : memref<128x128xbf16, #tpu.memory_space<vmem>>, vector<128x128xbf16>
    %cst = arith.constant dense<0.000000e+00> : vector<8x128xf32>
    %6 = tpu.matmul %4, %5, %cst {dimension_numbers = #tpu.dot_dimension_numbers<[1], [0], [0], [1], [0, 0, 1, 1], [], []>} : vector<8x128xbf16>, vector<128x128xbf16>, vector<8x128xf32> -> vector<8x128xf32>
    %7 = arith.addf %3, %6 : vector<8x128xf32>
    %c0_6 = arith.constant 0 : index
    %c0_7 = arith.constant 0 : index
    %8 = vector.load %arg8[%c0_6, %c0_7] : memref<8x128xf32, #tpu.memory_space<vmem>>, vector<8x128xf32>
    tpu.vector_store %arg8[%c0_6, %c0_7], %7 {strides = array<i32>} : memref<8x128xf32, #tpu.memory_space<vmem>>, vector<8x128xf32>,
    %c0_i32_8 = arith.constant 0 : i32
    %9 = arith.cmpi eq, %arg2, %c0_i32_8 : i32
    %10 = arith.extui %9 : i1 to i32
    %c0_i32_9 = arith.constant 0 : i32
    %11 = arith.cmpi ne, %10, %c0_i32_9 : i32
    scf.if %11 {
      %c0_10 = arith.constant 0 : index
      %c0_11 = arith.constant 0 : index
      %12 = vector.load %arg8[%c0_10, %c0_11] : memref<8x128xf32, #tpu.memory_space<vmem>>, vector<8x128xf32>
      %c0_12 = arith.constant 0 : index
      %c0_13 = arith.constant 0 : index
      %13 = vector.load %arg5[%c0_12, %c0_13] : memref<1x128xf32, #tpu.memory_space<vmem>>, vector<1x128xf32>
      %14 = vector.broadcast %13 : vector<1x128xf32> to vector<8x128xf32>
      %15 = arith.addf %12, %14 : vector<8x128xf32>
      %c0_14 = arith.constant 0 : index
      %c0_15 = arith.constant 0 : index
      %16 = vector.load %arg6[%c0_14, %c0_15] : memref<8x128xf32, #tpu.memory_space<vmem>>, vector<8x128xf32>
      %17 = arith.addf %15, %16 : vector<8x128xf32>
      %cst_16 = arith.constant 0.000000e+00 : f32
      %18 = vector.broadcast %cst_16 : f32 to vector<8x128xf32>
      %19 = arith.maximumf %17, %18 : vector<8x128xf32>
      %c0_17 = arith.constant 0 : index
      %c0_18 = arith.constant 0 : index
      %20 = vector.load %arg7[%c0_17, %c0_18] : memref<8x128xf32, #tpu.memory_space<vmem>>, vector<8x128xf32>
      tpu.vector_store %arg7[%c0_17, %c0_18], %19 {strides = array<i32>} : memref<8x128xf32, #tpu.memory_space<vmem>>, vector<8x128xf32>,
    } else {
    }
    return
  }
  func.func @transform_0(%arg0: i32, %arg1: i32, %arg2: i32) -> (i32, i32) {
    %c0_i32 = arith.constant 0 : i32
    return %arg0, %arg2 : i32, i32
  }
  func.func @transform_1(%arg0: i32, %arg1: i32, %arg2: i32) -> (i32, i32) {
    %c0_i32 = arith.constant 0 : i32
    return %arg2, %arg1 : i32, i32
  }
  func.func @transform_2(%arg0: i32, %arg1: i32, %arg2: i32) -> (i32, i32) {
    %c0_i32 = arith.constant 0 : i32
    %c0_i32_0 = arith.constant 0 : i32
    return %c0_i32, %arg1 : i32, i32
  }
  func.func @transform_3(%arg0: i32, %arg1: i32, %arg2: i32) -> (i32, i32) {
    %c0_i32 = arith.constant 0 : i32
    return %arg0, %arg1 : i32, i32
  }
  func.func @transform_4(%arg0: i32, %arg1: i32, %arg2: i32) -> (i32, i32) {
    %c0_i32 = arith.constant 0 : i32
    return %arg0, %arg1 : i32, i32
  }
}

</mosaic_0001>

<llo_original>
// kernel: patch_embed_forward.14
$region0: #{patch_embed_forward.14}
  #allocation0 [shape = 'u32[]', space=smem, size = 0x4, offset = 0x4, fixed_abs, tag = 'smem constant byte address 0x4 - core index']
  #allocation1 [shape = 'u32[144,128]{1,0:T(1,128)}', space=vmem, size = 0x12000, scoped, tag = 'internal scratch']
  #allocation2 [shape = 'f32[512,128]{1,0:T(8,128)}', space=vmem, size = 0x40000, scoped, tag = 'scratch operand']
  %s0 = inlined_call_operand.vmem [shape: bf16[512,256], index: 0, kind: input, shape index: {}]
  %s1 = inlined_call_operand.vmem [shape: bf16[256,128], index: 1, kind: input, shape index: {}]
  %s2 = inlined_call_operand.vmem [shape: f32[1,128], index: 2, kind: input, shape index: {}]
  %s3 = inlined_call_operand.vmem [shape: f32[512,128], index: 3, kind: output, shape index: {}]
  %s4 = sld [smem:[#allocation0]]
  $region30: #{patch_embed_forward.14} parent=0
    _
  %s6 = ssub.s32 1, %s4
  %s7 = scalar_select 0, %s6, %s4
  // Predicated region
  $region2: #{patch_embed_forward.14} parent=0 // pred_check
    _
  $region3: #{patch_embed_forward.14} parent=0 // pred_check_branch
    %9 = sbr.rel (0) target = $region5
  $region4: #{patch_embed_forward.14} parent=0 // pred_region
    _
  $region5: #{patch_embed_forward.14} parent=0 // pred_fallthru
    _
  // Predicated region
  $region6: #{patch_embed_forward.14} parent=0 // pred_check
    _
  $region7: #{patch_embed_forward.14} parent=0 // pred_check_branch
    %11 = sbr.rel (0) target = $region9
  $region8: #{patch_embed_forward.14} parent=0 // pred_region
    _
  $region9: #{patch_embed_forward.14} parent=0 // pred_fallthru
    _
  // Predicated region
  $region10: #{patch_embed_forward.14} parent=0 // pred_check
    _
  $region11: #{patch_embed_forward.14} parent=0 // pred_check_branch
    %13 = sbr.rel (0) target = $region13
  $region12: #{patch_embed_forward.14} parent=0 // pred_region
    _
  $region13: #{patch_embed_forward.14} parent=0 // pred_fallthru
    _
  %p15 = scmp.eq.s32.totalorder 0, 0
  // Predicated region
  $region14: #{patch_embed_forward.14} parent=0 // pred_check
    %p16 = pneg %p15
  $region15: #{patch_embed_forward.14} parent=0 // pred_check_branch
    %18 = sbr.rel (%p16) target = $region17
  $region16: #{patch_embed_forward.14} parent=0 // pred_region
    %19 = vst [vmem:[#allocation2] sm:$0xff] 0.0
    %20 = vst [vmem:[#allocation2 + $0x8] sm:$0xff] 0.0
    %21 = vst [vmem:[#allocation2 + $0x10] sm:$0xff] 0.0
    %22 = vst [vmem:[#allocation2 + $0x18] sm:$0xff] 0.0
    %23 = vst [vmem:[#allocation2 + $0x20] sm:$0xff] 0.0
    %24 = vst [vmem:[#allocation2 + $0x28] sm:$0xff] 0.0
    %25 = vst [vmem:[#allocation2 + $0x30] sm:$0xff] 0.0
    %26 = vst [vmem:[#allocation2 + $0x38] sm:$0xff] 0.0
    %27 = vst [vmem:[#allocation2 + $0x40] sm:$0xff] 0.0
    %28 = vst [vmem:[#allocation2 + $0x48] sm:$0xff] 0.0
    %29 = vst [vmem:[#allocation2 + $0x50] sm:$0xff] 0.0
    %30 = vst [vmem:[#allocation2 + $0x58] sm:$0xff] 0.0
    %31 = vst [vmem:[#allocation2 + $0x60] sm:$0xff] 0.0
    %32 = vst [vmem:[#allocation2 + $0x68] sm:$0xff] 0.0
    %33 = vst [vmem:[#allocation2 + $0x70] sm:$0xff] 0.0
    %34 = vst [vmem:[#allocation2 + $0x78] sm:$0xff] 0.0
    %35 = vst [vmem:[#allocation2 + $0x80] sm:$0xff] 0.0
    %36 = vst [vmem:[#allocation2 + $0x88] sm:$0xff] 0.0
    %37 = vst [vmem:[#allocation2 + $0x90] sm:$0xff] 0.0
    %38 = vst [vmem:[#allocation2 + $0x98] sm:$0xff] 0.0
    %39 = vst [vmem:[#allocation2 + $0xa0] sm:$0xff] 0.0
    %40 = vst [vmem:[#allocation2 + $0xa8] sm:$0xff] 0.0
    %41 = vst [vmem:[#allocation2 + $0xb0] sm:$0xff] 0.0
    %42 = vst [vmem:[#allocation2 + $0xb8] sm:$0xff] 0.0
    %43 = vst [vmem:[#allocation2 + $0xc0] sm:$0xff] 0.0
    %44 = vst [vmem:[#allocation2 + $0xc8] sm:$0xff] 0.0
    %45 = vst [vmem:[#allocation2 + $0xd0] sm:$0xff] 0.0
    %46 = vst [vmem:[#allocation2 + $0xd8] sm:$0xff] 0.0
    %47 = vst [vmem:[#allocation2 + $0xe0] sm:$0xff] 0.0
    %48 = vst [vmem:[#allocation2 + $0xe8] sm:$0xff] 0.0
    %49 = vst [vmem:[#allocation2 + $0xf0] sm:$0xff] 0.0
    %50 = vst [vmem:[#allocation2 + $0xf8] sm:$0xff] 0.0
    %51 = vst [vmem:[#allocation2 + $0x100] sm:$0xff] 0.0
    %52 = vst [vmem:[#allocation2 + $0x108] sm:$0xff] 0.0
    %53 = vst [vmem:[#allocation2 + $0x110] sm:$0xff] 0.0
    %54 = vst [vmem:[#allocation2 + $0x118] sm:$0xff] 0.0
    %55 = vst [vmem:[#allocation2 + $0x120] sm:$0xff] 0.0
    %56 = vst [vmem:[#allocation2 + $0x128] sm:$0xff] 0.0
    %57 = vst [vmem:[#allocation2 + $0x130] sm:$0xff] 0.0
    %58 = vst [vmem:[#allocation2 + $0x138] sm:$0xff] 0.0
    %59 = vst [vmem:[#allocation2 + $0x140] sm:$0xff] 0.0
    %60 = vst [vmem:[#allocation2 + $0x148] sm:$0xff] 0.0
    %61 = vst [vmem:[#allocation2 + $0x150] sm:$0xff] 0.0
    %62 = vst [vmem:[#allocation2 + $0x158] sm:$0xff] 0.0
    %63 = vst [vmem:[#allocation2 + $0x160] sm:$0xff] 0.0
    %64 = vst [vmem:[#allocation2 + $0x168] sm:$0xff] 0.0
    %65 = vst [vmem:[#allocation2 + $0x170] sm:$0xff] 0.0
    %66 = vst [vmem:[#allocation2 + $0x178] sm:$0xff] 0.0
    %67 = vst [vmem:[#allocation2 + $0x180] sm:$0xff] 0.0
    %68 = vst [vmem:[#allocation2 + $0x188] sm:$0xff] 0.0
    %69 = vst [vmem:[#allocation2 + $0x190] sm:$0xff] 0.0
    %70 = vst [vmem:[#allocation2 + $0x198] sm:$0xff] 0.0
    %71 = vst [vmem:[#allocation2 + $0x1a0] sm:$0xff] 0.0
    %72 = vst [vmem:[#allocation2 + $0x1a8] sm:$0xff] 0.0
    %73 = vst [vmem:[#allocation2 + $0x1b0] sm:$0xff] 0.0
    %74 = vst [vmem:[#allocation2 + $0x1b8] sm:$0xff] 0.0
    %75 = vst [vmem:[#allocation2 + $0x1c0] sm:$0xff] 0.0
    %76 = vst [vmem:[#allocation2 + $0x1c8] sm:$0xff] 0.0
    %77 = vst [vmem:[#allocation2 + $0x1d0] sm:$0xff] 0.0
    %78 = vst [vmem:[#allocation2 + $0x1d8] sm:$0xff] 0.0
    %79 = vst [vmem:[#allocation2 + $0x1e0] sm:$0xff] 0.0
    %80 = vst [vmem:[#allocation2 + $0x1e8] sm:$0xff] 0.0
    %81 = vst [vmem:[#allocation2 + $0x1f0] sm:$0xff] 0.0
    %82 = vst [vmem:[#allocation2 + $0x1f8] sm:$0xff] 0.0
  $region17: #{patch_embed_forward.14} parent=0 // pred_fallthru
    _
  %v83 = vld [vmem:[#allocation2] sm:$0xff]
  %v84 = vld [vmem:[#allocation2 + $0x8] sm:$0xff]
  %v85 = vld [vmem:[#allocation2 + $0x10] sm:$0xff]
  %v86 = vld [vmem:[#allocation2 + $0x18] sm:$0xff]
  %v87 = vld [vmem:[#allocation2 + $0x20] sm:$0xff]
  %v88 = vld [vmem:[#allocation2 + $0x28] sm:$0xff]
  %v89 = vld [vmem:[#allocation2 + $0x30] sm:$0xff]
  %v90 = vld [vmem:[#allocation2 + $0x38] sm:$0xff]
  %v91 = vld [vmem:[#allocation2 + $0x40] sm:$0xff]
  %v92 = vld [vmem:[#allocation2 + $0x48] sm:$0xff]
  %v93 = vld [vmem:[#allocation2 + $0x50] sm:$0xff]
  %v94 = vld [vmem:[#allocation2 + $0x58] sm:$0xff]
  %v95 = vld [vmem:[#allocation2 + $0x60] sm:$0xff]
  %v96 = vld [vmem:[#allocation2 + $0x68] sm:$0xff]
  %v97 = vld [vmem:[#allocation2 + $0x70] sm:$0xff]
  %v98 = vld [vmem:[#allocation2 + $0x78] sm:$0xff]
  %v99 = vld [vmem:[#allocation2 + $0x80] sm:$0xff]
  %v100 = vld [vmem:[#allocation2 + $0x88] sm:$0xff]
  %v101 = vld [vmem:[#allocation2 + $0x90] sm:$0xff]
  %v102 = vld [vmem:[#allocation2 + $0x98] sm:$0xff]
  %v103 = vld [vmem:[#allocation2 + $0xa0] sm:$0xff]
  %v104 = vld [vmem:[#allocation2 + $0xa8] sm:$0xff]
  %v105 = vld [vmem:[#allocation2 + $0xb0] sm:$0xff]
  %v106 = vld [vmem:[#allocation2 + $0xb8] sm:$0xff]
  %v107 = vld [vmem:[#allocation2 + $0xc0] sm:$0xff]
  %v108 = vld [vmem:[#allocation2 + $0xc8] sm:$0xff]
  %v109 = vld [vmem:[#allocation2 + $0xd0] sm:$0xff]
  %v110 = vld [vmem:[#allocation2 + $0xd8] sm:$0xff]
  %v111 = vld [vmem:[#allocation2 + $0xe0] sm:$0xff]
  %v112 = vld [vmem:[#allocation2 + $0xe8] sm:$0xff]
  %v113 = vld [vmem:[#allocation2 + $0xf0] sm:$0xff]
  %v114 = vld [vmem:[#allocation2 + $0xf8] sm:$0xff]
  %v115 = vld [vmem:[#allocation2 + $0x100] sm:$0xff]
  %v116 = vld [vmem:[#allocation2 + $0x108] sm:$0xff]
  %v117 = vld [vmem:[#allocation2 + $0x110] sm:$0xff]
  %v118 = vld [vmem:[#allocation2 + $0x118] sm:$0xff]
  %v119 = vld [vmem:[#allocation2 + $0x120] sm:$0xff]
  %v120 = vld [vmem:[#allocation2 + $0x128] sm:$0xff]
  %v121 = vld [vmem:[#allocation2 + $0x130] sm:$0xff]
  %v122 = vld [vmem:[#allocation2 + $0x138] sm:$0xff]
  %v123 = vld [vmem:[#allocation2 + $0x140] sm:$0xff]
  %v124 = vld [vmem:[#allocation2 + $0x148] sm:$0xff]
  %v125 = vld [vmem:[#allocation2 + $0x150] sm:$0xff]
  %v126 = vld [vmem:[#allocation2 + $0x158] sm:$0xff]
  %v127 = vld [vmem:[#allocation2 + $0x160] sm:$0xff]
  %v128 = vld [vmem:[#allocation2 + $0x168] sm:$0xff]
  %v129 = vld [vmem:[#allocation2 + $0x170] sm:$0xff]
  %v130 = vld [vmem:[#allocation2 + $0x178] sm:$0xff]
  %v131 = vld [vmem:[#allocation2 + $0x180] sm:$0xff]
  %v132 = vld [vmem:[#allocation2 + $0x188] sm:$0xff]
  %v133 = vld [vmem:[#allocation2 + $0x190] sm:$0xff]
  %v134 = vld [vmem:[#allocation2 + $0x198] sm:$0xff]
  %v135 = vld [vmem:[#allocation2 + $0x1a0] sm:$0xff]
  %v136 = vld [vmem:[#allocation2 + $0x1a8] sm:$0xff]
  %v137 = vld [vmem:[#allocation2 + $0x1b0] sm:$0xff]
  %v138 = vld [vmem:[#allocation2 + $0x1b8] sm:$0xff]
  %v139 = vld [vmem:[#allocation2 + $0x1c0] sm:$0xff]
  %v140 = vld [vmem:[#allocation2 + $0x1c8] sm:$0xff]
  %v141 = vld [vmem:[#allocation2 + $0x1d0] sm:$0xff]
  %v142 = vld [vmem:[#allocation2 + $0x1d8] sm:$0xff]
  %v143 = vld [vmem:[#allocation2 + $0x1e0] sm:$0xff]
  %v144 = vld [vmem:[#allocation2 + $0x1e8] sm:$0xff]
  %v145 = vld [vmem:[#allocation2 + $0x1f0] sm:$0xff]
  %v146 = vld [vmem:[#allocation2 + $0x1f8] sm:$0xff]
  %v147 = vld [vmem:[%s0] sm:$0xff]
  %v148 = vld [vmem:[%s0 + $0x8] sm:$0xff]
  %v149 = vld [vmem:[%s0 + $0x10] sm:$0xff]
  %v150 = vld [vmem:[%s0 + $0x18] sm:$0xff]
  %v151 = vld [vmem:[%s0 + $0x20] sm:$0xff]
  %v152 = vld [vmem:[%s0 + $0x28] sm:$0xff]
  %v153 = vld [vmem:[%s0 + $0x30] sm:$0xff]
  %v154 = vld [vmem:[%s0 + $0x38] sm:$0xff]
  %v155 = vld [vmem:[%s0 + $0x40] sm:$0xff]
  %v156 = vld [vmem:[%s0 + $0x48] sm:$0xff]
  %v157 = vld [vmem:[%s0 + $0x50] sm:$0xff]
  %v158 = vld [vmem:[%s0 + $0x58] sm:$0xff]
  %v159 = vld [vmem:[%s0 + $0x60] sm:$0xff]
  %v160 = vld [vmem:[%s0 + $0x68] sm:$0xff]
  %v161 = vld [vmem:[%s0 + $0x70] sm:$0xff]
  %v162 = vld [vmem:[%s0 + $0x78] sm:$0xff]
  %v163 = vld [vmem:[%s0 + $0x80] sm:$0xff]
  %v164 = vld [vmem:[%s0 + $0x88] sm:$0xff]
  %v165 = vld [vmem:[%s0 + $0x90] sm:$0xff]
  %v166 = vld [vmem:[%s0 + $0x98] sm:$0xff]
  %v167 = vld [vmem:[%s0 + $0xa0] sm:$0xff]
  %v168 = vld [vmem:[%s0 + $0xa8] sm:$0xff]
  %v169 = vld [vmem:[%s0 + $0xb0] sm:$0xff]
  %v170 = vld [vmem:[%s0 + $0xb8] sm:$0xff]
  %v171 = vld [vmem:[%s0 + $0xc0] sm:$0xff]
  %v172 = vld [vmem:[%s0 + $0xc8] sm:$0xff]
  %v173 = vld [vmem:[%s0 + $0xd0] sm:$0xff]
  %v174 = vld [vmem:[%s0 + $0xd8] sm:$0xff]
  %v175 = vld [vmem:[%s0 + $0xe0] sm:$0xff]
  %v176 = vld [vmem:[%s0 + $0xe8] sm:$0xff]
  %v177 = vld [vmem:[%s0 + $0xf0] sm:$0xff]
  %v178 = vld [vmem:[%s0 + $0xf8] sm:$0xff]
  %v179 = vld [vmem:[%s0 + $0x100] sm:$0xff]
  %v180 = vld [vmem:[%s0 + $0x108] sm:$0xff]
  %v181 = vld [vmem:[%s0 + $0x110] sm:$0xff]
  %v182 = vld [vmem:[%s0 + $0x118] sm:$0xff]
  %v183 = vld [vmem:[%s0 + $0x120] sm:$0xff]
  %v184 = vld [vmem:[%s0 + $0x128] sm:$0xff]
  %v185 = vld [vmem:[%s0 + $0x130] sm:$0xff]
  %v186 = vld [vmem:[%s0 + $0x138] sm:$0xff]
  %v187 = vld [vmem:[%s0 + $0x140] sm:$0xff]
  %v188 = vld [vmem:[%s0 + $0x148] sm:$0xff]
  %v189 = vld [vmem:[%s0 + $0x150] sm:$0xff]
  %v190 = vld [vmem:[%s0 + $0x158] sm:$0xff]
  %v191 = vld [vmem:[%s0 + $0x160] sm:$0xff]
  %v192 = vld [vmem:[%s0 + $0x168] sm:$0xff]
  %v193 = vld [vmem:[%s0 + $0x170] sm:$0xff]
  %v194 = vld [vmem:[%s0 + $0x178] sm:$0xff]
  %v195 = vld [vmem:[%s0 + $0x180] sm:$0xff]
  %v196 = vld [vmem:[%s0 + $0x188] sm:$0xff]
  %v197 = vld [vmem:[%s0 + $0x190] sm:$0xff]
  %v198 = vld [vmem:[%s0 + $0x198] sm:$0xff]
  %v199 = vld [vmem:[%s0 + $0x1a0] sm:$0xff]
  %v200 = vld [vmem:[%s0 + $0x1a8] sm:$0xff]
  %v201 = vld [vmem:[%s0 + $0x1b0] sm:$0xff]
  %v202 = vld [vmem:[%s0 + $0x1b8] sm:$0xff]
  %v203 = vld [vmem:[%s0 + $0x1c0] sm:$0xff]
  %v204 = vld [vmem:[%s0 + $0x1c8] sm:$0xff]
  %v205 = vld [vmem:[%s0 + $0x1d0] sm:$0xff]
  %v206 = vld [vmem:[%s0 + $0x1d8] sm:$0xff]
  %v207 = vld [vmem:[%s0 + $0x1e0] sm:$0xff]
  %v208 = vld [vmem:[%s0 + $0x1e8] sm:$0xff]
  %v209 = vld [vmem:[%s0 + $0x1f0] sm:$0xff]
  %v210 = vld [vmem:[%s0 + $0x1f8] sm:$0xff]
  %v211 = vld [vmem:[%s1] sm:$0xf]
  %v212 = vld [vmem:[%s1 + $0x4] sm:$0xf]
  %v213 = vld [vmem:[%s1 + $0x8] sm:$0xf]
  %v214 = vld [vmem:[%s1 + $0xc] sm:$0xf]
  %v215 = vld [vmem:[%s1 + $0x10] sm:$0xf]
  %v216 = vld [vmem:[%s1 + $0x14] sm:$0xf]
  %v217 = vld [vmem:[%s1 + $0x18] sm:$0xf]
  %v218 = vld [vmem:[%s1 + $0x1c] sm:$0xf]
  %v219 = vld [vmem:[%s1 + $0x20] sm:$0xf]
  %v220 = vld [vmem:[%s1 + $0x24] sm:$0xf]
  %v221 = vld [vmem:[%s1 + $0x28] sm:$0xf]
  %v222 = vld [vmem:[%s1 + $0x2c] sm:$0xf]
  %v223 = vld [vmem:[%s1 + $0x30] sm:$0xf]
  %v224 = vld [vmem:[%s1 + $0x34] sm:$0xf]
  %v225 = vld [vmem:[%s1 + $0x38] sm:$0xf]
  %v226 = vld [vmem:[%s1 + $0x3c] sm:$0xf]
  %v227 = vld [vmem:[%s1 + $0x40] sm:$0xf]
  %v228 = vld [vmem:[%s1 + $0x44] sm:$0xf]
  %v229 = vld [vmem:[%s1 + $0x48] sm:$0xf]
  %v230 = vld [vmem:[%s1 + $0x4c] sm:$0xf]
  %v231 = vld [vmem:[%s1 + $0x50] sm:$0xf]
  %v232 = vld [vmem:[%s1 + $0x54] sm:$0xf]
  %v233 = vld [vmem:[%s1 + $0x58] sm:$0xf]
  %v234 = vld [vmem:[%s1 + $0x5c] sm:$0xf]
  %v235 = vld [vmem:[%s1 + $0x60] sm:$0xf]
  %v236 = vld [vmem:[%s1 + $0x64] sm:$0xf]
  %v237 = vld [vmem:[%s1 + $0x68] sm:$0xf]
  %v238 = vld [vmem:[%s1 + $0x6c] sm:$0xf]
  %v239 = vld [vmem:[%s1 + $0x70] sm:$0xf]
  %v240 = vld [vmem:[%s1 + $0x74] sm:$0xf]
  %v241 = vld [vmem:[%s1 + $0x78] sm:$0xf]
  %v242 = vld [vmem:[%s1 + $0x7c] sm:$0xf]
  %v307 = vunpack.c.l.b16 %v147
  %v308 = vunpack.c.h.b16 %v147
  %v309 = vunpack.c.l.b16 %v148
  %v310 = vunpack.c.h.b16 %v148
  %v311 = vunpack.c.l.b16 %v149
  %v312 = vunpack.c.h.b16 %v149
  %v313 = vunpack.c.l.b16 %v150
  %v314 = vunpack.c.h.b16 %v150
  %v315 = vunpack.c.l.b16 %v151
  %v316 = vunpack.c.h.b16 %v151
  %v317 = vunpack.c.l.b16 %v152
  %v318 = vunpack.c.h.b16 %v152
  %v319 = vunpack.c.l.b16 %v153
  %v320 = vunpack.c.h.b16 %v153
  %v321 = vunpack.c.l.b16 %v154
  %v322 = vunpack.c.h.b16 %v154
  %v323 = vunpack.c.l.b16 %v155
  %v324 = vunpack.c.h.b16 %v155
  %v325 = vunpack.c.l.b16 %v156
  %v326 = vunpack.c.h.b16 %v156
  %v327 = vunpack.c.l.b16 %v157
  %v328 = vunpack.c.h.b16 %v157
  %v329 = vunpack.c.l.b16 %v158
  %v330 = vunpack.c.h.b16 %v158
  %v331 = vunpack.c.l.b16 %v159
  %v332 = vunpack.c.h.b16 %v159
  %v333 = vunpack.c.l.b16 %v160
  %v334 = vunpack.c.h.b16 %v160
  %v335 = vunpack.c.l.b16 %v161
  %v336 = vunpack.c.h.b16 %v161
  %v337 = vunpack.c.l.b16 %v162
  %v338 = vunpack.c.h.b16 %v162
  %v339 = vunpack.c.l.b16 %v163
  %v340 = vunpack.c.h.b16 %v163
  %v341 = vunpack.c.l.b16 %v164
  %v342 = vunpack.c.h.b16 %v164
  %v343 = vunpack.c.l.b16 %v165
  %v344 = vunpack.c.h.b16 %v165
  %v345 = vunpack.c.l.b16 %v166
  %v346 = vunpack.c.h.b16 %v166
  %v347 = vunpack.c.l.b16 %v167
  %v348 = vunpack.c.h.b16 %v167
  %v349 = vunpack.c.l.b16 %v168
  %v350 = vunpack.c.h.b16 %v168
  %v351 = vunpack.c.l.b16 %v169
  %v352 = vunpack.c.h.b16 %v169
  %v353 = vunpack.c.l.b16 %v170
  %v354 = vunpack.c.h.b16 %v170
  %v355 = vunpack.c.l.b16 %v171
  %v356 = vunpack.c.h.b16 %v171
  %v357 = vunpack.c.l.b16 %v172
  %v358 = vunpack.c.h.b16 %v172
  %v359 = vunpack.c.l.b16 %v173
  %v360 = vunpack.c.h.b16 %v173
  %v361 = vunpack.c.l.b16 %v174
  %v362 = vunpack.c.h.b16 %v174
  %v363 = vunpack.c.l.b16 %v175
  %v364 = vunpack.c.h.b16 %v175
  %v365 = vunpack.c.l.b16 %v176
  %v366 = vunpack.c.h.b16 %v176
  %v367 = vunpack.c.l.b16 %v177
  %v368 = vunpack.c.h.b16 %v177
  %v369 = vunpack.c.l.b16 %v178
  %v370 = vunpack.c.h.b16 %v178
  %v371 = vunpack.c.l.b16 %v179
  %v372 = vunpack.c.h.b16 %v179
  %v373 = vunpack.c.l.b16 %v180
  %v374 = vunpack.c.h.b16 %v180
  %v375 = vunpack.c.l.b16 %v181
  %v376 = vunpack.c.h.b16 %v181
  %v377 = vunpack.c.l.b16 %v182
  %v378 = vunpack.c.h.b16 %v182
  %v379 = vunpack.c.l.b16 %v183
  %v380 = vunpack.c.h.b16 %v183
  %v381 = vunpack.c.l.b16 %v184
  %v382 = vunpack.c.h.b16 %v184
  %v383 = vunpack.c.l.b16 %v185
  %v384 = vunpack.c.h.b16 %v185
  %v385 = vunpack.c.l.b16 %v186
  %v386 = vunpack.c.h.b16 %v186
  %v387 = vunpack.c.l.b16 %v187
  %v388 = vunpack.c.h.b16 %v187
  %v389 = vunpack.c.l.b16 %v188
  %v390 = vunpack.c.h.b16 %v188
  %v391 = vunpack.c.l.b16 %v189
  %v392 = vunpack.c.h.b16 %v189
  %v393 = vunpack.c.l.b16 %v190
  %v394 = vunpack.c.h.b16 %v190
  %v395 = vunpack.c.l.b16 %v191
  %v396 = vunpack.c.h.b16 %v191
  %v397 = vunpack.c.l.b16 %v192
  %v398 = vunpack.c.h.b16 %v192
  %v399 = vunpack.c.l.b16 %v193
  %v400 = vunpack.c.h.b16 %v193
  %v401 = vunpack.c.l.b16 %v194
  %v402 = vunpack.c.h.b16 %v194
  %v403 = vunpack.c.l.b16 %v195
  %v404 = vunpack.c.h.b16 %v195
  %v405 = vunpack.c.l.b16 %v196
  %v406 = vunpack.c.h.b16 %v196
  %v407 = vunpack.c.l.b16 %v197
  %v408 = vunpack.c.h.b16 %v197
  %v409 = vunpack.c.l.b16 %v198
  %v410 = vunpack.c.h.b16 %v198
  %v411 = vunpack.c.l.b16 %v199
  %v412 = vunpack.c.h.b16 %v199
  %v413 = vunpack.c.l.b16 %v200
  %v414 = vunpack.c.h.b16 %v200
  %v415 = vunpack.c.l.b16 %v201
  %v416 = vunpack.c.h.b16 %v201
  %v417 = vunpack.c.l.b16 %v202
  %v418 = vunpack.c.h.b16 %v202
  %v419 = vunpack.c.l.b16 %v203
  %v420 = vunpack.c.h.b16 %v203
  %v421 = vunpack.c.l.b16 %v204
  %v422 = vunpack.c.h.b16 %v204
  %v423 = vunpack.c.l.b16 %v205
  %v424 = vunpack.c.h.b16 %v205
  %v425 = vunpack.c.l.b16 %v206
  %v426 = vunpack.c.h.b16 %v206
  %v427 = vunpack.c.l.b16 %v207
  %v428 = vunpack.c.h.b16 %v207
  %v429 = vunpack.c.l.b16 %v208
  %v430 = vunpack.c.h.b16 %v208
  %v431 = vunpack.c.l.b16 %v209
  %v432 = vunpack.c.h.b16 %v209
  %v433 = vunpack.c.l.b16 %v210
  %v434 = vunpack.c.h.b16 %v210
  %v435 = vpack.c.b16 %v309, %v307
  %v436 = vpack.c.b16 %v310, %v308
  %v437 = vpack.c.b16 %v313, %v311
  %v438 = vpack.c.b16 %v314, %v312
  %v439 = vpack.c.b16 %v317, %v315
  %v440 = vpack.c.b16 %v318, %v316
  %v441 = vpack.c.b16 %v321, %v319
  %v442 = vpack.c.b16 %v322, %v320
  %v443 = vpack.c.b16 %v325, %v323
  %v444 = vpack.c.b16 %v326, %v324
  %v445 = vpack.c.b16 %v329, %v327
  %v446 = vpack.c.b16 %v330, %v328
  %v447 = vpack.c.b16 %v333, %v331
  %v448 = vpack.c.b16 %v334, %v332
  %v449 = vpack.c.b16 %v337, %v335
  %v450 = vpack.c.b16 %v338, %v336
  %v451 = vpack.c.b16 %v341, %v339
  %v452 = vpack.c.b16 %v342, %v340
  %v453 = vpack.c.b16 %v345, %v343
  %v454 = vpack.c.b16 %v346, %v344
  %v455 = vpack.c.b16 %v349, %v347
  %v456 = vpack.c.b16 %v350, %v348
  %v457 = vpack.c.b16 %v353, %v351
  %v458 = vpack.c.b16 %v354, %v352
  %v459 = vpack.c.b16 %v357, %v355
  %v460 = vpack.c.b16 %v358, %v356
  %v461 = vpack.c.b16 %v361, %v359
  %v462 = vpack.c.b16 %v362, %v360
  %v463 = vpack.c.b16 %v365, %v363
  %v464 = vpack.c.b16 %v366, %v364
  %v465 = vpack.c.b16 %v369, %v367
  %v466 = vpack.c.b16 %v370, %v368
  %v467 = vpack.c.b16 %v373, %v371
  %v468 = vpack.c.b16 %v374, %v372
  %v469 = vpack.c.b16 %v377, %v375
  %v470 = vpack.c.b16 %v378, %v376
  %v471 = vpack.c.b16 %v381, %v379
  %v472 = vpack.c.b16 %v382, %v380
  %v473 = vpack.c.b16 %v385, %v383
  %v474 = vpack.c.b16 %v386, %v384
  %v475 = vpack.c.b16 %v389, %v387
  %v476 = vpack.c.b16 %v390, %v388
  %v477 = vpack.c.b16 %v393, %v391
  %v478 = vpack.c.b16 %v394, %v392
  %v479 = vpack.c.b16 %v397, %v395
  %v480 = vpack.c.b16 %v398, %v396
  %v481 = vpack.c.b16 %v401, %v399
  %v482 = vpack.c.b16 %v402, %v400
  %v483 = vpack.c.b16 %v405, %v403
  %v484 = vpack.c.b16 %v406, %v404
  %v485 = vpack.c.b16 %v409, %v407
  %v486 = vpack.c.b16 %v410, %v408
  %v487 = vpack.c.b16 %v413, %v411
  %v488 = vpack.c.b16 %v414, %v412
  %v489 = vpack.c.b16 %v417, %v415
  %v490 = vpack.c.b16 %v418, %v416
  %v491 = vpack.c.b16 %v421, %v419
  %v492 = vpack.c.b16 %v422, %v420
  %v493 = vpack.c.b16 %v425, %v423
  %v494 = vpack.c.b16 %v426, %v424
  %v495 = vpack.c.b16 %v429, %v427
  %v496 = vpack.c.b16 %v430, %v428
  %v497 = vpack.c.b16 %v433, %v431
  %v498 = vpack.c.b16 %v434, %v432
  %v595 = vunpack.c.l.b16 %v211
  %v596 = vunpack.c.l.b16 %v212
  %v597 = vunpack.c.l.b16 %v213
  %v598 = vunpack.c.l.b16 %v214
  %v599 = vunpack.c.l.b16 %v215
  %v600 = vunpack.c.l.b16 %v216
  %v601 = vunpack.c.l.b16 %v217
  %v602 = vunpack.c.l.b16 %v218
  %v603 = vunpack.c.l.b16 %v219
  %v604 = vunpack.c.l.b16 %v220
  %v605 = vunpack.c.l.b16 %v221
  %v606 = vunpack.c.l.b16 %v222
  %v607 = vunpack.c.l.b16 %v223
  %v608 = vunpack.c.l.b16 %v224
  %v609 = vunpack.c.l.b16 %v225
  %v610 = vunpack.c.l.b16 %v226
  %v611 = vunpack.c.l.b16 %v227
  %v612 = vunpack.c.l.b16 %v228
  %v613 = vunpack.c.l.b16 %v229
  %v614 = vunpack.c.l.b16 %v230
  %v615 = vunpack.c.l.b16 %v231
  %v616 = vunpack.c.l.b16 %v232
  %v617 = vunpack.c.l.b16 %v233
  %v618 = vunpack.c.l.b16 %v234
  %v619 = vunpack.c.l.b16 %v235
  %v620 = vunpack.c.l.b16 %v236
  %v621 = vunpack.c.l.b16 %v237
  %v622 = vunpack.c.l.b16 %v238
  %v623 = vunpack.c.l.b16 %v239
  %v624 = vunpack.c.l.b16 %v240
  %v625 = vunpack.c.l.b16 %v241
  %v626 = vunpack.c.l.b16 %v242
  %v627 = vpack.c.b16 %v596, %v595
  %v628 = vpack.c.b16 %v598, %v597
  %v629 = vpack.c.b16 %v600, %v599
  %v630 = vpack.c.b16 %v602, %v601
  %v631 = vpack.c.b16 %v604, %v603
  %v632 = vpack.c.b16 %v606, %v605
  %v633 = vpack.c.b16 %v608, %v607
  %v634 = vpack.c.b16 %v610, %v609
  %v635 = vpack.c.b16 %v612, %v611
  %v636 = vpack.c.b16 %v614, %v613
  %v637 = vpack.c.b16 %v616, %v615
  %v638 = vpack.c.b16 %v618, %v617
  %v639 = vpack.c.b16 %v620, %v619
  %v640 = vpack.c.b16 %v622, %v621
  %v641 = vpack.c.b16 %v624, %v623
  %v642 = vpack.c.b16 %v626, %v625
  %659 = vmatprep.subr.bf16.mxu0 0
  %660 = vmatpush1.bf16.msra.mxu0 %v627
  %661 = vmatprep.subr.bf16.mxu0 0
  %662 = vmatpush1.bf16.msra.mxu0 %v628
  %663 = vmatprep.subr.bf16.mxu0 0
  %664 = vmatpush1.bf16.msra.mxu0 %v629
  %665 = vmatprep.subr.bf16.mxu0 0
  %666 = vmatpush1.bf16.msra.mxu0 %v630
  %667 = vmatprep.subr.bf16.mxu0 0
  %668 = vmatpush1.bf16.msra.mxu0 %v631
  %669 = vmatprep.subr.bf16.mxu0 0
  %670 = vmatpush1.bf16.msra.mxu0 %v632
  %671 = vmatprep.subr.bf16.mxu0 0
  %672 = vmatpush1.bf16.msra.mxu0 %v633
  %673 = vmatprep.subr.bf16.mxu0 0
  %674 = vmatpush1.bf16.msra.mxu0 %v634
  %675 = vmatprep.subr.bf16.mxu0 0
  %676 = vmatpush1.bf16.msra.mxu0 %v635
  %677 = vmatprep.subr.bf16.mxu0 0
  %678 = vmatpush1.bf16.msra.mxu0 %v636
  %679 = vmatprep.subr.bf16.mxu0 0
  %680 = vmatpush1.bf16.msra.mxu0 %v637
  %681 = vmatprep.subr.bf16.mxu0 0
  %682 = vmatpush1.bf16.msra.mxu0 %v638
  %683 = vmatprep.subr.bf16.mxu0 0
  %684 = vmatpush1.bf16.msra.mxu0 %v639
  %685 = vmatprep.subr.bf16.mxu0 0
  %686 = vmatpush1.bf16.msra.mxu0 %v640
  %687 = vmatprep.subr.bf16.mxu0 0
  %688 = vmatpush1.bf16.msra.mxu0 %v641
  %689 = vmatprep.subr.bf16.mxu0 0
  %690 = vmatpush1.bf16.msra.mxu0 %v642
  %691 = vmatprep.mubr.bf16.mxu0 %v436
  %692 = vmatmul.mubr.bf16.gmra.mrb[0].mxu0 %v435
  %v693 = vpop.f32.mrb[0].mxu0
  %v694 = vadd.f32 0.0, %v693
  %v695 = vpop.f32.mrb[0].mxu0
  %v696 = vpop.f32.mrb[0].mxu0
  %v697 = vadd.f32 0.0, %v696
  %v698 = vpop.f32.mrb[0].mxu0
  %699 = vmatprep.mubr.bf16.mxu0 %v438
  %700 = vmatmul.mubr.bf16.gmra.mrb[0].mxu0 %v437
  %v701 = vpop.f32.mrb[0].mxu0
  %v702 = vadd.f32 0.0, %v701
  %v703 = vpop.f32.mrb[0].mxu0
  %v704 = vpop.f32.mrb[0].mxu0
  %v705 = vadd.f32 0.0, %v704
  %v706 = vpop.f32.mrb[0].mxu0
  %707 = vmatprep.mubr.bf16.mxu0 %v440
  %708 = vmatmul.mubr.bf16.gmra.mrb[0].mxu0 %v439
  %v709 = vpop.f32.mrb[0].mxu0
  %v710 = vadd.f32 0.0, %v709
  %v711 = vpop.f32.mrb[0].mxu0
  %v712 = vpop.f32.mrb[0].mxu0
  %v713 = vadd.f32 0.0, %v712
  %v714 = vpop.f32.mrb[0].mxu0
  %715 = vmatprep.mubr.bf16.mxu0 %v442
  %716 = vmatmul.mubr.bf16.gmra.mrb[0].mxu0 %v441
  %v717 = vpop.f32.mrb[0].mxu0
  %v718 = vadd.f32 0.0, %v717
  %v719 = vpop.f32.mrb[0].mxu0
  %v720 = vpop.f32.mrb[0].mxu0
  %v721 = vadd.f32 0.0, %v720
  %v722 = vpop.f32.mrb[0].mxu0
  %723 = vmatprep.mubr.bf16.mxu0 %v444
  %724 = vmatmul.mubr.bf16.gmra.mrb[0].mxu0 %v443
  %v725 = vpop.f32.mrb[0].mxu0
  %v726 = vadd.f32 0.0, %v725
  %v727 = vpop.f32.mrb[0].mxu0
  %v728 = vpop.f32.mrb[0].mxu0
  %v729 = vadd.f32 0.0, %v728
  %v730 = vpop.f32.mrb[0].mxu0
  %731 = vmatprep.mubr.bf16.mxu0 %v446
  %732 = vmatmul.mubr.bf16.gmra.mrb[0].mxu0 %v445
  %v733 = vpop.f32.mrb[0].mxu0
  %v734 = vadd.f32 0.0, %v733
  %v735 = vpop.f32.mrb[0].mxu0
  %v736 = vpop.f32.mrb[0].mxu0
  %v737 = vadd.f32 0.0, %v736
  %v738 = vpop.f32.mrb[0].mxu0
  %739 = vmatprep.mubr.bf16.mxu0 %v448
  %740 = vmatmul.mubr.bf16.gmra.mrb[0].mxu0 %v447
  %v741 = vpop.f32.mrb[0].mxu0
  %v742 = vadd.f32 0.0, %v741
  %v743 = vpop.f32.mrb[0].mxu0
  %v744 = vpop.f32.mrb[0].mxu0
  %v745 = vadd.f32 0.0, %v744
  %v746 = vpop.f32.mrb[0].mxu0
  %747 = vmatprep.mubr.bf16.mxu0 %v450
  %748 = vmatmul.mubr.bf16.gmra.mrb[0].mxu0 %v449
  %v749 = vpop.f32.mrb[0].mxu0
  %v750 = vadd.f32 0.0, %v749
  %v751 = vpop.f32.mrb[0].mxu0
  %v752 = vpop.f32.mrb[0].mxu0
  %v753 = vadd.f32 0.0, %v752
  %v754 = vpop.f32.mrb[0].mxu0
  %755 = vmatprep.mubr.bf16.mxu0 %v452
  %756 = vmatmul.mubr.bf16.gmra.mrb[0].mxu0 %v451
  %v757 = vpop.f32.mrb[0].mxu0
  %v758 = vadd.f32 0.0, %v757
  %v759 = vpop.f32.mrb[0].mxu0
  %v760 = vpop.f32.mrb[0].mxu0
  %v761 = vadd.f32 0.0, %v760
  %v762 = vpop.f32.mrb[0].mxu0
  %763 = vmatprep.mubr.bf16.mxu0 %v454
  %764 = vmatmul.mubr.bf16.gmra.mrb[0].mxu0 %v453
  %v765 = vpop.f32.mrb[0].mxu0
  %v766 = vadd.f32 0.0, %v765
  %v767 = vpop.f32.mrb[0].mxu0
  %v768 = vpop.f32.mrb[0].mxu0
  %v769 = vadd.f32 0.0, %v768
  %v770 = vpop.f32.mrb[0].mxu0
  %771 = vmatprep.mubr.bf16.mxu0 %v456
  %772 = vmatmul.mubr.bf16.gmra.mrb[0].mxu0 %v455
  %v773 = vpop.f32.mrb[0].mxu0
  %v774 = vadd.f32 0.0, %v773
  %v775 = vpop.f32.mrb[0].mxu0
  %v776 = vpop.f32.mrb[0].mxu0
  %v777 = vadd.f32 0.0, %v776
  %v778 = vpop.f32.mrb[0].mxu0
  %779 = vmatprep.mubr.bf16.mxu0 %v458
  %780 = vmatmul.mubr.bf16.gmra.mrb[0].mxu0 %v457
  %v781 = vpop.f32.mrb[0].mxu0
  %v782 = vadd.f32 0.0, %v781
  %v783 = vpop.f32.mrb[0].mxu0
  %v784 = vpop.f32.mrb[0].mxu0
  %v785 = vadd.f32 0.0, %v784
  %v786 = vpop.f32.mrb[0].mxu0
  %787 = vmatprep.mubr.bf16.mxu0 %v460
  %788 = vmatmul.mubr.bf16.gmra.mrb[0].mxu0 %v459
  %v789 = vpop.f32.mrb[0].mxu0
  %v790 = vadd.f32 0.0, %v789
  %v791 = vpop.f32.mrb[0].mxu0
  %v792 = vpop.f32.mrb[0].mxu0
  %v793 = vadd.f32 0.0, %v792
  %v794 = vpop.f32.mrb[0].mxu0
  %795 = vmatprep.mubr.bf16.mxu0 %v462
  %796 = vmatmul.mubr.bf16.gmra.mrb[0].mxu0 %v461
  %v797 = vpop.f32.mrb[0].mxu0
  %v798 = vadd.f32 0.0, %v797
  %v799 = vpop.f32.mrb[0].mxu0
  %v800 = vpop.f32.mrb[0].mxu0
  %v801 = vadd.f32 0.0, %v800
  %v802 = vpop.f32.mrb[0].mxu0
  %803 = vmatprep.mubr.bf16.mxu0 %v464
  %804 = vmatmul.mubr.bf16.gmra.mrb[0].mxu0 %v463
  %v805 = vpop.f32.mrb[0].mxu0
  %v806 = vadd.f32 0.0, %v805
  %v807 = vpop.f32.mrb[0].mxu0
  %v808 = vpop.f32.mrb[0].mxu0
  %v809 = vadd.f32 0.0, %v808
  %v810 = vpop.f32.mrb[0].mxu0
  %811 = vmatprep.mubr.bf16.mxu0 %v466
  %812 = vmatmul.mubr.bf16.gmra.mrb[0].mxu0 %v465
  %v813 = vpop.f32.mrb[0].mxu0
  %v814 = vadd.f32 0.0, %v813
  %v815 = vpop.f32.mrb[0].mxu0
  %v816 = vpop.f32.mrb[0].mxu0
  %v817 = vadd.f32 0.0, %v816
  %v818 = vpop.f32.mrb[0].mxu0
  %819 = vmatprep.mubr.bf16.mxu0 %v468
  %820 = vmatmul.mubr.bf16.gmra.mrb[0].mxu0 %v467
  %v821 = vpop.f32.mrb[0].mxu0
  %v822 = vadd.f32 0.0, %v821
  %v823 = vpop.f32.mrb[0].mxu0
  %v824 = vpop.f32.mrb[0].mxu0
  %v825 = vadd.f32 0.0, %v824
  %v826 = vpop.f32.mrb[0].mxu0
  %827 = vmatprep.mubr.bf16.mxu0 %v470
  %828 = vmatmul.mubr.bf16.gmra.mrb[0].mxu0 %v469
  %v829 = vpop.f32.mrb[0].mxu0
  %v830 = vadd.f32 0.0, %v829
  %v831 = vpop.f32.mrb[0].mxu0
  %v832 = vpop.f32.mrb[0].mxu0
  %v833 = vadd.f32 0.0, %v832
  %v834 = vpop.f32.mrb[0].mxu0
  %835 = vmatprep.mubr.bf16.mxu0 %v472
  %836 = vmatmul.mubr.bf16.gmra.mrb[0].mxu0 %v471
  %v837 = vpop.f32.mrb[0].mxu0
  %v838 = vadd.f32 0.0, %v837
  %v839 = vpop.f32.mrb[0].mxu0
  %v840 = vpop.f32.mrb[0].mxu0
  %v841 = vadd.f32 0.0, %v840
  %v842 = vpop.f32.mrb[0].mxu0
  %843 = vmatprep.mubr.bf16.mxu0 %v474
  %844 = vmatmul.mubr.bf16.gmra.mrb[0].mxu0 %v473
  %v845 = vpop.f32.mrb[0].mxu0
  %v846 = vadd.f32 0.0, %v845
  %v847 = vpop.f32.mrb[0].mxu0
  %v848 = vpop.f32.mrb[0].mxu0
  %v849 = vadd.f32 0.0, %v848
  %v850 = vpop.f32.mrb[0].mxu0
  %851 = vmatprep.mubr.bf16.mxu0 %v476
  %852 = vmatmul.mubr.bf16.gmra.mrb[0].mxu0 %v475
  %v853 = vpop.f32.mrb[0].mxu0
  %v854 = vadd.f32 0.0, %v853
  %v855 = vpop.f32.mrb[0].mxu0
  %v856 = vpop.f32.mrb[0].mxu0
  %v857 = vadd.f32 0.0, %v856
  %v858 = vpop.f32.mrb[0].mxu0
  %859 = vmatprep.mubr.bf16.mxu0 %v478
  %860 = vmatmul.mubr.bf16.gmra.mrb[0].mxu0 %v477
  %v861 = vpop.f32.mrb[0].mxu0
  %v862 = vadd.f32 0.0, %v861
  %v863 = vpop.f32.mrb[0].mxu0
  %v864 = vpop.f32.mrb[0].mxu0
  %v865 = vadd.f32 0.0, %v864
  %v866 = vpop.f32.mrb[0].mxu0
  %867 = vmatprep.mubr.bf16.mxu0 %v480
  %868 = vmatmul.mubr.bf16.gmra.mrb[0].mxu0 %v479
  %v869 = vpop.f32.mrb[0].mxu0
  %v870 = vadd.f32 0.0, %v869
  %v871 = vpop.f32.mrb[0].mxu0
  %v872 = vpop.f32.mrb[0].mxu0
  %v873 = vadd.f32 0.0, %v872
  %v874 = vpop.f32.mrb[0].mxu0
  %875 = vmatprep.mubr.bf16.mxu0 %v482
  %876 = vmatmul.mubr.bf16.gmra.mrb[0].mxu0 %v481
  %v877 = vpop.f32.mrb[0].mxu0
  %v878 = vadd.f32 0.0, %v877
  %v879 = vpop.f32.mrb[0].mxu0
  %v880 = vpop.f32.mrb[0].mxu0
  %v881 = vadd.f32 0.0, %v880
  %v882 = vpop.f32.mrb[0].mxu0
  %883 = vmatprep.mubr.bf16.mxu0 %v484
  %884 = vmatmul.mubr.bf16.gmra.mrb[0].mxu0 %v483
  %v885 = vpop.f32.mrb[0].mxu0
  %v886 = vadd.f32 0.0, %v885
  %v887 = vpop.f32.mrb[0].mxu0
  %v888 = vpop.f32.mrb[0].mxu0
  %v889 = vadd.f32 0.0, %v888
  %v890 = vpop.f32.mrb[0].mxu0
  %891 = vmatprep.mubr.bf16.mxu0 %v486
  %892 = vmatmul.mubr.bf16.gmra.mrb[0].mxu0 %v485
  %v893 = vpop.f32.mrb[0].mxu0
  %v894 = vadd.f32 0.0, %v893
  %v895 = vpop.f32.mrb[0].mxu0
  %v896 = vpop.f32.mrb[0].mxu0
  %v897 = vadd.f32 0.0, %v896
  %v898 = vpop.f32.mrb[0].mxu0
  %899 = vmatprep.mubr.bf16.mxu0 %v488
  %900 = vmatmul.mubr.bf16.gmra.mrb[0].mxu0 %v487
  %v901 = vpop.f32.mrb[0].mxu0
  %v902 = vadd.f32 0.0, %v901
  %v903 = vpop.f32.mrb[0].mxu0
  %v904 = vpop.f32.mrb[0].mxu0
  %v905 = vadd.f32 0.0, %v904
  %v906 = vpop.f32.mrb[0].mxu0
  %907 = vmatprep.mubr.bf16.mxu0 %v490
  %908 = vmatmul.mubr.bf16.gmra.mrb[0].mxu0 %v489
  %v909 = vpop.f32.mrb[0].mxu0
  %v910 = vadd.f32 0.0, %v909
  %v911 = vpop.f32.mrb[0].mxu0
  %v912 = vpop.f32.mrb[0].mxu0
  %v913 = vadd.f32 0.0, %v912
  %v914 = vpop.f32.mrb[0].mxu0
  %915 = vmatprep.mubr.bf16.mxu0 %v492
  %916 = vmatmul.mubr.bf16.gmra.mrb[0].mxu0 %v491
  %v917 = vpop.f32.mrb[0].mxu0
  %v918 = vadd.f32 0.0, %v917
  %v919 = vpop.f32.mrb[0].mxu0
  %v920 = vpop.f32.mrb[0].mxu0
  %v921 = vadd.f32 0.0, %v920
  %v922 = vpop.f32.mrb[0].mxu0
  %923 = vmatprep.mubr.bf16.mxu0 %v494
  %924 = vmatmul.mubr.bf16.gmra.mrb[0].mxu0 %v493
  %v925 = vpop.f32.mrb[0].mxu0
  %v926 = vadd.f32 0.0, %v925
  %v927 = vpop.f32.mrb[0].mxu0
  %v928 = vpop.f32.mrb[0].mxu0
  %v929 = vadd.f32 0.0, %v928
  %v930 = vpop.f32.mrb[0].mxu0
  %931 = vmatprep.mubr.bf16.mxu0 %v496
  %932 = vmatmul.mubr.bf16.gmra.mrb[0].mxu0 %v495
  %v933 = vpop.f32.mrb[0].mxu0
  %v934 = vadd.f32 0.0, %v933
  %v935 = vpop.f32.mrb[0].mxu0
  %v936 = vpop.f32.mrb[0].mxu0
  %v937 = vadd.f32 0.0, %v936
  %v938 = vpop.f32.mrb[0].mxu0
  %939 = vmatprep.mubr.bf16.mxu0 %v498
  %940 = vmatmul.mubr.bf16.gmra.mrb[0].mxu0 %v497
  %v941 = vpop.f32.mrb[0].mxu0
  %v942 = vadd.f32 0.0, %v941
  %v943 = vpop.f32.mrb[0].mxu0
  %v944 = vpop.f32.mrb[0].mxu0
  %v945 = vadd.f32 0.0, %v944
  %v946 = vpop.f32.mrb[0].mxu0
  %947 = vdwg.mxu0
  %v948 = vadd.f32 %v83, %v694
  %v949 = vadd.f32 %v84, %v697
  %v950 = vadd.f32 %v85, %v702
  %v951 = vadd.f32 %v86, %v705
  %v952 = vadd.f32 %v87, %v710
  %v953 = vadd.f32 %v88, %v713
  %v954 = vadd.f32 %v89, %v718
  %v955 = vadd.f32 %v90, %v721
  %v956 = vadd.f32 %v91, %v726
  %v957 = vadd.f32 %v92, %v729
  %v958 = vadd.f32 %v93, %v734
  %v959 = vadd.f32 %v94, %v737
  %v960 = vadd.f32 %v95, %v742
  %v961 = vadd.f32 %v96, %v745
  %v962 = vadd.f32 %v97, %v750
  %v963 = vadd.f32 %v98, %v753
  %v964 = vadd.f32 %v99, %v758
  %v965 = vadd.f32 %v100, %v761
  %v966 = vadd.f32 %v101, %v766
  %v967 = vadd.f32 %v102, %v769
  %v968 = vadd.f32 %v103, %v774
  %v969 = vadd.f32 %v104, %v777
  %v970 = vadd.f32 %v105, %v782
  %v971 = vadd.f32 %v106, %v785
  %v972 = vadd.f32 %v107, %v790
  %v973 = vadd.f32 %v108, %v793
  %v974 = vadd.f32 %v109, %v798
  %v975 = vadd.f32 %v110, %v801
  %v976 = vadd.f32 %v111, %v806
  %v977 = vadd.f32 %v112, %v809
  %v978 = vadd.f32 %v113, %v814
  %v979 = vadd.f32 %v114, %v817
  %v980 = vadd.f32 %v115, %v822
  %v981 = vadd.f32 %v116, %v825
  %v982 = vadd.f32 %v117, %v830
  %v983 = vadd.f32 %v118, %v833
  %v984 = vadd.f32 %v119, %v838
  %v985 = vadd.f32 %v120, %v841
  %v986 = vadd.f32 %v121, %v846
  %v987 = vadd.f32 %v122, %v849
  %v988 = vadd.f32 %v123, %v854
  %v989 = vadd.f32 %v124, %v857
  %v990 = vadd.f32 %v125, %v862
  %v991 = vadd.f32 %v126, %v865
  %v992 = vadd.f32 %v127, %v870
  %v993 = vadd.f32 %v128, %v873
  %v994 = vadd.f32 %v129, %v878
  %v995 = vadd.f32 %v130, %v881
  %v996 = vadd.f32 %v131, %v886
  %v997 = vadd.f32 %v132, %v889
  %v998 = vadd.f32 %v133, %v894
  %v999 = vadd.f32 %v134, %v897
  %v1000 = vadd.f32 %v135, %v902
  %v1001 = vadd.f32 %v136, %v905
  %v1002 = vadd.f32 %v137, %v910
  %v1003 = vadd.f32 %v138, %v913
  %v1004 = vadd.f32 %v139, %v918
  %v1005 = vadd.f32 %v140, %v921
  %v1006 = vadd.f32 %v141, %v926
  %v1007 = vadd.f32 %v142, %v929
  %v1008 = vadd.f32 %v143, %v934
  %v1009 = vadd.f32 %v144, %v937
  %v1010 = vadd.f32 %v145, %v942
  %v1011 = vadd.f32 %v146, %v945
  %1012 = vst [vmem:[#allocation2] sm:$0xff] %v948
  %1013 = vst [vmem:[#allocation2 + $0x8] sm:$0xff] %v949
  %1014 = vst [vmem:[#allocation2 + $0x10] sm:$0xff] %v950
  %1015 = vst [vmem:[#allocation2 + $0x18] sm:$0xff] %v951
  %1016 = vst [vmem:[#allocation2 + $0x20] sm:$0xff] %v952
  %1017 = vst [vmem:[#allocation2 + $0x28] sm:$0xff] %v953
  %1018 = vst [vmem:[#allocation2 + $0x30] sm:$0xff] %v954
  %1019 = vst [vmem:[#allocation2 + $0x38] sm:$0xff] %v955
  %1020 = vst [vmem:[#allocation2 + $0x40] sm:$0xff] %v956
  %1021 = vst [vmem:[#allocation2 + $0x48] sm:$0xff] %v957
  %1022 = vst [vmem:[#allocation2 + $0x50] sm:$0xff] %v958
  %1023 = vst [vmem:[#allocation2 + $0x58] sm:$0xff] %v959
  %1024 = vst [vmem:[#allocation2 + $0x60] sm:$0xff] %v960
  %1025 = vst [vmem:[#allocation2 + $0x68] sm:$0xff] %v961
  %1026 = vst [vmem:[#allocation2 + $0x70] sm:$0xff] %v962
  %1027 = vst [vmem:[#allocation2 + $0x78] sm:$0xff] %v963
  %1028 = vst [vmem:[#allocation2 + $0x80] sm:$0xff] %v964
  %1029 = vst [vmem:[#allocation2 + $0x88] sm:$0xff] %v965
  %1030 = vst [vmem:[#allocation2 + $0x90] sm:$0xff] %v966
  %1031 = vst [vmem:[#allocation2 + $0x98] sm:$0xff] %v967
  %1032 = vst [vmem:[#allocation2 + $0xa0] sm:$0xff] %v968
  %1033 = vst [vmem:[#allocation2 + $0xa8] sm:$0xff] %v969
  %1034 = vst [vmem:[#allocation2 + $0xb0] sm:$0xff] %v970
  %1035 = vst [vmem:[#allocation2 + $0xb8] sm:$0xff] %v971
  %1036 = vst [vmem:[#allocation2 + $0xc0] sm:$0xff] %v972
  %1037 = vst [vmem:[#allocation2 + $0xc8] sm:$0xff] %v973
  %1038 = vst [vmem:[#allocation2 + $0xd0] sm:$0xff] %v974
  %1039 = vst [vmem:[#allocation2 + $0xd8] sm:$0xff] %v975
  %1040 = vst [vmem:[#allocation2 + $0xe0] sm:$0xff] %v976
  %1041 = vst [vmem:[#allocation2 + $0xe8] sm:$0xff] %v977
  %1042 = vst [vmem:[#allocation2 + $0xf0] sm:$0xff] %v978
  %1043 = vst [vmem:[#allocation2 + $0xf8] sm:$0xff] %v979
  %1044 = vst [vmem:[#allocation2 + $0x100] sm:$0xff] %v980
  %1045 = vst [vmem:[#allocation2 + $0x108] sm:$0xff] %v981
  %1046 = vst [vmem:[#allocation2 + $0x110] sm:$0xff] %v982
  %1047 = vst [vmem:[#allocation2 + $0x118] sm:$0xff] %v983
  %1048 = vst [vmem:[#allocation2 + $0x120] sm:$0xff] %v984
  %1049 = vst [vmem:[#allocation2 + $0x128] sm:$0xff] %v985
  %1050 = vst [vmem:[#allocation2 + $0x130] sm:$0xff] %v986
  %1051 = vst [vmem:[#allocation2 + $0x138] sm:$0xff] %v987
  %1052 = vst [vmem:[#allocation2 + $0x140] sm:$0xff] %v988
  %1053 = vst [vmem:[#allocation2 + $0x148] sm:$0xff] %v989
  %1054 = vst [vmem:[#allocation2 + $0x150] sm:$0xff] %v990
  %1055 = vst [vmem:[#allocation2 + $0x158] sm:$0xff] %v991
  %1056 = vst [vmem:[#allocation2 + $0x160] sm:$0xff] %v992
  %1057 = vst [vmem:[#allocation2 + $0x168] sm:$0xff] %v993
  %1058 = vst [vmem:[#allocation2 + $0x170] sm:$0xff] %v994
  %1059 = vst [vmem:[#allocation2 + $0x178] sm:$0xff] %v995
  %1060 = vst [vmem:[#allocation2 + $0x180] sm:$0xff] %v996
  %1061 = vst [vmem:[#allocation2 + $0x188] sm:$0xff] %v997
  %1062 = vst [vmem:[#allocation2 + $0x190] sm:$0xff] %v998
  %1063 = vst [vmem:[#allocation2 + $0x198] sm:$0xff] %v999
  %1064 = vst [vmem:[#allocation2 + $0x1a0] sm:$0xff] %v1000
  %1065 = vst [vmem:[#allocation2 + $0x1a8] sm:$0xff] %v1001
  %1066 = vst [vmem:[#allocation2 + $0x1b0] sm:$0xff] %v1002
  %1067 = vst [vmem:[#allocation2 + $0x1b8] sm:$0xff] %v1003
  %1068 = vst [vmem:[#allocation2 + $0x1c0] sm:$0xff] %v1004
  %1069 = vst [vmem:[#allocation2 + $0x1c8] sm:$0xff] %v1005
  %1070 = vst [vmem:[#allocation2 + $0x1d0] sm:$0xff] %v1006
  %1071 = vst [vmem:[#allocation2 + $0x1d8] sm:$0xff] %v1007
  %1072 = vst [vmem:[#allocation2 + $0x1e0] sm:$0xff] %v1008
  %1073 = vst [vmem:[#allocation2 + $0x1e8] sm:$0xff] %v1009
  %1074 = vst [vmem:[#allocation2 + $0x1f0] sm:$0xff] %v1010
  %1075 = vst [vmem:[#allocation2 + $0x1f8] sm:$0xff] %v1011
  // Predicated region
  $region18: #{patch_embed_forward.14} parent=0 // pred_check
    %p1076 = pneg %p15
  $region19: #{patch_embed_forward.14} parent=0 // pred_check_branch
    %1078 = sbr.rel (%p1076) target = $region21
  $region20: #{patch_embed_forward.14} parent=0 // pred_region
    %v1079 = vld [vmem:[#allocation2] sm:$0xff]
    %v1080 = vld [vmem:[#allocation2 + $0x8] sm:$0xff]
    %v1081 = vld [vmem:[#allocation2 + $0x10] sm:$0xff]
    %v1082 = vld [vmem:[#allocation2 + $0x18] sm:$0xff]
    %v1083 = vld [vmem:[#allocation2 + $0x20] sm:$0xff]
    %v1084 = vld [vmem:[#allocation2 + $0x28] sm:$0xff]
    %v1085 = vld [vmem:[#allocation2 + $0x30] sm:$0xff]
    %v1086 = vld [vmem:[#allocation2 + $0x38] sm:$0xff]
    %v1087 = vld [vmem:[#allocation2 + $0x40] sm:$0xff]
    %v1088 = vld [vmem:[#allocation2 + $0x48] sm:$0xff]
    %v1089 = vld [vmem:[#allocation2 + $0x50] sm:$0xff]
    %v1090 = vld [vmem:[#allocation2 + $0x58] sm:$0xff]
    %v1091 = vld [vmem:[#allocation2 + $0x60] sm:$0xff]
    %v1092 = vld [vmem:[#allocation2 + $0x68] sm:$0xff]
    %v1093 = vld [vmem:[#allocation2 + $0x70] sm:$0xff]
    %v1094 = vld [vmem:[#allocation2 + $0x78] sm:$0xff]
    %v1095 = vld [vmem:[#allocation2 + $0x80] sm:$0xff]
    %v1096 = vld [vmem:[#allocation2 + $0x88] sm:$0xff]
    %v1097 = vld [vmem:[#allocation2 + $0x90] sm:$0xff]
    %v1098 = vld [vmem:[#allocation2 + $0x98] sm:$0xff]
    %v1099 = vld [vmem:[#allocation2 + $0xa0] sm:$0xff]
    %v1100 = vld [vmem:[#allocation2 + $0xa8] sm:$0xff]
    %v1101 = vld [vmem:[#allocation2 + $0xb0] sm:$0xff]
    %v1102 = vld [vmem:[#allocation2 + $0xb8] sm:$0xff]
    %v1103 = vld [vmem:[#allocation2 + $0xc0] sm:$0xff]
    %v1104 = vld [vmem:[#allocation2 + $0xc8] sm:$0xff]
    %v1105 = vld [vmem:[#allocation2 + $0xd0] sm:$0xff]
    %v1106 = vld [vmem:[#allocation2 + $0xd8] sm:$0xff]
    %v1107 = vld [vmem:[#allocation2 + $0xe0] sm:$0xff]
    %v1108 = vld [vmem:[#allocation2 + $0xe8] sm:$0xff]
    %v1109 = vld [vmem:[#allocation2 + $0xf0] sm:$0xff]
    %v1110 = vld [vmem:[#allocation2 + $0xf8] sm:$0xff]
    %v1111 = vld [vmem:[#allocation2 + $0x100] sm:$0xff]
    %v1112 = vld [vmem:[#allocation2 + $0x108] sm:$0xff]
    %v1113 = vld [vmem:[#allocation2 + $0x110] sm:$0xff]
    %v1114 = vld [vmem:[#allocation2 + $0x118] sm:$0xff]
    %v1115 = vld [vmem:[#allocation2 + $0x120] sm:$0xff]
    %v1116 = vld [vmem:[#allocation2 + $0x128] sm:$0xff]
    %v1117 = vld [vmem:[#allocation2 + $0x130] sm:$0xff]
    %v1118 = vld [vmem:[#allocation2 + $0x138] sm:$0xff]
    %v1119 = vld [vmem:[#allocation2 + $0x140] sm:$0xff]
    %v1120 = vld [vmem:[#allocation2 + $0x148] sm:$0xff]
    %v1121 = vld [vmem:[#allocation2 + $0x150] sm:$0xff]
    %v1122 = vld [vmem:[#allocation2 + $0x158] sm:$0xff]
    %v1123 = vld [vmem:[#allocation2 + $0x160] sm:$0xff]
    %v1124 = vld [vmem:[#allocation2 + $0x168] sm:$0xff]
    %v1125 = vld [vmem:[#allocation2 + $0x170] sm:$0xff]
    %v1126 = vld [vmem:[#allocation2 + $0x178] sm:$0xff]
    %v1127 = vld [vmem:[#allocation2 + $0x180] sm:$0xff]
    %v1128 = vld [vmem:[#allocation2 + $0x188] sm:$0xff]
    %v1129 = vld [vmem:[#allocation2 + $0x190] sm:$0xff]
    %v1130 = vld [vmem:[#allocation2 + $0x198] sm:$0xff]
    %v1131 = vld [vmem:[#allocation2 + $0x1a0] sm:$0xff]
    %v1132 = vld [vmem:[#allocation2 + $0x1a8] sm:$0xff]
    %v1133 = vld [vmem:[#allocation2 + $0x1b0] sm:$0xff]
    %v1134 = vld [vmem:[#allocation2 + $0x1b8] sm:$0xff]
    %v1135 = vld [vmem:[#allocation2 + $0x1c0] sm:$0xff]
    %v1136 = vld [vmem:[#allocation2 + $0x1c8] sm:$0xff]
    %v1137 = vld [vmem:[#allocation2 + $0x1d0] sm:$0xff]
    %v1138 = vld [vmem:[#allocation2 + $0x1d8] sm:$0xff]
    %v1139 = vld [vmem:[#allocation2 + $0x1e0] sm:$0xff]
    %v1140 = vld [vmem:[#allocation2 + $0x1e8] sm:$0xff]
    %v1141 = vld [vmem:[#allocation2 + $0x1f0] sm:$0xff]
    %v1142 = vld [vmem:[#allocation2 + $0x1f8] sm:$0xff]
    %v1143 = vld [vmem:[%s2] sm:$0x1]
    %v1145 = vlaneseq
    %v1146 = vshrl.u32 %v1145, 7
    %v1147 = vsub.s32 0, %v1146
    %v1148 = vrot.slane %v1143, %v1147
    %v1150 = vadd.f32 %v1079, %v1148
    %v1151 = vadd.f32 %v1080, %v1148
    %v1152 = vadd.f32 %v1081, %v1148
    %v1153 = vadd.f32 %v1082, %v1148
    %v1154 = vadd.f32 %v1083, %v1148
    %v1155 = vadd.f32 %v1084, %v1148
    %v1156 = vadd.f32 %v1085, %v1148
    %v1157 = vadd.f32 %v1086, %v1148
    %v1158 = vadd.f32 %v1087, %v1148
    %v1159 = vadd.f32 %v1088, %v1148
    %v1160 = vadd.f32 %v1089, %v1148
    %v1161 = vadd.f32 %v1090, %v1148
    %v1162 = vadd.f32 %v1091, %v1148
    %v1163 = vadd.f32 %v1092, %v1148
    %v1164 = vadd.f32 %v1093, %v1148
    %v1165 = vadd.f32 %v1094, %v1148
    %v1166 = vadd.f32 %v1095, %v1148
    %v1167 = vadd.f32 %v1096, %v1148
    %v1168 = vadd.f32 %v1097, %v1148
    %v1169 = vadd.f32 %v1098, %v1148
    %v1170 = vadd.f32 %v1099, %v1148
    %v1171 = vadd.f32 %v1100, %v1148
    %v1172 = vadd.f32 %v1101, %v1148
    %v1173 = vadd.f32 %v1102, %v1148
    %v1174 = vadd.f32 %v1103, %v1148
    %v1175 = vadd.f32 %v1104, %v1148
    %v1176 = vadd.f32 %v1105, %v1148
    %v1177 = vadd.f32 %v1106, %v1148
    %v1178 = vadd.f32 %v1107, %v1148
    %v1179 = vadd.f32 %v1108, %v1148
    %v1180 = vadd.f32 %v1109, %v1148
    %v1181 = vadd.f32 %v1110, %v1148
    %v1182 = vadd.f32 %v1111, %v1148
    %v1183 = vadd.f32 %v1112, %v1148
    %v1184 = vadd.f32 %v1113, %v1148
    %v1185 = vadd.f32 %v1114, %v1148
    %v1186 = vadd.f32 %v1115, %v1148
    %v1187 = vadd.f32 %v1116, %v1148
    %v1188 = vadd.f32 %v1117, %v1148
    %v1189 = vadd.f32 %v1118, %v1148
    %v1190 = vadd.f32 %v1119, %v1148
    %v1191 = vadd.f32 %v1120, %v1148
    %v1192 = vadd.f32 %v1121, %v1148
    %v1193 = vadd.f32 %v1122, %v1148
    %v1194 = vadd.f32 %v1123, %v1148
    %v1195 = vadd.f32 %v1124, %v1148
    %v1196 = vadd.f32 %v1125, %v1148
    %v1197 = vadd.f32 %v1126, %v1148
    %v1198 = vadd.f32 %v1127, %v1148
    %v1199 = vadd.f32 %v1128, %v1148
    %v1200 = vadd.f32 %v1129, %v1148
    %v1201 = vadd.f32 %v1130, %v1148
    %v1202 = vadd.f32 %v1131, %v1148
    %v1203 = vadd.f32 %v1132, %v1148
    %v1204 = vadd.f32 %v1133, %v1148
    %v1205 = vadd.f32 %v1134, %v1148
    %v1206 = vadd.f32 %v1135, %v1148
    %v1207 = vadd.f32 %v1136, %v1148
    %v1208 = vadd.f32 %v1137, %v1148
    %v1209 = vadd.f32 %v1138, %v1148
    %v1210 = vadd.f32 %v1139, %v1148
    %v1211 = vadd.f32 %v1140, %v1148
    %v1212 = vadd.f32 %v1141, %v1148
    %v1213 = vadd.f32 %v1142, %v1148
    %v1214 = vmax.f32 %v1150, 0.0
    %v1215 = vmax.f32 %v1151, 0.0
    %v1216 = vmax.f32 %v1152, 0.0
    %v1217 = vmax.f32 %v1153, 0.0
    %v1218 = vmax.f32 %v1154, 0.0
    %v1219 = vmax.f32 %v1155, 0.0
    %v1220 = vmax.f32 %v1156, 0.0
    %v1221 = vmax.f32 %v1157, 0.0
    %v1222 = vmax.f32 %v1158, 0.0
    %v1223 = vmax.f32 %v1159, 0.0
    %v1224 = vmax.f32 %v1160, 0.0
    %v1225 = vmax.f32 %v1161, 0.0
    %v1226 = vmax.f32 %v1162, 0.0
    %v1227 = vmax.f32 %v1163, 0.0
    %v1228 = vmax.f32 %v1164, 0.0
    %v1229 = vmax.f32 %v1165, 0.0
    %v1230 = vmax.f32 %v1166, 0.0
    %v1231 = vmax.f32 %v1167, 0.0
    %v1232 = vmax.f32 %v1168, 0.0
    %v1233 = vmax.f32 %v1169, 0.0
    %v1234 = vmax.f32 %v1170, 0.0
    %v1235 = vmax.f32 %v1171, 0.0
    %v1236 = vmax.f32 %v1172, 0.0
    %v1237 = vmax.f32 %v1173, 0.0
    %v1238 = vmax.f32 %v1174, 0.0
    %v1239 = vmax.f32 %v1175, 0.0
    %v1240 = vmax.f32 %v1176, 0.0
    %v1241 = vmax.f32 %v1177, 0.0
    %v1242 = vmax.f32 %v1178, 0.0
    %v1243 = vmax.f32 %v1179, 0.0
    %v1244 = vmax.f32 %v1180, 0.0
    %v1245 = vmax.f32 %v1181, 0.0
    %v1246 = vmax.f32 %v1182, 0.0
    %v1247 = vmax.f32 %v1183, 0.0
    %v1248 = vmax.f32 %v1184, 0.0
    %v1249 = vmax.f32 %v1185, 0.0
    %v1250 = vmax.f32 %v1186, 0.0
    %v1251 = vmax.f32 %v1187, 0.0
    %v1252 = vmax.f32 %v1188, 0.0
    %v1253 = vmax.f32 %v1189, 0.0
    %v1254 = vmax.f32 %v1190, 0.0
    %v1255 = vmax.f32 %v1191, 0.0
    %v1256 = vmax.f32 %v1192, 0.0
    %v1257 = vmax.f32 %v1193, 0.0
    %v1258 = vmax.f32 %v1194, 0.0
    %v1259 = vmax.f32 %v1195, 0.0
    %v1260 = vmax.f32 %v1196, 0.0
    %v1261 = vmax.f32 %v1197, 0.0
    %v1262 = vmax.f32 %v1198, 0.0
    %v1263 = vmax.f32 %v1199, 0.0
    %v1264 = vmax.f32 %v1200, 0.0
    %v1265 = vmax.f32 %v1201, 0.0
    %v1266 = vmax.f32 %v1202, 0.0
    %v1267 = vmax.f32 %v1203, 0.0
    %v1268 = vmax.f32 %v1204, 0.0
    %v1269 = vmax.f32 %v1205, 0.0
    %v1270 = vmax.f32 %v1206, 0.0
    %v1271 = vmax.f32 %v1207, 0.0
    %v1272 = vmax.f32 %v1208, 0.0
    %v1273 = vmax.f32 %v1209, 0.0
    %v1274 = vmax.f32 %v1210, 0.0
    %v1275 = vmax.f32 %v1211, 0.0
    %v1276 = vmax.f32 %v1212, 0.0
    %v1277 = vmax.f32 %v1213, 0.0
    %1278 = vst [vmem:[%s3] sm:$0xff] %v1214
    %1279 = vst [vmem:[%s3 + $0x8] sm:$0xff] %v1215
    %1280 = vst [vmem:[%s3 + $0x10] sm:$0xff] %v1216
    %1281 = vst [vmem:[%s3 + $0x18] sm:$0xff] %v1217
    %1282 = vst [vmem:[%s3 + $0x20] sm:$0xff] %v1218
    %1283 = vst [vmem:[%s3 + $0x28] sm:$0xff] %v1219
    %1284 = vst [vmem:[%s3 + $0x30] sm:$0xff] %v1220
    %1285 = vst [vmem:[%s3 + $0x38] sm:$0xff] %v1221
    %1286 = vst [vmem:[%s3 + $0x40] sm:$0xff] %v1222
    %1287 = vst [vmem:[%s3 + $0x48] sm:$0xff] %v1223
    %1288 = vst [vmem:[%s3 + $0x50] sm:$0xff] %v1224
    %1289 = vst [vmem:[%s3 + $0x58] sm:$0xff] %v1225
    %1290 = vst [vmem:[%s3 + $0x60] sm:$0xff] %v1226
    %1291 = vst [vmem:[%s3 + $0x68] sm:$0xff] %v1227
    %1292 = vst [vmem:[%s3 + $0x70] sm:$0xff] %v1228
    %1293 = vst [vmem:[%s3 + $0x78] sm:$0xff] %v1229
    %1294 = vst [vmem:[%s3 + $0x80] sm:$0xff] %v1230
    %1295 = vst [vmem:[%s3 + $0x88] sm:$0xff] %v1231
    %1296 = vst [vmem:[%s3 + $0x90] sm:$0xff] %v1232
    %1297 = vst [vmem:[%s3 + $0x98] sm:$0xff] %v1233
    %1298 = vst [vmem:[%s3 + $0xa0] sm:$0xff] %v1234
    %1299 = vst [vmem:[%s3 + $0xa8] sm:$0xff] %v1235
    %1300 = vst [vmem:[%s3 + $0xb0] sm:$0xff] %v1236
    %1301 = vst [vmem:[%s3 + $0xb8] sm:$0xff] %v1237
    %1302 = vst [vmem:[%s3 + $0xc0] sm:$0xff] %v1238
    %1303 = vst [vmem:[%s3 + $0xc8] sm:$0xff] %v1239
    %1304 = vst [vmem:[%s3 + $0xd0] sm:$0xff] %v1240
    %1305 = vst [vmem:[%s3 + $0xd8] sm:$0xff] %v1241
    %1306 = vst [vmem:[%s3 + $0xe0] sm:$0xff] %v1242
    %1307 = vst [vmem:[%s3 + $0xe8] sm:$0xff] %v1243
    %1308 = vst [vmem:[%s3 + $0xf0] sm:$0xff] %v1244
    %1309 = vst [vmem:[%s3 + $0xf8] sm:$0xff] %v1245
    %1310 = vst [vmem:[%s3 + $0x100] sm:$0xff] %v1246
    %1311 = vst [vmem:[%s3 + $0x108] sm:$0xff] %v1247
    %1312 = vst [vmem:[%s3 + $0x110] sm:$0xff] %v1248
    %1313 = vst [vmem:[%s3 + $0x118] sm:$0xff] %v1249
    %1314 = vst [vmem:[%s3 + $0x120] sm:$0xff] %v1250
    %1315 = vst [vmem:[%s3 + $0x128] sm:$0xff] %v1251
    %1316 = vst [vmem:[%s3 + $0x130] sm:$0xff] %v1252
    %1317 = vst [vmem:[%s3 + $0x138] sm:$0xff] %v1253
    %1318 = vst [vmem:[%s3 + $0x140] sm:$0xff] %v1254
    %1319 = vst [vmem:[%s3 + $0x148] sm:$0xff] %v1255
    %1320 = vst [vmem:[%s3 + $0x150] sm:$0xff] %v1256
    %1321 = vst [vmem:[%s3 + $0x158] sm:$0xff] %v1257
    %1322 = vst [vmem:[%s3 + $0x160] sm:$0xff] %v1258
    %1323 = vst [vmem:[%s3 + $0x168] sm:$0xff] %v1259
    %1324 = vst [vmem:[%s3 + $0x170] sm:$0xff] %v1260
    %1325 = vst [vmem:[%s3 + $0x178] sm:$0xff] %v1261
    %1326 = vst [vmem:[%s3 + $0x180] sm:$0xff] %v1262
    %1327 = vst [vmem:[%s3 + $0x188] sm:$0xff] %v1263
    %1328 = vst [vmem:[%s3 + $0x190] sm:$0xff] %v1264
    %1329 = vst [vmem:[%s3 + $0x198] sm:$0xff] %v1265
    %1330 = vst [vmem:[%s3 + $0x1a0] sm:$0xff] %v1266
    %1331 = vst [vmem:[%s3 + $0x1a8] sm:$0xff] %v1267
    %1332 = vst [vmem:[%s3 + $0x1b0] sm:$0xff] %v1268
    %1333 = vst [vmem:[%s3 + $0x1b8] sm:$0xff] %v1269
    %1334 = vst [vmem:[%s3 + $0x1c0] sm:$0xff] %v1270
    %1335 = vst [vmem:[%s3 + $0x1c8] sm:$0xff] %v1271
    %1336 = vst [vmem:[%s3 + $0x1d0] sm:$0xff] %v1272
    %1337 = vst [vmem:[%s3 + $0x1d8] sm:$0xff] %v1273
    %1338 = vst [vmem:[%s3 + $0x1e0] sm:$0xff] %v1274
    %1339 = vst [vmem:[%s3 + $0x1e8] sm:$0xff] %v1275
    %1340 = vst [vmem:[%s3 + $0x1f0] sm:$0xff] %v1276
    %1341 = vst [vmem:[%s3 + $0x1f8] sm:$0xff] %v1277
  $region21: #{patch_embed_forward.14} parent=0 // pred_fallthru
    _
  // Predicated region
  $region22: #{patch_embed_forward.14} parent=0 // pred_check
    _
  $region23: #{patch_embed_forward.14} parent=0 // pred_check_branch
    %1343 = sbr.rel (0) target = $region25
  $region24: #{patch_embed_forward.14} parent=0 // pred_region
    _
  $region25: #{patch_embed_forward.14} parent=0 // pred_fallthru
    _
  // Predicated region
  $region26: #{patch_embed_forward.14} parent=0 // pred_check
    _
  $region27: #{patch_embed_forward.14} parent=0 // pred_check_branch
    %1345 = sbr.rel (0) target = $region29
  $region28: #{patch_embed_forward.14} parent=0 // pred_region
    _
  $region29: #{patch_embed_forward.14} parent=0 // pred_fallthru
    _

// kernel: patch_embed_forward.15
$region0: #{patch_embed_forward.15}
  #allocation0 [shape = 'u32[]', space=smem, size = 0x4, offset = 0x4, fixed_abs, tag = 'smem constant byte address 0x4 - core index']
  #allocation1 [shape = 'u32[144,128]{1,0:T(1,128)}', space=vmem, size = 0x12000, scoped, tag = 'internal scratch']
  %s0 = inlined_call_operand.vmem [shape: f32[9,128,128], index: 0, kind: input, shape index: {}]
  %s1 = inlined_call_operand.vmem [shape: f32[128,128], index: 1, kind: output, shape index: {}]
  %s2 = sld [smem:[#allocation0]]
  $region14: #{patch_embed_forward.15} parent=0
    _
  %s4 = ssub.s32 1, %s2
  %s5 = scalar_select 0, %s4, %s2
  // Predicated region
  $region2: #{patch_embed_forward.15} parent=0 // pred_check
    _
  $region3: #{patch_embed_forward.15} parent=0 // pred_check_branch
    %7 = sbr.rel (0) target = $region5
  $region4: #{patch_embed_forward.15} parent=0 // pred_region
    _
  $region5: #{patch_embed_forward.15} parent=0 // pred_fallthru
    _
  %v8 = vld [vmem:[%s0] sm:$0xff]
  %v9 = vld [vmem:[%s0 + $0x8] sm:$0xff]
  %v10 = vld [vmem:[%s0 + $0x10] sm:$0xff]
  %v11 = vld [vmem:[%s0 + $0x18] sm:$0xff]
  %v12 = vld [vmem:[%s0 + $0x20] sm:$0xff]
  %v13 = vld [vmem:[%s0 + $0x28] sm:$0xff]
  %v14 = vld [vmem:[%s0 + $0x30] sm:$0xff]
  %v15 = vld [vmem:[%s0 + $0x38] sm:$0xff]
  %v16 = vld [vmem:[%s0 + $0x40] sm:$0xff]
  %v17 = vld [vmem:[%s0 + $0x48] sm:$0xff]
  %v18 = vld [vmem:[%s0 + $0x50] sm:$0xff]
  %v19 = vld [vmem:[%s0 + $0x58] sm:$0xff]
  %v20 = vld [vmem:[%s0 + $0x60] sm:$0xff]
  %v21 = vld [vmem:[%s0 + $0x68] sm:$0xff]
  %v22 = vld [vmem:[%s0 + $0x70] sm:$0xff]
  %v23 = vld [vmem:[%s0 + $0x78] sm:$0xff]
  %s24 = scalar_lea.vmem %s0, 128
  %v25 = vld [vmem:[%s24] sm:$0xff]
  %v26 = vld [vmem:[%s24 + $0x8] sm:$0xff]
  %v27 = vld [vmem:[%s24 + $0x10] sm:$0xff]
  %v28 = vld [vmem:[%s24 + $0x18] sm:$0xff]
  %v29 = vld [vmem:[%s24 + $0x20] sm:$0xff]
  %v30 = vld [vmem:[%s24 + $0x28] sm:$0xff]
  %v31 = vld [vmem:[%s24 + $0x30] sm:$0xff]
  %v32 = vld [vmem:[%s24 + $0x38] sm:$0xff]
  %v33 = vld [vmem:[%s24 + $0x40] sm:$0xff]
  %v34 = vld [vmem:[%s24 + $0x48] sm:$0xff]
  %v35 = vld [vmem:[%s24 + $0x50] sm:$0xff]
  %v36 = vld [vmem:[%s24 + $0x58] sm:$0xff]
  %v37 = vld [vmem:[%s24 + $0x60] sm:$0xff]
  %v38 = vld [vmem:[%s24 + $0x68] sm:$0xff]
  %v39 = vld [vmem:[%s24 + $0x70] sm:$0xff]
  %v40 = vld [vmem:[%s24 + $0x78] sm:$0xff]
  %v41 = vmax.f32 %v8, %v25
  %v42 = vmax.f32 %v9, %v26
  %v43 = vmax.f32 %v10, %v27
  %v44 = vmax.f32 %v11, %v28
  %v45 = vmax.f32 %v12, %v29
  %v46 = vmax.f32 %v13, %v30
  %v47 = vmax.f32 %v14, %v31
  %v48 = vmax.f32 %v15, %v32
  %v49 = vmax.f32 %v16, %v33
  %v50 = vmax.f32 %v17, %v34
  %v51 = vmax.f32 %v18, %v35
  %v52 = vmax.f32 %v19, %v36
  %v53 = vmax.f32 %v20, %v37
  %v54 = vmax.f32 %v21, %v38
  %v55 = vmax.f32 %v22, %v39
  %v56 = vmax.f32 %v23, %v40
  %s57 = scalar_lea.vmem %s0, 256
  %v58 = vld [vmem:[%s57] sm:$0xff]
  %v59 = vld [vmem:[%s57 + $0x8] sm:$0xff]
  %v60 = vld [vmem:[%s57 + $0x10] sm:$0xff]
  %v61 = vld [vmem:[%s57 + $0x18] sm:$0xff]
  %v62 = vld [vmem:[%s57 + $0x20] sm:$0xff]
  %v63 = vld [vmem:[%s57 + $0x28] sm:$0xff]
  %v64 = vld [vmem:[%s57 + $0x30] sm:$0xff]
  %v65 = vld [vmem:[%s57 + $0x38] sm:$0xff]
  %v66 = vld [vmem:[%s57 + $0x40] sm:$0xff]
  %v67 = vld [vmem:[%s57 + $0x48] sm:$0xff]
  %v68 = vld [vmem:[%s57 + $0x50] sm:$0xff]
  %v69 = vld [vmem:[%s57 + $0x58] sm:$0xff]
  %v70 = vld [vmem:[%s57 + $0x60] sm:$0xff]
  %v71 = vld [vmem:[%s57 + $0x68] sm:$0xff]
  %v72 = vld [vmem:[%s57 + $0x70] sm:$0xff]
  %v73 = vld [vmem:[%s57 + $0x78] sm:$0xff]
  %v74 = vmax.f32 %v41, %v58
  %v75 = vmax.f32 %v42, %v59
  %v76 = vmax.f32 %v43, %v60
  %v77 = vmax.f32 %v44, %v61
  %v78 = vmax.f32 %v45, %v62
  %v79 = vmax.f32 %v46, %v63
  %v80 = vmax.f32 %v47, %v64
  %v81 = vmax.f32 %v48, %v65
  %v82 = vmax.f32 %v49, %v66
  %v83 = vmax.f32 %v50, %v67
  %v84 = vmax.f32 %v51, %v68
  %v85 = vmax.f32 %v52, %v69
  %v86 = vmax.f32 %v53, %v70
  %v87 = vmax.f32 %v54, %v71
  %v88 = vmax.f32 %v55, %v72
  %v89 = vmax.f32 %v56, %v73
  %s90 = scalar_lea.vmem %s0, 384
  %v91 = vld [vmem:[%s90] sm:$0xff]
  %v92 = vld [vmem:[%s90 + $0x8] sm:$0xff]
  %v93 = vld [vmem:[%s90 + $0x10] sm:$0xff]
  %v94 = vld [vmem:[%s90 + $0x18] sm:$0xff]
  %v95 = vld [vmem:[%s90 + $0x20] sm:$0xff]
  %v96 = vld [vmem:[%s90 + $0x28] sm:$0xff]
  %v97 = vld [vmem:[%s90 + $0x30] sm:$0xff]
  %v98 = vld [vmem:[%s90 + $0x38] sm:$0xff]
  %v99 = vld [vmem:[%s90 + $0x40] sm:$0xff]
  %v100 = vld [vmem:[%s90 + $0x48] sm:$0xff]
  %v101 = vld [vmem:[%s90 + $0x50] sm:$0xff]
  %v102 = vld [vmem:[%s90 + $0x58] sm:$0xff]
  %v103 = vld [vmem:[%s90 + $0x60] sm:$0xff]
  %v104 = vld [vmem:[%s90 + $0x68] sm:$0xff]
  %v105 = vld [vmem:[%s90 + $0x70] sm:$0xff]
  %v106 = vld [vmem:[%s90 + $0x78] sm:$0xff]
  %v107 = vmax.f32 %v74, %v91
  %v108 = vmax.f32 %v75, %v92
  %v109 = vmax.f32 %v76, %v93
  %v110 = vmax.f32 %v77, %v94
  %v111 = vmax.f32 %v78, %v95
  %v112 = vmax.f32 %v79, %v96
  %v113 = vmax.f32 %v80, %v97
  %v114 = vmax.f32 %v81, %v98
  %v115 = vmax.f32 %v82, %v99
  %v116 = vmax.f32 %v83, %v100
  %v117 = vmax.f32 %v84, %v101
  %v118 = vmax.f32 %v85, %v102
  %v119 = vmax.f32 %v86, %v103
  %v120 = vmax.f32 %v87, %v104
  %v121 = vmax.f32 %v88, %v105
  %v122 = vmax.f32 %v89, %v106
  %s123 = scalar_lea.vmem %s0, 512
  %v124 = vld [vmem:[%s123] sm:$0xff]
  %v125 = vld [vmem:[%s123 + $0x8] sm:$0xff]
  %v126 = vld [vmem:[%s123 + $0x10] sm:$0xff]
  %v127 = vld [vmem:[%s123 + $0x18] sm:$0xff]
  %v128 = vld [vmem:[%s123 + $0x20] sm:$0xff]
  %v129 = vld [vmem:[%s123 + $0x28] sm:$0xff]
  %v130 = vld [vmem:[%s123 + $0x30] sm:$0xff]
  %v131 = vld [vmem:[%s123 + $0x38] sm:$0xff]
  %v132 = vld [vmem:[%s123 + $0x40] sm:$0xff]
  %v133 = vld [vmem:[%s123 + $0x48] sm:$0xff]
  %v134 = vld [vmem:[%s123 + $0x50] sm:$0xff]
  %v135 = vld [vmem:[%s123 + $0x58] sm:$0xff]
  %v136 = vld [vmem:[%s123 + $0x60] sm:$0xff]
  %v137 = vld [vmem:[%s123 + $0x68] sm:$0xff]
  %v138 = vld [vmem:[%s123 + $0x70] sm:$0xff]
  %v139 = vld [vmem:[%s123 + $0x78] sm:$0xff]
  %v140 = vmax.f32 %v107, %v124
  %v141 = vmax.f32 %v108, %v125
  %v142 = vmax.f32 %v109, %v126
  %v143 = vmax.f32 %v110, %v127
  %v144 = vmax.f32 %v111, %v128
  %v145 = vmax.f32 %v112, %v129
  %v146 = vmax.f32 %v113, %v130
  %v147 = vmax.f32 %v114, %v131
  %v148 = vmax.f32 %v115, %v132
  %v149 = vmax.f32 %v116, %v133
  %v150 = vmax.f32 %v117, %v134
  %v151 = vmax.f32 %v118, %v135
  %v152 = vmax.f32 %v119, %v136
  %v153 = vmax.f32 %v120, %v137
  %v154 = vmax.f32 %v121, %v138
  %v155 = vmax.f32 %v122, %v139
  %s156 = scalar_lea.vmem %s0, 640
  %v157 = vld [vmem:[%s156] sm:$0xff]
  %v158 = vld [vmem:[%s156 + $0x8] sm:$0xff]
  %v159 = vld [vmem:[%s156 + $0x10] sm:$0xff]
  %v160 = vld [vmem:[%s156 + $0x18] sm:$0xff]
  %v161 = vld [vmem:[%s156 + $0x20] sm:$0xff]
  %v162 = vld [vmem:[%s156 + $0x28] sm:$0xff]
  %v163 = vld [vmem:[%s156 + $0x30] sm:$0xff]
  %v164 = vld [vmem:[%s156 + $0x38] sm:$0xff]
  %v165 = vld [vmem:[%s156 + $0x40] sm:$0xff]
  %v166 = vld [vmem:[%s156 + $0x48] sm:$0xff]
  %v167 = vld [vmem:[%s156 + $0x50] sm:$0xff]
  %v168 = vld [vmem:[%s156 + $0x58] sm:$0xff]
  %v169 = vld [vmem:[%s156 + $0x60] sm:$0xff]
  %v170 = vld [vmem:[%s156 + $0x68] sm:$0xff]
  %v171 = vld [vmem:[%s156 + $0x70] sm:$0xff]
  %v172 = vld [vmem:[%s156 + $0x78] sm:$0xff]
  %v173 = vmax.f32 %v140, %v157
  %v174 = vmax.f32 %v141, %v158
  %v175 = vmax.f32 %v142, %v159
  %v176 = vmax.f32 %v143, %v160
  %v177 = vmax.f32 %v144, %v161
  %v178 = vmax.f32 %v145, %v162
  %v179 = vmax.f32 %v146, %v163
  %v180 = vmax.f32 %v147, %v164
  %v181 = vmax.f32 %v148, %v165
  %v182 = vmax.f32 %v149, %v166
  %v183 = vmax.f32 %v150, %v167
  %v184 = vmax.f32 %v151, %v168
  %v185 = vmax.f32 %v152, %v169
  %v186 = vmax.f32 %v153, %v170
  %v187 = vmax.f32 %v154, %v171
  %v188 = vmax.f32 %v155, %v172
  %s189 = scalar_lea.vmem %s0, 768
  %v190 = vld [vmem:[%s189] sm:$0xff]
  %v191 = vld [vmem:[%s189 + $0x8] sm:$0xff]
  %v192 = vld [vmem:[%s189 + $0x10] sm:$0xff]
  %v193 = vld [vmem:[%s189 + $0x18] sm:$0xff]
  %v194 = vld [vmem:[%s189 + $0x20] sm:$0xff]
  %v195 = vld [vmem:[%s189 + $0x28] sm:$0xff]
  %v196 = vld [vmem:[%s189 + $0x30] sm:$0xff]
  %v197 = vld [vmem:[%s189 + $0x38] sm:$0xff]
  %v198 = vld [vmem:[%s189 + $0x40] sm:$0xff]
  %v199 = vld [vmem:[%s189 + $0x48] sm:$0xff]
  %v200 = vld [vmem:[%s189 + $0x50] sm:$0xff]
  %v201 = vld [vmem:[%s189 + $0x58] sm:$0xff]
  %v202 = vld [vmem:[%s189 + $0x60] sm:$0xff]
  %v203 = vld [vmem:[%s189 + $0x68] sm:$0xff]
  %v204 = vld [vmem:[%s189 + $0x70] sm:$0xff]
  %v205 = vld [vmem:[%s189 + $0x78] sm:$0xff]
  %v206 = vmax.f32 %v173, %v190
  %v207 = vmax.f32 %v174, %v191
  %v208 = vmax.f32 %v175, %v192
  %v209 = vmax.f32 %v176, %v193
  %v210 = vmax.f32 %v177, %v194
  %v211 = vmax.f32 %v178, %v195
  %v212 = vmax.f32 %v179, %v196
  %v213 = vmax.f32 %v180, %v197
  %v214 = vmax.f32 %v181, %v198
  %v215 = vmax.f32 %v182, %v199
  %v216 = vmax.f32 %v183, %v200
  %v217 = vmax.f32 %v184, %v201
  %v218 = vmax.f32 %v185, %v202
  %v219 = vmax.f32 %v186, %v203
  %v220 = vmax.f32 %v187, %v204
  %v221 = vmax.f32 %v188, %v205
  %s222 = scalar_lea.vmem %s0, 896
  %v223 = vld [vmem:[%s222] sm:$0xff]
  %v224 = vld [vmem:[%s222 + $0x8] sm:$0xff]
  %v225 = vld [vmem:[%s222 + $0x10] sm:$0xff]
  %v226 = vld [vmem:[%s222 + $0x18] sm:$0xff]
  %v227 = vld [vmem:[%s222 + $0x20] sm:$0xff]
  %v228 = vld [vmem:[%s222 + $0x28] sm:$0xff]
  %v229 = vld [vmem:[%s222 + $0x30] sm:$0xff]
  %v230 = vld [vmem:[%s222 + $0x38] sm:$0xff]
  %v231 = vld [vmem:[%s222 + $0x40] sm:$0xff]
  %v232 = vld [vmem:[%s222 + $0x48] sm:$0xff]
  %v233 = vld [vmem:[%s222 + $0x50] sm:$0xff]
  %v234 = vld [vmem:[%s222 + $0x58] sm:$0xff]
  %v235 = vld [vmem:[%s222 + $0x60] sm:$0xff]
  %v236 = vld [vmem:[%s222 + $0x68] sm:$0xff]
  %v237 = vld [vmem:[%s222 + $0x70] sm:$0xff]
  %v238 = vld [vmem:[%s222 + $0x78] sm:$0xff]
  %v239 = vmax.f32 %v206, %v223
  %v240 = vmax.f32 %v207, %v224
  %v241 = vmax.f32 %v208, %v225
  %v242 = vmax.f32 %v209, %v226
  %v243 = vmax.f32 %v210, %v227
  %v244 = vmax.f32 %v211, %v228
  %v245 = vmax.f32 %v212, %v229
  %v246 = vmax.f32 %v213, %v230
  %v247 = vmax.f32 %v214, %v231
  %v248 = vmax.f32 %v215, %v232
  %v249 = vmax.f32 %v216, %v233
  %v250 = vmax.f32 %v217, %v234
  %v251 = vmax.f32 %v218, %v235
  %v252 = vmax.f32 %v219, %v236
  %v253 = vmax.f32 %v220, %v237
  %v254 = vmax.f32 %v221, %v238
  %s255 = scalar_lea.vmem %s0, 1024
  %v256 = vld [vmem:[%s255] sm:$0xff]
  %v257 = vld [vmem:[%s255 + $0x8] sm:$0xff]
  %v258 = vld [vmem:[%s255 + $0x10] sm:$0xff]
  %v259 = vld [vmem:[%s255 + $0x18] sm:$0xff]
  %v260 = vld [vmem:[%s255 + $0x20] sm:$0xff]
  %v261 = vld [vmem:[%s255 + $0x28] sm:$0xff]
  %v262 = vld [vmem:[%s255 + $0x30] sm:$0xff]
  %v263 = vld [vmem:[%s255 + $0x38] sm:$0xff]
  %v264 = vld [vmem:[%s255 + $0x40] sm:$0xff]
  %v265 = vld [vmem:[%s255 + $0x48] sm:$0xff]
  %v266 = vld [vmem:[%s255 + $0x50] sm:$0xff]
  %v267 = vld [vmem:[%s255 + $0x58] sm:$0xff]
  %v268 = vld [vmem:[%s255 + $0x60] sm:$0xff]
  %v269 = vld [vmem:[%s255 + $0x68] sm:$0xff]
  %v270 = vld [vmem:[%s255 + $0x70] sm:$0xff]
  %v271 = vld [vmem:[%s255 + $0x78] sm:$0xff]
  %v272 = vmax.f32 %v239, %v256
  %v273 = vmax.f32 %v240, %v257
  %v274 = vmax.f32 %v241, %v258
  %v275 = vmax.f32 %v242, %v259
  %v276 = vmax.f32 %v243, %v260
  %v277 = vmax.f32 %v244, %v261
  %v278 = vmax.f32 %v245, %v262
  %v279 = vmax.f32 %v246, %v263
  %v280 = vmax.f32 %v247, %v264
  %v281 = vmax.f32 %v248, %v265
  %v282 = vmax.f32 %v249, %v266
  %v283 = vmax.f32 %v250, %v267
  %v284 = vmax.f32 %v251, %v268
  %v285 = vmax.f32 %v252, %v269
  %v286 = vmax.f32 %v253, %v270
  %v287 = vmax.f32 %v254, %v271
  %288 = vst [vmem:[%s1] sm:$0xff] %v272
  %289 = vst [vmem:[%s1 + $0x8] sm:$0xff] %v273
  %290 = vst [vmem:[%s1 + $0x10] sm:$0xff] %v274
  %291 = vst [vmem:[%s1 + $0x18] sm:$0xff] %v275
  %292 = vst [vmem:[%s1 + $0x20] sm:$0xff] %v276
  %293 = vst [vmem:[%s1 + $0x28] sm:$0xff] %v277
  %294 = vst [vmem:[%s1 + $0x30] sm:$0xff] %v278
  %295 = vst [vmem:[%s1 + $0x38] sm:$0xff] %v279
  %296 = vst [vmem:[%s1 + $0x40] sm:$0xff] %v280
  %297 = vst [vmem:[%s1 + $0x48] sm:$0xff] %v281
  %298 = vst [vmem:[%s1 + $0x50] sm:$0xff] %v282
  %299 = vst [vmem:[%s1 + $0x58] sm:$0xff] %v283
  %300 = vst [vmem:[%s1 + $0x60] sm:$0xff] %v284
  %301 = vst [vmem:[%s1 + $0x68] sm:$0xff] %v285
  %302 = vst [vmem:[%s1 + $0x70] sm:$0xff] %v286
  %303 = vst [vmem:[%s1 + $0x78] sm:$0xff] %v287
  // Predicated region
  $region6: #{patch_embed_forward.15} parent=0 // pred_check
    _
  $region7: #{patch_embed_forward.15} parent=0 // pred_check_branch
    %305 = sbr.rel (0) target = $region9
  $region8: #{patch_embed_forward.15} parent=0 // pred_region
    _
  $region9: #{patch_embed_forward.15} parent=0 // pred_fallthru
    _
  // Predicated region
  $region10: #{patch_embed_forward.15} parent=0 // pred_check
    _
  $region11: #{patch_embed_forward.15} parent=0 // pred_check_branch
    %307 = sbr.rel (0) target = $region13
  $region12: #{patch_embed_forward.15} parent=0 // pred_region
    _
  $region13: #{patch_embed_forward.15} parent=0 // pred_fallthru
    _

// kernel: patch_embed_forward.17
$region0: #{patch_embed_forward.17}
  #allocation0 [shape = 'u32[]', space=smem, size = 0x4, offset = 0x4, fixed_abs, tag = 'smem constant byte address 0x4 - core index']
  #allocation1 [shape = 'u32[144,128]{1,0:T(1,128)}', space=vmem, size = 0x12000, scoped, tag = 'internal scratch']
  #allocation2 [shape = 'f32[128,128]{1,0:T(8,128)}', space=vmem, size = 0x10000, scoped, tag = 'scratch operand']
  %s0 = inlined_call_operand.vmem [shape: bf16[128,128], index: 0, kind: input, shape index: {}]
  %s1 = inlined_call_operand.vmem [shape: bf16[128,128], index: 1, kind: input, shape index: {}]
  %s2 = inlined_call_operand.vmem [shape: f32[1,128], index: 2, kind: input, shape index: {}]
  %s3 = inlined_call_operand.vmem [shape: f32[128,128], index: 3, kind: output, shape index: {}]
  %s4 = sld [smem:[#allocation0]]
  $region30: #{patch_embed_forward.17} parent=0
    _
  %s6 = ssub.s32 1, %s4
  %s7 = scalar_select 0, %s6, %s4
  // Predicated region
  $region2: #{patch_embed_forward.17} parent=0 // pred_check
    _
  $region3: #{patch_embed_forward.17} parent=0 // pred_check_branch
    %9 = sbr.rel (0) target = $region5
  $region4: #{patch_embed_forward.17} parent=0 // pred_region
    _
  $region5: #{patch_embed_forward.17} parent=0 // pred_fallthru
    _
  // Predicated region
  $region6: #{patch_embed_forward.17} parent=0 // pred_check
    _
  $region7: #{patch_embed_forward.17} parent=0 // pred_check_branch
    %11 = sbr.rel (0) target = $region9
  $region8: #{patch_embed_forward.17} parent=0 // pred_region
    _
  $region9: #{patch_embed_forward.17} parent=0 // pred_fallthru
    _
  // Predicated region
  $region10: #{patch_embed_forward.17} parent=0 // pred_check
    _
  $region11: #{patch_embed_forward.17} parent=0 // pred_check_branch
    %13 = sbr.rel (0) target = $region13
  $region12: #{patch_embed_forward.17} parent=0 // pred_region
    _
  $region13: #{patch_embed_forward.17} parent=0 // pred_fallthru
    _
  %p15 = scmp.eq.s32.totalorder 0, 0
  // Predicated region
  $region14: #{patch_embed_forward.17} parent=0 // pred_check
    %p16 = pneg %p15
  $region15: #{patch_embed_forward.17} parent=0 // pred_check_branch
    %18 = sbr.rel (%p16) target = $region17
  $region16: #{patch_embed_forward.17} parent=0 // pred_region
    %19 = vst [vmem:[#allocation2] sm:$0xff] 0.0
    %20 = vst [vmem:[#allocation2 + $0x8] sm:$0xff] 0.0
    %21 = vst [vmem:[#allocation2 + $0x10] sm:$0xff] 0.0
    %22 = vst [vmem:[#allocation2 + $0x18] sm:$0xff] 0.0
    %23 = vst [vmem:[#allocation2 + $0x20] sm:$0xff] 0.0
    %24 = vst [vmem:[#allocation2 + $0x28] sm:$0xff] 0.0
    %25 = vst [vmem:[#allocation2 + $0x30] sm:$0xff] 0.0
    %26 = vst [vmem:[#allocation2 + $0x38] sm:$0xff] 0.0
    %27 = vst [vmem:[#allocation2 + $0x40] sm:$0xff] 0.0
    %28 = vst [vmem:[#allocation2 + $0x48] sm:$0xff] 0.0
    %29 = vst [vmem:[#allocation2 + $0x50] sm:$0xff] 0.0
    %30 = vst [vmem:[#allocation2 + $0x58] sm:$0xff] 0.0
    %31 = vst [vmem:[#allocation2 + $0x60] sm:$0xff] 0.0
    %32 = vst [vmem:[#allocation2 + $0x68] sm:$0xff] 0.0
    %33 = vst [vmem:[#allocation2 + $0x70] sm:$0xff] 0.0
    %34 = vst [vmem:[#allocation2 + $0x78] sm:$0xff] 0.0
  $region17: #{patch_embed_forward.17} parent=0 // pred_fallthru
    _
  %v35 = vld [vmem:[#allocation2] sm:$0xff]
  %v36 = vld [vmem:[#allocation2 + $0x8] sm:$0xff]
  %v37 = vld [vmem:[#allocation2 + $0x10] sm:$0xff]
  %v38 = vld [vmem:[#allocation2 + $0x18] sm:$0xff]
  %v39 = vld [vmem:[#allocation2 + $0x20] sm:$0xff]
  %v40 = vld [vmem:[#allocation2 + $0x28] sm:$0xff]
  %v41 = vld [vmem:[#allocation2 + $0x30] sm:$0xff]
  %v42 = vld [vmem:[#allocation2 + $0x38] sm:$0xff]
  %v43 = vld [vmem:[#allocation2 + $0x40] sm:$0xff]
  %v44 = vld [vmem:[#allocation2 + $0x48] sm:$0xff]
  %v45 = vld [vmem:[#allocation2 + $0x50] sm:$0xff]
  %v46 = vld [vmem:[#allocation2 + $0x58] sm:$0xff]
  %v47 = vld [vmem:[#allocation2 + $0x60] sm:$0xff]
  %v48 = vld [vmem:[#allocation2 + $0x68] sm:$0xff]
  %v49 = vld [vmem:[#allocation2 + $0x70] sm:$0xff]
  %v50 = vld [vmem:[#allocation2 + $0x78] sm:$0xff]
  %v51 = vld [vmem:[%s0] sm:$0xf]
  %v52 = vld [vmem:[%s0 + $0x4] sm:$0xf]
  %v53 = vld [vmem:[%s0 + $0x8] sm:$0xf]
  %v54 = vld [vmem:[%s0 + $0xc] sm:$0xf]
  %v55 = vld [vmem:[%s0 + $0x10] sm:$0xf]
  %v56 = vld [vmem:[%s0 + $0x14] sm:$0xf]
  %v57 = vld [vmem:[%s0 + $0x18] sm:$0xf]
  %v58 = vld [vmem:[%s0 + $0x1c] sm:$0xf]
  %v59 = vld [vmem:[%s0 + $0x20] sm:$0xf]
  %v60 = vld [vmem:[%s0 + $0x24] sm:$0xf]
  %v61 = vld [vmem:[%s0 + $0x28] sm:$0xf]
  %v62 = vld [vmem:[%s0 + $0x2c] sm:$0xf]
  %v63 = vld [vmem:[%s0 + $0x30] sm:$0xf]
  %v64 = vld [vmem:[%s0 + $0x34] sm:$0xf]
  %v65 = vld [vmem:[%s0 + $0x38] sm:$0xf]
  %v66 = vld [vmem:[%s0 + $0x3c] sm:$0xf]
  %v67 = vld [vmem:[%s1] sm:$0xf]
  %v68 = vld [vmem:[%s1 + $0x4] sm:$0xf]
  %v69 = vld [vmem:[%s1 + $0x8] sm:$0xf]
  %v70 = vld [vmem:[%s1 + $0xc] sm:$0xf]
  %v71 = vld [vmem:[%s1 + $0x10] sm:$0xf]
  %v72 = vld [vmem:[%s1 + $0x14] sm:$0xf]
  %v73 = vld [vmem:[%s1 + $0x18] sm:$0xf]
  %v74 = vld [vmem:[%s1 + $0x1c] sm:$0xf]
  %v75 = vld [vmem:[%s1 + $0x20] sm:$0xf]
  %v76 = vld [vmem:[%s1 + $0x24] sm:$0xf]
  %v77 = vld [vmem:[%s1 + $0x28] sm:$0xf]
  %v78 = vld [vmem:[%s1 + $0x2c] sm:$0xf]
  %v79 = vld [vmem:[%s1 + $0x30] sm:$0xf]
  %v80 = vld [vmem:[%s1 + $0x34] sm:$0xf]
  %v81 = vld [vmem:[%s1 + $0x38] sm:$0xf]
  %v82 = vld [vmem:[%s1 + $0x3c] sm:$0xf]
  %v99 = vunpack.c.l.b16 %v51
  %v100 = vunpack.c.l.b16 %v52
  %v101 = vunpack.c.l.b16 %v53
  %v102 = vunpack.c.l.b16 %v54
  %v103 = vunpack.c.l.b16 %v55
  %v104 = vunpack.c.l.b16 %v56
  %v105 = vunpack.c.l.b16 %v57
  %v106 = vunpack.c.l.b16 %v58
  %v107 = vunpack.c.l.b16 %v59
  %v108 = vunpack.c.l.b16 %v60
  %v109 = vunpack.c.l.b16 %v61
  %v110 = vunpack.c.l.b16 %v62
  %v111 = vunpack.c.l.b16 %v63
  %v112 = vunpack.c.l.b16 %v64
  %v113 = vunpack.c.l.b16 %v65
  %v114 = vunpack.c.l.b16 %v66
  %v115 = vpack.c.b16 %v100, %v99
  %v116 = vpack.c.b16 %v102, %v101
  %v117 = vpack.c.b16 %v104, %v103
  %v118 = vpack.c.b16 %v106, %v105
  %v119 = vpack.c.b16 %v108, %v107
  %v120 = vpack.c.b16 %v110, %v109
  %v121 = vpack.c.b16 %v112, %v111
  %v122 = vpack.c.b16 %v114, %v113
  %v147 = vunpack.c.l.b16 %v67
  %v148 = vunpack.c.l.b16 %v68
  %v149 = vunpack.c.l.b16 %v69
  %v150 = vunpack.c.l.b16 %v70
  %v151 = vunpack.c.l.b16 %v71
  %v152 = vunpack.c.l.b16 %v72
  %v153 = vunpack.c.l.b16 %v73
  %v154 = vunpack.c.l.b16 %v74
  %v155 = vunpack.c.l.b16 %v75
  %v156 = vunpack.c.l.b16 %v76
  %v157 = vunpack.c.l.b16 %v77
  %v158 = vunpack.c.l.b16 %v78
  %v159 = vunpack.c.l.b16 %v79
  %v160 = vunpack.c.l.b16 %v80
  %v161 = vunpack.c.l.b16 %v81
  %v162 = vunpack.c.l.b16 %v82
  %v163 = vpack.c.b16 %v148, %v147
  %v164 = vpack.c.b16 %v150, %v149
  %v165 = vpack.c.b16 %v152, %v151
  %v166 = vpack.c.b16 %v154, %v153
  %v167 = vpack.c.b16 %v156, %v155
  %v168 = vpack.c.b16 %v158, %v157
  %v169 = vpack.c.b16 %v160, %v159
  %v170 = vpack.c.b16 %v162, %v161
  %179 = vmatprep.subr.bf16.mxu0 0
  %180 = vmatpush1.bf16.msra.mxu0 %v163
  %181 = vmatprep.subr.bf16.mxu0 0
  %182 = vmatpush1.bf16.msra.mxu0 %v164
  %183 = vmatprep.subr.bf16.mxu0 0
  %184 = vmatpush1.bf16.msra.mxu0 %v165
  %185 = vmatprep.subr.bf16.mxu0 0
  %186 = vmatpush1.bf16.msra.mxu0 %v166
  %187 = vmatprep.subr.bf16.mxu0 0
  %188 = vmatpush1.bf16.msra.mxu0 %v167
  %189 = vmatprep.subr.bf16.mxu0 0
  %190 = vmatpush1.bf16.msra.mxu0 %v168
  %191 = vmatprep.subr.bf16.mxu0 0
  %192 = vmatpush1.bf16.msra.mxu0 %v169
  %193 = vmatprep.subr.bf16.mxu0 0
  %194 = vmatpush1.bf16.msra.mxu0 %v170
  %195 = vmatprep.subr.bf16.mxu0 0
  %196 = vmatpush1.bf16.msra.mxu0 0
  %197 = vmatprep.subr.bf16.mxu0 0
  %198 = vmatpush1.bf16.msra.mxu0 0
  %199 = vmatprep.subr.bf16.mxu0 0
  %200 = vmatpush1.bf16.msra.mxu0 0
  %201 = vmatprep.subr.bf16.mxu0 0
  %202 = vmatpush1.bf16.msra.mxu0 0
  %203 = vmatprep.subr.bf16.mxu0 0
  %204 = vmatpush1.bf16.msra.mxu0 0
  %205 = vmatprep.subr.bf16.mxu0 0
  %206 = vmatpush1.bf16.msra.mxu0 0
  %207 = vmatprep.subr.bf16.mxu0 0
  %208 = vmatpush1.bf16.msra.mxu0 0
  %209 = vmatprep.subr.bf16.mxu0 0
  %210 = vmatpush1.bf16.msra.mxu0 0
  %211 = vmatprep.mubr.bf16.mxu0 0
  %212 = vmatmul.mubr.bf16.gmra.mrb[0].mxu0 %v115
  %v213 = vpop.f32.mrb[0].mxu0
  %v214 = vadd.f32 0.0, %v213
  %v215 = vpop.f32.mrb[0].mxu0
  %v216 = vpop.f32.mrb[0].mxu0
  %v217 = vadd.f32 0.0, %v216
  %v218 = vpop.f32.mrb[0].mxu0
  %219 = vmatprep.mubr.bf16.mxu0 0
  %220 = vmatmul.mubr.bf16.gmra.mrb[0].mxu0 %v116
  %v221 = vpop.f32.mrb[0].mxu0
  %v222 = vadd.f32 0.0, %v221
  %v223 = vpop.f32.mrb[0].mxu0
  %v224 = vpop.f32.mrb[0].mxu0
  %v225 = vadd.f32 0.0, %v224
  %v226 = vpop.f32.mrb[0].mxu0
  %227 = vmatprep.mubr.bf16.mxu0 0
  %228 = vmatmul.mubr.bf16.gmra.mrb[0].mxu0 %v117
  %v229 = vpop.f32.mrb[0].mxu0
  %v230 = vadd.f32 0.0, %v229
  %v231 = vpop.f32.mrb[0].mxu0
  %v232 = vpop.f32.mrb[0].mxu0
  %v233 = vadd.f32 0.0, %v232
  %v234 = vpop.f32.mrb[0].mxu0
  %235 = vmatprep.mubr.bf16.mxu0 0
  %236 = vmatmul.mubr.bf16.gmra.mrb[0].mxu0 %v118
  %v237 = vpop.f32.mrb[0].mxu0
  %v238 = vadd.f32 0.0, %v237
  %v239 = vpop.f32.mrb[0].mxu0
  %v240 = vpop.f32.mrb[0].mxu0
  %v241 = vadd.f32 0.0, %v240
  %v242 = vpop.f32.mrb[0].mxu0
  %243 = vmatprep.mubr.bf16.mxu0 0
  %244 = vmatmul.mubr.bf16.gmra.mrb[0].mxu0 %v119
  %v245 = vpop.f32.mrb[0].mxu0
  %v246 = vadd.f32 0.0, %v245
  %v247 = vpop.f32.mrb[0].mxu0
  %v248 = vpop.f32.mrb[0].mxu0
  %v249 = vadd.f32 0.0, %v248
  %v250 = vpop.f32.mrb[0].mxu0
  %251 = vmatprep.mubr.bf16.mxu0 0
  %252 = vmatmul.mubr.bf16.gmra.mrb[0].mxu0 %v120
  %v253 = vpop.f32.mrb[0].mxu0
  %v254 = vadd.f32 0.0, %v253
  %v255 = vpop.f32.mrb[0].mxu0
  %v256 = vpop.f32.mrb[0].mxu0
  %v257 = vadd.f32 0.0, %v256
  %v258 = vpop.f32.mrb[0].mxu0
  %259 = vmatprep.mubr.bf16.mxu0 0
  %260 = vmatmul.mubr.bf16.gmra.mrb[0].mxu0 %v121
  %v261 = vpop.f32.mrb[0].mxu0
  %v262 = vadd.f32 0.0, %v261
  %v263 = vpop.f32.mrb[0].mxu0
  %v264 = vpop.f32.mrb[0].mxu0
  %v265 = vadd.f32 0.0, %v264
  %v266 = vpop.f32.mrb[0].mxu0
  %267 = vmatprep.mubr.bf16.mxu0 0
  %268 = vmatmul.mubr.bf16.gmra.mrb[0].mxu0 %v122
  %v269 = vpop.f32.mrb[0].mxu0
  %v270 = vadd.f32 0.0, %v269
  %v271 = vpop.f32.mrb[0].mxu0
  %v272 = vpop.f32.mrb[0].mxu0
  %v273 = vadd.f32 0.0, %v272
  %v274 = vpop.f32.mrb[0].mxu0
  %275 = vdwg.mxu0
  %v276 = vadd.f32 %v35, %v214
  %v277 = vadd.f32 %v36, %v217
  %v278 = vadd.f32 %v37, %v222
  %v279 = vadd.f32 %v38, %v225
  %v280 = vadd.f32 %v39, %v230
  %v281 = vadd.f32 %v40, %v233
  %v282 = vadd.f32 %v41, %v238
  %v283 = vadd.f32 %v42, %v241
  %v284 = vadd.f32 %v43, %v246
  %v285 = vadd.f32 %v44, %v249
  %v286 = vadd.f32 %v45, %v254
  %v287 = vadd.f32 %v46, %v257
  %v288 = vadd.f32 %v47, %v262
  %v289 = vadd.f32 %v48, %v265
  %v290 = vadd.f32 %v49, %v270
  %v291 = vadd.f32 %v50, %v273
  %292 = vst [vmem:[#allocation2] sm:$0xff] %v276
  %293 = vst [vmem:[#allocation2 + $0x8] sm:$0xff] %v277
  %294 = vst [vmem:[#allocation2 + $0x10] sm:$0xff] %v278
  %295 = vst [vmem:[#allocation2 + $0x18] sm:$0xff] %v279
  %296 = vst [vmem:[#allocation2 + $0x20] sm:$0xff] %v280
  %297 = vst [vmem:[#allocation2 + $0x28] sm:$0xff] %v281
  %298 = vst [vmem:[#allocation2 + $0x30] sm:$0xff] %v282
  %299 = vst [vmem:[#allocation2 + $0x38] sm:$0xff] %v283
  %300 = vst [vmem:[#allocation2 + $0x40] sm:$0xff] %v284
  %301 = vst [vmem:[#allocation2 + $0x48] sm:$0xff] %v285
  %302 = vst [vmem:[#allocation2 + $0x50] sm:$0xff] %v286
  %303 = vst [vmem:[#allocation2 + $0x58] sm:$0xff] %v287
  %304 = vst [vmem:[#allocation2 + $0x60] sm:$0xff] %v288
  %305 = vst [vmem:[#allocation2 + $0x68] sm:$0xff] %v289
  %306 = vst [vmem:[#allocation2 + $0x70] sm:$0xff] %v290
  %307 = vst [vmem:[#allocation2 + $0x78] sm:$0xff] %v291
  // Predicated region
  $region18: #{patch_embed_forward.17} parent=0 // pred_check
    %p308 = pneg %p15
  $region19: #{patch_embed_forward.17} parent=0 // pred_check_branch
    %310 = sbr.rel (%p308) target = $region21
  $region20: #{patch_embed_forward.17} parent=0 // pred_region
    %v311 = vld [vmem:[#allocation2] sm:$0xff]
    %v312 = vld [vmem:[#allocation2 + $0x8] sm:$0xff]
    %v313 = vld [vmem:[#allocation2 + $0x10] sm:$0xff]
    %v314 = vld [vmem:[#allocation2 + $0x18] sm:$0xff]
    %v315 = vld [vmem:[#allocation2 + $0x20] sm:$0xff]
    %v316 = vld [vmem:[#allocation2 + $0x28] sm:$0xff]
    %v317 = vld [vmem:[#allocation2 + $0x30] sm:$0xff]
    %v318 = vld [vmem:[#allocation2 + $0x38] sm:$0xff]
    %v319 = vld [vmem:[#allocation2 + $0x40] sm:$0xff]
    %v320 = vld [vmem:[#allocation2 + $0x48] sm:$0xff]
    %v321 = vld [vmem:[#allocation2 + $0x50] sm:$0xff]
    %v322 = vld [vmem:[#allocation2 + $0x58] sm:$0xff]
    %v323 = vld [vmem:[#allocation2 + $0x60] sm:$0xff]
    %v324 = vld [vmem:[#allocation2 + $0x68] sm:$0xff]
    %v325 = vld [vmem:[#allocation2 + $0x70] sm:$0xff]
    %v326 = vld [vmem:[#allocation2 + $0x78] sm:$0xff]
    %v327 = vld [vmem:[%s2] sm:$0x1]
    %v329 = vlaneseq
    %v330 = vshrl.u32 %v329, 7
    %v331 = vsub.s32 0, %v330
    %v332 = vrot.slane %v327, %v331
    %v334 = vadd.f32 %v311, %v332
    %v335 = vadd.f32 %v312, %v332
    %v336 = vadd.f32 %v313, %v332
    %v337 = vadd.f32 %v314, %v332
    %v338 = vadd.f32 %v315, %v332
    %v339 = vadd.f32 %v316, %v332
    %v340 = vadd.f32 %v317, %v332
    %v341 = vadd.f32 %v318, %v332
    %v342 = vadd.f32 %v319, %v332
    %v343 = vadd.f32 %v320, %v332
    %v344 = vadd.f32 %v321, %v332
    %v345 = vadd.f32 %v322, %v332
    %v346 = vadd.f32 %v323, %v332
    %v347 = vadd.f32 %v324, %v332
    %v348 = vadd.f32 %v325, %v332
    %v349 = vadd.f32 %v326, %v332
    %v350 = vmax.f32 %v334, 0.0
    %v351 = vmax.f32 %v335, 0.0
    %v352 = vmax.f32 %v336, 0.0
    %v353 = vmax.f32 %v337, 0.0
    %v354 = vmax.f32 %v338, 0.0
    %v355 = vmax.f32 %v339, 0.0
    %v356 = vmax.f32 %v340, 0.0
    %v357 = vmax.f32 %v341, 0.0
    %v358 = vmax.f32 %v342, 0.0
    %v359 = vmax.f32 %v343, 0.0
    %v360 = vmax.f32 %v344, 0.0
    %v361 = vmax.f32 %v345, 0.0
    %v362 = vmax.f32 %v346, 0.0
    %v363 = vmax.f32 %v347, 0.0
    %v364 = vmax.f32 %v348, 0.0
    %v365 = vmax.f32 %v349, 0.0
    %366 = vst [vmem:[%s3] sm:$0xff] %v350
    %367 = vst [vmem:[%s3 + $0x8] sm:$0xff] %v351
    %368 = vst [vmem:[%s3 + $0x10] sm:$0xff] %v352
    %369 = vst [vmem:[%s3 + $0x18] sm:$0xff] %v353
    %370 = vst [vmem:[%s3 + $0x20] sm:$0xff] %v354
    %371 = vst [vmem:[%s3 + $0x28] sm:$0xff] %v355
    %372 = vst [vmem:[%s3 + $0x30] sm:$0xff] %v356
    %373 = vst [vmem:[%s3 + $0x38] sm:$0xff] %v357
    %374 = vst [vmem:[%s3 + $0x40] sm:$0xff] %v358
    %375 = vst [vmem:[%s3 + $0x48] sm:$0xff] %v359
    %376 = vst [vmem:[%s3 + $0x50] sm:$0xff] %v360
    %377 = vst [vmem:[%s3 + $0x58] sm:$0xff] %v361
    %378 = vst [vmem:[%s3 + $0x60] sm:$0xff] %v362
    %379 = vst [vmem:[%s3 + $0x68] sm:$0xff] %v363
    %380 = vst [vmem:[%s3 + $0x70] sm:$0xff] %v364
    %381 = vst [vmem:[%s3 + $0x78] sm:$0xff] %v365
  $region21: #{patch_embed_forward.17} parent=0 // pred_fallthru
    _
  // Predicated region
  $region22: #{patch_embed_forward.17} parent=0 // pred_check
    _
  $region23: #{patch_embed_forward.17} parent=0 // pred_check_branch
    %383 = sbr.rel (0) target = $region25
  $region24: #{patch_embed_forward.17} parent=0 // pred_region
    _
  $region25: #{patch_embed_forward.17} parent=0 // pred_fallthru
    _
  // Predicated region
  $region26: #{patch_embed_forward.17} parent=0 // pred_check
    _
  $region27: #{patch_embed_forward.17} parent=0 // pred_check_branch
    %385 = sbr.rel (0) target = $region29
  $region28: #{patch_embed_forward.17} parent=0 // pred_region
    _
  $region29: #{patch_embed_forward.17} parent=0 // pred_fallthru
    _

// kernel: patch_embed_forward.16
$region0: #{patch_embed_forward.16}
  #allocation0 [shape = 'u32[]', space=smem, size = 0x4, offset = 0x4, fixed_abs, tag = 'smem constant byte address 0x4 - core index']
  #allocation1 [shape = 'u32[144,128]{1,0:T(1,128)}', space=vmem, size = 0x12000, scoped, tag = 'internal scratch']
  #allocation2 [shape = 'f32[128,128]{1,0:T(8,128)}', space=vmem, size = 0x10000, scoped, tag = 'scratch operand']
  %s0 = inlined_call_operand.vmem [shape: bf16[128,128], index: 0, kind: input, shape index: {}]
  %s1 = inlined_call_operand.vmem [shape: bf16[128,128], index: 1, kind: input, shape index: {}]
  %s2 = inlined_call_operand.vmem [shape: f32[1,128], index: 2, kind: input, shape index: {}]
  %s3 = inlined_call_operand.vmem [shape: f32[128,128], index: 3, kind: output, shape index: {}]
  %s4 = sld [smem:[#allocation0]]
  $region30: #{patch_embed_forward.16} parent=0
    _
  %s6 = ssub.s32 1, %s4
  %s7 = scalar_select 0, %s6, %s4
  // Predicated region
  $region2: #{patch_embed_forward.16} parent=0 // pred_check
    _
  $region3: #{patch_embed_forward.16} parent=0 // pred_check_branch
    %9 = sbr.rel (0) target = $region5
  $region4: #{patch_embed_forward.16} parent=0 // pred_region
    _
  $region5: #{patch_embed_forward.16} parent=0 // pred_fallthru
    _
  // Predicated region
  $region6: #{patch_embed_forward.16} parent=0 // pred_check
    _
  $region7: #{patch_embed_forward.16} parent=0 // pred_check_branch
    %11 = sbr.rel (0) target = $region9
  $region8: #{patch_embed_forward.16} parent=0 // pred_region
    _
  $region9: #{patch_embed_forward.16} parent=0 // pred_fallthru
    _
  // Predicated region
  $region10: #{patch_embed_forward.16} parent=0 // pred_check
    _
  $region11: #{patch_embed_forward.16} parent=0 // pred_check_branch
    %13 = sbr.rel (0) target = $region13
  $region12: #{patch_embed_forward.16} parent=0 // pred_region
    _
  $region13: #{patch_embed_forward.16} parent=0 // pred_fallthru
    _
  %p15 = scmp.eq.s32.totalorder 0, 0
  // Predicated region
  $region14: #{patch_embed_forward.16} parent=0 // pred_check
    %p16 = pneg %p15
  $region15: #{patch_embed_forward.16} parent=0 // pred_check_branch
    %18 = sbr.rel (%p16) target = $region17
  $region16: #{patch_embed_forward.16} parent=0 // pred_region
    %19 = vst [vmem:[#allocation2] sm:$0xff] 0.0
    %20 = vst [vmem:[#allocation2 + $0x8] sm:$0xff] 0.0
    %21 = vst [vmem:[#allocation2 + $0x10] sm:$0xff] 0.0
    %22 = vst [vmem:[#allocation2 + $0x18] sm:$0xff] 0.0
    %23 = vst [vmem:[#allocation2 + $0x20] sm:$0xff] 0.0
    %24 = vst [vmem:[#allocation2 + $0x28] sm:$0xff] 0.0
    %25 = vst [vmem:[#allocation2 + $0x30] sm:$0xff] 0.0
    %26 = vst [vmem:[#allocation2 + $0x38] sm:$0xff] 0.0
    %27 = vst [vmem:[#allocation2 + $0x40] sm:$0xff] 0.0
    %28 = vst [vmem:[#allocation2 + $0x48] sm:$0xff] 0.0
    %29 = vst [vmem:[#allocation2 + $0x50] sm:$0xff] 0.0
    %30 = vst [vmem:[#allocation2 + $0x58] sm:$0xff] 0.0
    %31 = vst [vmem:[#allocation2 + $0x60] sm:$0xff] 0.0
    %32 = vst [vmem:[#allocation2 + $0x68] sm:$0xff] 0.0
    %33 = vst [vmem:[#allocation2 + $0x70] sm:$0xff] 0.0
    %34 = vst [vmem:[#allocation2 + $0x78] sm:$0xff] 0.0
  $region17: #{patch_embed_forward.16} parent=0 // pred_fallthru
    _
  %v35 = vld [vmem:[#allocation2] sm:$0xff]
  %v36 = vld [vmem:[#allocation2 + $0x8] sm:$0xff]
  %v37 = vld [vmem:[#allocation2 + $0x10] sm:$0xff]
  %v38 = vld [vmem:[#allocation2 + $0x18] sm:$0xff]
  %v39 = vld [vmem:[#allocation2 + $0x20] sm:$0xff]
  %v40 = vld [vmem:[#allocation2 + $0x28] sm:$0xff]
  %v41 = vld [vmem:[#allocation2 + $0x30] sm:$0xff]
  %v42 = vld [vmem:[#allocation2 + $0x38] sm:$0xff]
  %v43 = vld [vmem:[#allocation2 + $0x40] sm:$0xff]
  %v44 = vld [vmem:[#allocation2 + $0x48] sm:$0xff]
  %v45 = vld [vmem:[#allocation2 + $0x50] sm:$0xff]
  %v46 = vld [vmem:[#allocation2 + $0x58] sm:$0xff]
  %v47 = vld [vmem:[#allocation2 + $0x60] sm:$0xff]
  %v48 = vld [vmem:[#allocation2 + $0x68] sm:$0xff]
  %v49 = vld [vmem:[#allocation2 + $0x70] sm:$0xff]
  %v50 = vld [vmem:[#allocation2 + $0x78] sm:$0xff]
  %v51 = vld [vmem:[%s0] sm:$0xf]
  %v52 = vld [vmem:[%s0 + $0x4] sm:$0xf]
  %v53 = vld [vmem:[%s0 + $0x8] sm:$0xf]
  %v54 = vld [vmem:[%s0 + $0xc] sm:$0xf]
  %v55 = vld [vmem:[%s0 + $0x10] sm:$0xf]
  %v56 = vld [vmem:[%s0 + $0x14] sm:$0xf]
  %v57 = vld [vmem:[%s0 + $0x18] sm:$0xf]
  %v58 = vld [vmem:[%s0 + $0x1c] sm:$0xf]
  %v59 = vld [vmem:[%s0 + $0x20] sm:$0xf]
  %v60 = vld [vmem:[%s0 + $0x24] sm:$0xf]
  %v61 = vld [vmem:[%s0 + $0x28] sm:$0xf]
  %v62 = vld [vmem:[%s0 + $0x2c] sm:$0xf]
  %v63 = vld [vmem:[%s0 + $0x30] sm:$0xf]
  %v64 = vld [vmem:[%s0 + $0x34] sm:$0xf]
  %v65 = vld [vmem:[%s0 + $0x38] sm:$0xf]
  %v66 = vld [vmem:[%s0 + $0x3c] sm:$0xf]
  %v67 = vld [vmem:[%s1] sm:$0xf]
  %v68 = vld [vmem:[%s1 + $0x4] sm:$0xf]
  %v69 = vld [vmem:[%s1 + $0x8] sm:$0xf]
  %v70 = vld [vmem:[%s1 + $0xc] sm:$0xf]
  %v71 = vld [vmem:[%s1 + $0x10] sm:$0xf]
  %v72 = vld [vmem:[%s1 + $0x14] sm:$0xf]
  %v73 = vld [vmem:[%s1 + $0x18] sm:$0xf]
  %v74 = vld [vmem:[%s1 + $0x1c] sm:$0xf]
  %v75 = vld [vmem:[%s1 + $0x20] sm:$0xf]
  %v76 = vld [vmem:[%s1 + $0x24] sm:$0xf]
  %v77 = vld [vmem:[%s1 + $0x28] sm:$0xf]
  %v78 = vld [vmem:[%s1 + $0x2c] sm:$0xf]
  %v79 = vld [vmem:[%s1 + $0x30] sm:$0xf]
  %v80 = vld [vmem:[%s1 + $0x34] sm:$0xf]
  %v81 = vld [vmem:[%s1 + $0x38] sm:$0xf]
  %v82 = vld [vmem:[%s1 + $0x3c] sm:$0xf]
  %v99 = vunpack.c.l.b16 %v51
  %v100 = vunpack.c.l.b16 %v52
  %v101 = vunpack.c.l.b16 %v53
  %v102 = vunpack.c.l.b16 %v54
  %v103 = vunpack.c.l.b16 %v55
  %v104 = vunpack.c.l.b16 %v56
  %v105 = vunpack.c.l.b16 %v57
  %v106 = vunpack.c.l.b16 %v58
  %v107 = vunpack.c.l.b16 %v59
  %v108 = vunpack.c.l.b16 %v60
  %v109 = vunpack.c.l.b16 %v61
  %v110 = vunpack.c.l.b16 %v62
  %v111 = vunpack.c.l.b16 %v63
  %v112 = vunpack.c.l.b16 %v64
  %v113 = vunpack.c.l.b16 %v65
  %v114 = vunpack.c.l.b16 %v66
  %v115 = vpack.c.b16 %v100, %v99
  %v116 = vpack.c.b16 %v102, %v101
  %v117 = vpack.c.b16 %v104, %v103
  %v118 = vpack.c.b16 %v106, %v105
  %v119 = vpack.c.b16 %v108, %v107
  %v120 = vpack.c.b16 %v110, %v109
  %v121 = vpack.c.b16 %v112, %v111
  %v122 = vpack.c.b16 %v114, %v113
  %v147 = vunpack.c.l.b16 %v67
  %v148 = vunpack.c.l.b16 %v68
  %v149 = vunpack.c.l.b16 %v69
  %v150 = vunpack.c.l.b16 %v70
  %v151 = vunpack.c.l.b16 %v71
  %v152 = vunpack.c.l.b16 %v72
  %v153 = vunpack.c.l.b16 %v73
  %v154 = vunpack.c.l.b16 %v74
  %v155 = vunpack.c.l.b16 %v75
  %v156 = vunpack.c.l.b16 %v76
  %v157 = vunpack.c.l.b16 %v77
  %v158 = vunpack.c.l.b16 %v78
  %v159 = vunpack.c.l.b16 %v79
  %v160 = vunpack.c.l.b16 %v80
  %v161 = vunpack.c.l.b16 %v81
  %v162 = vunpack.c.l.b16 %v82
  %v163 = vpack.c.b16 %v148, %v147
  %v164 = vpack.c.b16 %v150, %v149
  %v165 = vpack.c.b16 %v152, %v151
  %v166 = vpack.c.b16 %v154, %v153
  %v167 = vpack.c.b16 %v156, %v155
  %v168 = vpack.c.b16 %v158, %v157
  %v169 = vpack.c.b16 %v160, %v159
  %v170 = vpack.c.b16 %v162, %v161
  %179 = vmatprep.subr.bf16.mxu0 0
  %180 = vmatpush1.bf16.msra.mxu0 %v163
  %181 = vmatprep.subr.bf16.mxu0 0
  %182 = vmatpush1.bf16.msra.mxu0 %v164
  %183 = vmatprep.subr.bf16.mxu0 0
  %184 = vmatpush1.bf16.msra.mxu0 %v165
  %185 = vmatprep.subr.bf16.mxu0 0
  %186 = vmatpush1.bf16.msra.mxu0 %v166
  %187 = vmatprep.subr.bf16.mxu0 0
  %188 = vmatpush1.bf16.msra.mxu0 %v167
  %189 = vmatprep.subr.bf16.mxu0 0
  %190 = vmatpush1.bf16.msra.mxu0 %v168
  %191 = vmatprep.subr.bf16.mxu0 0
  %192 = vmatpush1.bf16.msra.mxu0 %v169
  %193 = vmatprep.subr.bf16.mxu0 0
  %194 = vmatpush1.bf16.msra.mxu0 %v170
  %195 = vmatprep.subr.bf16.mxu0 0
  %196 = vmatpush1.bf16.msra.mxu0 0
  %197 = vmatprep.subr.bf16.mxu0 0
  %198 = vmatpush1.bf16.msra.mxu0 0
  %199 = vmatprep.subr.bf16.mxu0 0
  %200 = vmatpush1.bf16.msra.mxu0 0
  %201 = vmatprep.subr.bf16.mxu0 0
  %202 = vmatpush1.bf16.msra.mxu0 0
  %203 = vmatprep.subr.bf16.mxu0 0
  %204 = vmatpush1.bf16.msra.mxu0 0
  %205 = vmatprep.subr.bf16.mxu0 0
  %206 = vmatpush1.bf16.msra.mxu0 0
  %207 = vmatprep.subr.bf16.mxu0 0
  %208 = vmatpush1.bf16.msra.mxu0 0
  %209 = vmatprep.subr.bf16.mxu0 0
  %210 = vmatpush1.bf16.msra.mxu0 0
  %211 = vmatprep.mubr.bf16.mxu0 0
  %212 = vmatmul.mubr.bf16.gmra.mrb[0].mxu0 %v115
  %v213 = vpop.f32.mrb[0].mxu0
  %v214 = vadd.f32 0.0, %v213
  %v215 = vpop.f32.mrb[0].mxu0
  %v216 = vpop.f32.mrb[0].mxu0
  %v217 = vadd.f32 0.0, %v216
  %v218 = vpop.f32.mrb[0].mxu0
  %219 = vmatprep.mubr.bf16.mxu0 0
  %220 = vmatmul.mubr.bf16.gmra.mrb[0].mxu0 %v116
  %v221 = vpop.f32.mrb[0].mxu0
  %v222 = vadd.f32 0.0, %v221
  %v223 = vpop.f32.mrb[0].mxu0
  %v224 = vpop.f32.mrb[0].mxu0
  %v225 = vadd.f32 0.0, %v224
  %v226 = vpop.f32.mrb[0].mxu0
  %227 = vmatprep.mubr.bf16.mxu0 0
  %228 = vmatmul.mubr.bf16.gmra.mrb[0].mxu0 %v117
  %v229 = vpop.f32.mrb[0].mxu0
  %v230 = vadd.f32 0.0, %v229
  %v231 = vpop.f32.mrb[0].mxu0
  %v232 = vpop.f32.mrb[0].mxu0
  %v233 = vadd.f32 0.0, %v232
  %v234 = vpop.f32.mrb[0].mxu0
  %235 = vmatprep.mubr.bf16.mxu0 0
  %236 = vmatmul.mubr.bf16.gmra.mrb[0].mxu0 %v118
  %v237 = vpop.f32.mrb[0].mxu0
  %v238 = vadd.f32 0.0, %v237
  %v239 = vpop.f32.mrb[0].mxu0
  %v240 = vpop.f32.mrb[0].mxu0
  %v241 = vadd.f32 0.0, %v240
  %v242 = vpop.f32.mrb[0].mxu0
  %243 = vmatprep.mubr.bf16.mxu0 0
  %244 = vmatmul.mubr.bf16.gmra.mrb[0].mxu0 %v119
  %v245 = vpop.f32.mrb[0].mxu0
  %v246 = vadd.f32 0.0, %v245
  %v247 = vpop.f32.mrb[0].mxu0
  %v248 = vpop.f32.mrb[0].mxu0
  %v249 = vadd.f32 0.0, %v248
  %v250 = vpop.f32.mrb[0].mxu0
  %251 = vmatprep.mubr.bf16.mxu0 0
  %252 = vmatmul.mubr.bf16.gmra.mrb[0].mxu0 %v120
  %v253 = vpop.f32.mrb[0].mxu0
  %v254 = vadd.f32 0.0, %v253
  %v255 = vpop.f32.mrb[0].mxu0
  %v256 = vpop.f32.mrb[0].mxu0
  %v257 = vadd.f32 0.0, %v256
  %v258 = vpop.f32.mrb[0].mxu0
  %259 = vmatprep.mubr.bf16.mxu0 0
  %260 = vmatmul.mubr.bf16.gmra.mrb[0].mxu0 %v121
  %v261 = vpop.f32.mrb[0].mxu0
  %v262 = vadd.f32 0.0, %v261
  %v263 = vpop.f32.mrb[0].mxu0
  %v264 = vpop.f32.mrb[0].mxu0
  %v265 = vadd.f32 0.0, %v264
  %v266 = vpop.f32.mrb[0].mxu0
  %267 = vmatprep.mubr.bf16.mxu0 0
  %268 = vmatmul.mubr.bf16.gmra.mrb[0].mxu0 %v122
  %v269 = vpop.f32.mrb[0].mxu0
  %v270 = vadd.f32 0.0, %v269
  %v271 = vpop.f32.mrb[0].mxu0
  %v272 = vpop.f32.mrb[0].mxu0
  %v273 = vadd.f32 0.0, %v272
  %v274 = vpop.f32.mrb[0].mxu0
  %275 = vdwg.mxu0
  %v276 = vadd.f32 %v35, %v214
  %v277 = vadd.f32 %v36, %v217
  %v278 = vadd.f32 %v37, %v222
  %v279 = vadd.f32 %v38, %v225
  %v280 = vadd.f32 %v39, %v230
  %v281 = vadd.f32 %v40, %v233
  %v282 = vadd.f32 %v41, %v238
  %v283 = vadd.f32 %v42, %v241
  %v284 = vadd.f32 %v43, %v246
  %v285 = vadd.f32 %v44, %v249
  %v286 = vadd.f32 %v45, %v254
  %v287 = vadd.f32 %v46, %v257
  %v288 = vadd.f32 %v47, %v262
  %v289 = vadd.f32 %v48, %v265
  %v290 = vadd.f32 %v49, %v270
  %v291 = vadd.f32 %v50, %v273
  %292 = vst [vmem:[#allocation2] sm:$0xff] %v276
  %293 = vst [vmem:[#allocation2 + $0x8] sm:$0xff] %v277
  %294 = vst [vmem:[#allocation2 + $0x10] sm:$0xff] %v278
  %295 = vst [vmem:[#allocation2 + $0x18] sm:$0xff] %v279
  %296 = vst [vmem:[#allocation2 + $0x20] sm:$0xff] %v280
  %297 = vst [vmem:[#allocation2 + $0x28] sm:$0xff] %v281
  %298 = vst [vmem:[#allocation2 + $0x30] sm:$0xff] %v282
  %299 = vst [vmem:[#allocation2 + $0x38] sm:$0xff] %v283
  %300 = vst [vmem:[#allocation2 + $0x40] sm:$0xff] %v284
  %301 = vst [vmem:[#allocation2 + $0x48] sm:$0xff] %v285
  %302 = vst [vmem:[#allocation2 + $0x50] sm:$0xff] %v286
  %303 = vst [vmem:[#allocation2 + $0x58] sm:$0xff] %v287
  %304 = vst [vmem:[#allocation2 + $0x60] sm:$0xff] %v288
  %305 = vst [vmem:[#allocation2 + $0x68] sm:$0xff] %v289
  %306 = vst [vmem:[#allocation2 + $0x70] sm:$0xff] %v290
  %307 = vst [vmem:[#allocation2 + $0x78] sm:$0xff] %v291
  // Predicated region
  $region18: #{patch_embed_forward.16} parent=0 // pred_check
    %p308 = pneg %p15
  $region19: #{patch_embed_forward.16} parent=0 // pred_check_branch
    %310 = sbr.rel (%p308) target = $region21
  $region20: #{patch_embed_forward.16} parent=0 // pred_region
    %v311 = vld [vmem:[#allocation2] sm:$0xff]
    %v312 = vld [vmem:[#allocation2 + $0x8] sm:$0xff]
    %v313 = vld [vmem:[#allocation2 + $0x10] sm:$0xff]
    %v314 = vld [vmem:[#allocation2 + $0x18] sm:$0xff]
    %v315 = vld [vmem:[#allocation2 + $0x20] sm:$0xff]
    %v316 = vld [vmem:[#allocation2 + $0x28] sm:$0xff]
    %v317 = vld [vmem:[#allocation2 + $0x30] sm:$0xff]
    %v318 = vld [vmem:[#allocation2 + $0x38] sm:$0xff]
    %v319 = vld [vmem:[#allocation2 + $0x40] sm:$0xff]
    %v320 = vld [vmem:[#allocation2 + $0x48] sm:$0xff]
    %v321 = vld [vmem:[#allocation2 + $0x50] sm:$0xff]
    %v322 = vld [vmem:[#allocation2 + $0x58] sm:$0xff]
    %v323 = vld [vmem:[#allocation2 + $0x60] sm:$0xff]
    %v324 = vld [vmem:[#allocation2 + $0x68] sm:$0xff]
    %v325 = vld [vmem:[#allocation2 + $0x70] sm:$0xff]
    %v326 = vld [vmem:[#allocation2 + $0x78] sm:$0xff]
    %v327 = vld [vmem:[%s2] sm:$0x1]
    %v329 = vlaneseq
    %v330 = vshrl.u32 %v329, 7
    %v331 = vsub.s32 0, %v330
    %v332 = vrot.slane %v327, %v331
    %v334 = vadd.f32 %v311, %v332
    %v335 = vadd.f32 %v312, %v332
    %v336 = vadd.f32 %v313, %v332
    %v337 = vadd.f32 %v314, %v332
    %v338 = vadd.f32 %v315, %v332
    %v339 = vadd.f32 %v316, %v332
    %v340 = vadd.f32 %v317, %v332
    %v341 = vadd.f32 %v318, %v332
    %v342 = vadd.f32 %v319, %v332
    %v343 = vadd.f32 %v320, %v332
    %v344 = vadd.f32 %v321, %v332
    %v345 = vadd.f32 %v322, %v332
    %v346 = vadd.f32 %v323, %v332
    %v347 = vadd.f32 %v324, %v332
    %v348 = vadd.f32 %v325, %v332
    %v349 = vadd.f32 %v326, %v332
    %350 = vst [vmem:[%s3] sm:$0xff] %v334
    %351 = vst [vmem:[%s3 + $0x8] sm:$0xff] %v335
    %352 = vst [vmem:[%s3 + $0x10] sm:$0xff] %v336
    %353 = vst [vmem:[%s3 + $0x18] sm:$0xff] %v337
    %354 = vst [vmem:[%s3 + $0x20] sm:$0xff] %v338
    %355 = vst [vmem:[%s3 + $0x28] sm:$0xff] %v339
    %356 = vst [vmem:[%s3 + $0x30] sm:$0xff] %v340
    %357 = vst [vmem:[%s3 + $0x38] sm:$0xff] %v341
    %358 = vst [vmem:[%s3 + $0x40] sm:$0xff] %v342
    %359 = vst [vmem:[%s3 + $0x48] sm:$0xff] %v343
    %360 = vst [vmem:[%s3 + $0x50] sm:$0xff] %v344
    %361 = vst [vmem:[%s3 + $0x58] sm:$0xff] %v345
    %362 = vst [vmem:[%s3 + $0x60] sm:$0xff] %v346
    %363 = vst [vmem:[%s3 + $0x68] sm:$0xff] %v347
    %364 = vst [vmem:[%s3 + $0x70] sm:$0xff] %v348
    %365 = vst [vmem:[%s3 + $0x78] sm:$0xff] %v349
  $region21: #{patch_embed_forward.16} parent=0 // pred_fallthru
    _
  // Predicated region
  $region22: #{patch_embed_forward.16} parent=0 // pred_check
    _
  $region23: #{patch_embed_forward.16} parent=0 // pred_check_branch
    %367 = sbr.rel (0) target = $region25
  $region24: #{patch_embed_forward.16} parent=0 // pred_region
    _
  $region25: #{patch_embed_forward.16} parent=0 // pred_fallthru
    _
  // Predicated region
  $region26: #{patch_embed_forward.16} parent=0 // pred_check
    _
  $region27: #{patch_embed_forward.16} parent=0 // pred_check_branch
    %369 = sbr.rel (0) target = $region29
  $region28: #{patch_embed_forward.16} parent=0 // pred_region
    _
  $region29: #{patch_embed_forward.16} parent=0 // pred_fallthru
    _

// kernel: patch_embed_forward.19
$region0: #{patch_embed_forward.19}
  #allocation0 [shape = 'u32[]', space=smem, size = 0x4, offset = 0x4, fixed_abs, tag = 'smem constant byte address 0x4 - core index']
  #allocation1 [shape = 'u32[144,128]{1,0:T(1,128)}', space=vmem, size = 0x12000, scoped, tag = 'internal scratch']
  #allocation2 [shape = 'f32[128,128]{1,0:T(8,128)}', space=vmem, size = 0x10000, scoped, tag = 'scratch operand']
  %s0 = inlined_call_operand.vmem [shape: bf16[128,128], index: 0, kind: input, shape index: {}]
  %s1 = inlined_call_operand.vmem [shape: bf16[128,128], index: 1, kind: input, shape index: {}]
  %s2 = inlined_call_operand.vmem [shape: f32[1,128], index: 2, kind: input, shape index: {}]
  %s3 = inlined_call_operand.vmem [shape: f32[128,128], index: 3, kind: input, shape index: {}]
  %s4 = inlined_call_operand.vmem [shape: f32[128,128], index: 4, kind: output, shape index: {}]
  %s5 = sld [smem:[#allocation0]]
  $region34: #{patch_embed_forward.19} parent=0
    _
  %s7 = ssub.s32 1, %s5
  %s8 = scalar_select 0, %s7, %s5
  // Predicated region
  $region2: #{patch_embed_forward.19} parent=0 // pred_check
    _
  $region3: #{patch_embed_forward.19} parent=0 // pred_check_branch
    %10 = sbr.rel (0) target = $region5
  $region4: #{patch_embed_forward.19} parent=0 // pred_region
    _
  $region5: #{patch_embed_forward.19} parent=0 // pred_fallthru
    _
  // Predicated region
  $region6: #{patch_embed_forward.19} parent=0 // pred_check
    _
  $region7: #{patch_embed_forward.19} parent=0 // pred_check_branch
    %12 = sbr.rel (0) target = $region9
  $region8: #{patch_embed_forward.19} parent=0 // pred_region
    _
  $region9: #{patch_embed_forward.19} parent=0 // pred_fallthru
    _
  // Predicated region
  $region10: #{patch_embed_forward.19} parent=0 // pred_check
    _
  $region11: #{patch_embed_forward.19} parent=0 // pred_check_branch
    %14 = sbr.rel (0) target = $region13
  $region12: #{patch_embed_forward.19} parent=0 // pred_region
    _
  $region13: #{patch_embed_forward.19} parent=0 // pred_fallthru
    _
  // Predicated region
  $region14: #{patch_embed_forward.19} parent=0 // pred_check
    _
  $region15: #{patch_embed_forward.19} parent=0 // pred_check_branch
    %16 = sbr.rel (0) target = $region17
  $region16: #{patch_embed_forward.19} parent=0 // pred_region
    _
  $region17: #{patch_embed_forward.19} parent=0 // pred_fallthru
    _
  %p18 = scmp.eq.s32.totalorder 0, 0
  // Predicated region
  $region18: #{patch_embed_forward.19} parent=0 // pred_check
    %p19 = pneg %p18
  $region19: #{patch_embed_forward.19} parent=0 // pred_check_branch
    %21 = sbr.rel (%p19) target = $region21
  $region20: #{patch_embed_forward.19} parent=0 // pred_region
    %22 = vst [vmem:[#allocation2] sm:$0xff] 0.0
    %23 = vst [vmem:[#allocation2 + $0x8] sm:$0xff] 0.0
    %24 = vst [vmem:[#allocation2 + $0x10] sm:$0xff] 0.0
    %25 = vst [vmem:[#allocation2 + $0x18] sm:$0xff] 0.0
    %26 = vst [vmem:[#allocation2 + $0x20] sm:$0xff] 0.0
    %27 = vst [vmem:[#allocation2 + $0x28] sm:$0xff] 0.0
    %28 = vst [vmem:[#allocation2 + $0x30] sm:$0xff] 0.0
    %29 = vst [vmem:[#allocation2 + $0x38] sm:$0xff] 0.0
    %30 = vst [vmem:[#allocation2 + $0x40] sm:$0xff] 0.0
    %31 = vst [vmem:[#allocation2 + $0x48] sm:$0xff] 0.0
    %32 = vst [vmem:[#allocation2 + $0x50] sm:$0xff] 0.0
    %33 = vst [vmem:[#allocation2 + $0x58] sm:$0xff] 0.0
    %34 = vst [vmem:[#allocation2 + $0x60] sm:$0xff] 0.0
    %35 = vst [vmem:[#allocation2 + $0x68] sm:$0xff] 0.0
    %36 = vst [vmem:[#allocation2 + $0x70] sm:$0xff] 0.0
    %37 = vst [vmem:[#allocation2 + $0x78] sm:$0xff] 0.0
  $region21: #{patch_embed_forward.19} parent=0 // pred_fallthru
    _
  %v38 = vld [vmem:[#allocation2] sm:$0xff]
  %v39 = vld [vmem:[#allocation2 + $0x8] sm:$0xff]
  %v40 = vld [vmem:[#allocation2 + $0x10] sm:$0xff]
  %v41 = vld [vmem:[#allocation2 + $0x18] sm:$0xff]
  %v42 = vld [vmem:[#allocation2 + $0x20] sm:$0xff]
  %v43 = vld [vmem:[#allocation2 + $0x28] sm:$0xff]
  %v44 = vld [vmem:[#allocation2 + $0x30] sm:$0xff]
  %v45 = vld [vmem:[#allocation2 + $0x38] sm:$0xff]
  %v46 = vld [vmem:[#allocation2 + $0x40] sm:$0xff]
  %v47 = vld [vmem:[#allocation2 + $0x48] sm:$0xff]
  %v48 = vld [vmem:[#allocation2 + $0x50] sm:$0xff]
  %v49 = vld [vmem:[#allocation2 + $0x58] sm:$0xff]
  %v50 = vld [vmem:[#allocation2 + $0x60] sm:$0xff]
  %v51 = vld [vmem:[#allocation2 + $0x68] sm:$0xff]
  %v52 = vld [vmem:[#allocation2 + $0x70] sm:$0xff]
  %v53 = vld [vmem:[#allocation2 + $0x78] sm:$0xff]
  %v54 = vld [vmem:[%s0] sm:$0xf]
  %v55 = vld [vmem:[%s0 + $0x4] sm:$0xf]
  %v56 = vld [vmem:[%s0 + $0x8] sm:$0xf]
  %v57 = vld [vmem:[%s0 + $0xc] sm:$0xf]
  %v58 = vld [vmem:[%s0 + $0x10] sm:$0xf]
  %v59 = vld [vmem:[%s0 + $0x14] sm:$0xf]
  %v60 = vld [vmem:[%s0 + $0x18] sm:$0xf]
  %v61 = vld [vmem:[%s0 + $0x1c] sm:$0xf]
  %v62 = vld [vmem:[%s0 + $0x20] sm:$0xf]
  %v63 = vld [vmem:[%s0 + $0x24] sm:$0xf]
  %v64 = vld [vmem:[%s0 + $0x28] sm:$0xf]
  %v65 = vld [vmem:[%s0 + $0x2c] sm:$0xf]
  %v66 = vld [vmem:[%s0 + $0x30] sm:$0xf]
  %v67 = vld [vmem:[%s0 + $0x34] sm:$0xf]
  %v68 = vld [vmem:[%s0 + $0x38] sm:$0xf]
  %v69 = vld [vmem:[%s0 + $0x3c] sm:$0xf]
  %v70 = vld [vmem:[%s1] sm:$0xf]
  %v71 = vld [vmem:[%s1 + $0x4] sm:$0xf]
  %v72 = vld [vmem:[%s1 + $0x8] sm:$0xf]
  %v73 = vld [vmem:[%s1 + $0xc] sm:$0xf]
  %v74 = vld [vmem:[%s1 + $0x10] sm:$0xf]
  %v75 = vld [vmem:[%s1 + $0x14] sm:$0xf]
  %v76 = vld [vmem:[%s1 + $0x18] sm:$0xf]
  %v77 = vld [vmem:[%s1 + $0x1c] sm:$0xf]
  %v78 = vld [vmem:[%s1 + $0x20] sm:$0xf]
  %v79 = vld [vmem:[%s1 + $0x24] sm:$0xf]
  %v80 = vld [vmem:[%s1 + $0x28] sm:$0xf]
  %v81 = vld [vmem:[%s1 + $0x2c] sm:$0xf]
  %v82 = vld [vmem:[%s1 + $0x30] sm:$0xf]
  %v83 = vld [vmem:[%s1 + $0x34] sm:$0xf]
  %v84 = vld [vmem:[%s1 + $0x38] sm:$0xf]
  %v85 = vld [vmem:[%s1 + $0x3c] sm:$0xf]
  %v102 = vunpack.c.l.b16 %v54
  %v103 = vunpack.c.l.b16 %v55
  %v104 = vunpack.c.l.b16 %v56
  %v105 = vunpack.c.l.b16 %v57
  %v106 = vunpack.c.l.b16 %v58
  %v107 = vunpack.c.l.b16 %v59
  %v108 = vunpack.c.l.b16 %v60
  %v109 = vunpack.c.l.b16 %v61
  %v110 = vunpack.c.l.b16 %v62
  %v111 = vunpack.c.l.b16 %v63
  %v112 = vunpack.c.l.b16 %v64
  %v113 = vunpack.c.l.b16 %v65
  %v114 = vunpack.c.l.b16 %v66
  %v115 = vunpack.c.l.b16 %v67
  %v116 = vunpack.c.l.b16 %v68
  %v117 = vunpack.c.l.b16 %v69
  %v118 = vpack.c.b16 %v103, %v102
  %v119 = vpack.c.b16 %v105, %v104
  %v120 = vpack.c.b16 %v107, %v106
  %v121 = vpack.c.b16 %v109, %v108
  %v122 = vpack.c.b16 %v111, %v110
  %v123 = vpack.c.b16 %v113, %v112
  %v124 = vpack.c.b16 %v115, %v114
  %v125 = vpack.c.b16 %v117, %v116
  %v150 = vunpack.c.l.b16 %v70
  %v151 = vunpack.c.l.b16 %v71
  %v152 = vunpack.c.l.b16 %v72
  %v153 = vunpack.c.l.b16 %v73
  %v154 = vunpack.c.l.b16 %v74
  %v155 = vunpack.c.l.b16 %v75
  %v156 = vunpack.c.l.b16 %v76
  %v157 = vunpack.c.l.b16 %v77
  %v158 = vunpack.c.l.b16 %v78
  %v159 = vunpack.c.l.b16 %v79
  %v160 = vunpack.c.l.b16 %v80
  %v161 = vunpack.c.l.b16 %v81
  %v162 = vunpack.c.l.b16 %v82
  %v163 = vunpack.c.l.b16 %v83
  %v164 = vunpack.c.l.b16 %v84
  %v165 = vunpack.c.l.b16 %v85
  %v166 = vpack.c.b16 %v151, %v150
  %v167 = vpack.c.b16 %v153, %v152
  %v168 = vpack.c.b16 %v155, %v154
  %v169 = vpack.c.b16 %v157, %v156
  %v170 = vpack.c.b16 %v159, %v158
  %v171 = vpack.c.b16 %v161, %v160
  %v172 = vpack.c.b16 %v163, %v162
  %v173 = vpack.c.b16 %v165, %v164
  %182 = vmatprep.subr.bf16.mxu0 0
  %183 = vmatpush1.bf16.msra.mxu0 %v166
  %184 = vmatprep.subr.bf16.mxu0 0
  %185 = vmatpush1.bf16.msra.mxu0 %v167
  %186 = vmatprep.subr.bf16.mxu0 0
  %187 = vmatpush1.bf16.msra.mxu0 %v168
  %188 = vmatprep.subr.bf16.mxu0 0
  %189 = vmatpush1.bf16.msra.mxu0 %v169
  %190 = vmatprep.subr.bf16.mxu0 0
  %191 = vmatpush1.bf16.msra.mxu0 %v170
  %192 = vmatprep.subr.bf16.mxu0 0
  %193 = vmatpush1.bf16.msra.mxu0 %v171
  %194 = vmatprep.subr.bf16.mxu0 0
  %195 = vmatpush1.bf16.msra.mxu0 %v172
  %196 = vmatprep.subr.bf16.mxu0 0
  %197 = vmatpush1.bf16.msra.mxu0 %v173
  %198 = vmatprep.subr.bf16.mxu0 0
  %199 = vmatpush1.bf16.msra.mxu0 0
  %200 = vmatprep.subr.bf16.mxu0 0
  %201 = vmatpush1.bf16.msra.mxu0 0
  %202 = vmatprep.subr.bf16.mxu0 0
  %203 = vmatpush1.bf16.msra.mxu0 0
  %204 = vmatprep.subr.bf16.mxu0 0
  %205 = vmatpush1.bf16.msra.mxu0 0
  %206 = vmatprep.subr.bf16.mxu0 0
  %207 = vmatpush1.bf16.msra.mxu0 0
  %208 = vmatprep.subr.bf16.mxu0 0
  %209 = vmatpush1.bf16.msra.mxu0 0
  %210 = vmatprep.subr.bf16.mxu0 0
  %211 = vmatpush1.bf16.msra.mxu0 0
  %212 = vmatprep.subr.bf16.mxu0 0
  %213 = vmatpush1.bf16.msra.mxu0 0
  %214 = vmatprep.mubr.bf16.mxu0 0
  %215 = vmatmul.mubr.bf16.gmra.mrb[0].mxu0 %v118
  %v216 = vpop.f32.mrb[0].mxu0
  %v217 = vadd.f32 0.0, %v216
  %v218 = vpop.f32.mrb[0].mxu0
  %v219 = vpop.f32.mrb[0].mxu0
  %v220 = vadd.f32 0.0, %v219
  %v221 = vpop.f32.mrb[0].mxu0
  %222 = vmatprep.mubr.bf16.mxu0 0
  %223 = vmatmul.mubr.bf16.gmra.mrb[0].mxu0 %v119
  %v224 = vpop.f32.mrb[0].mxu0
  %v225 = vadd.f32 0.0, %v224
  %v226 = vpop.f32.mrb[0].mxu0
  %v227 = vpop.f32.mrb[0].mxu0
  %v228 = vadd.f32 0.0, %v227
  %v229 = vpop.f32.mrb[0].mxu0
  %230 = vmatprep.mubr.bf16.mxu0 0
  %231 = vmatmul.mubr.bf16.gmra.mrb[0].mxu0 %v120
  %v232 = vpop.f32.mrb[0].mxu0
  %v233 = vadd.f32 0.0, %v232
  %v234 = vpop.f32.mrb[0].mxu0
  %v235 = vpop.f32.mrb[0].mxu0
  %v236 = vadd.f32 0.0, %v235
  %v237 = vpop.f32.mrb[0].mxu0
  %238 = vmatprep.mubr.bf16.mxu0 0
  %239 = vmatmul.mubr.bf16.gmra.mrb[0].mxu0 %v121
  %v240 = vpop.f32.mrb[0].mxu0
  %v241 = vadd.f32 0.0, %v240
  %v242 = vpop.f32.mrb[0].mxu0
  %v243 = vpop.f32.mrb[0].mxu0
  %v244 = vadd.f32 0.0, %v243
  %v245 = vpop.f32.mrb[0].mxu0
  %246 = vmatprep.mubr.bf16.mxu0 0
  %247 = vmatmul.mubr.bf16.gmra.mrb[0].mxu0 %v122
  %v248 = vpop.f32.mrb[0].mxu0
  %v249 = vadd.f32 0.0, %v248
  %v250 = vpop.f32.mrb[0].mxu0
  %v251 = vpop.f32.mrb[0].mxu0
  %v252 = vadd.f32 0.0, %v251
  %v253 = vpop.f32.mrb[0].mxu0
  %254 = vmatprep.mubr.bf16.mxu0 0
  %255 = vmatmul.mubr.bf16.gmra.mrb[0].mxu0 %v123
  %v256 = vpop.f32.mrb[0].mxu0
  %v257 = vadd.f32 0.0, %v256
  %v258 = vpop.f32.mrb[0].mxu0
  %v259 = vpop.f32.mrb[0].mxu0
  %v260 = vadd.f32 0.0, %v259
  %v261 = vpop.f32.mrb[0].mxu0
  %262 = vmatprep.mubr.bf16.mxu0 0
  %263 = vmatmul.mubr.bf16.gmra.mrb[0].mxu0 %v124
  %v264 = vpop.f32.mrb[0].mxu0
  %v265 = vadd.f32 0.0, %v264
  %v266 = vpop.f32.mrb[0].mxu0
  %v267 = vpop.f32.mrb[0].mxu0
  %v268 = vadd.f32 0.0, %v267
  %v269 = vpop.f32.mrb[0].mxu0
  %270 = vmatprep.mubr.bf16.mxu0 0
  %271 = vmatmul.mubr.bf16.gmra.mrb[0].mxu0 %v125
  %v272 = vpop.f32.mrb[0].mxu0
  %v273 = vadd.f32 0.0, %v272
  %v274 = vpop.f32.mrb[0].mxu0
  %v275 = vpop.f32.mrb[0].mxu0
  %v276 = vadd.f32 0.0, %v275
  %v277 = vpop.f32.mrb[0].mxu0
  %278 = vdwg.mxu0
  %v279 = vadd.f32 %v38, %v217
  %v280 = vadd.f32 %v39, %v220
  %v281 = vadd.f32 %v40, %v225
  %v282 = vadd.f32 %v41, %v228
  %v283 = vadd.f32 %v42, %v233
  %v284 = vadd.f32 %v43, %v236
  %v285 = vadd.f32 %v44, %v241
  %v286 = vadd.f32 %v45, %v244
  %v287 = vadd.f32 %v46, %v249
  %v288 = vadd.f32 %v47, %v252
  %v289 = vadd.f32 %v48, %v257
  %v290 = vadd.f32 %v49, %v260
  %v291 = vadd.f32 %v50, %v265
  %v292 = vadd.f32 %v51, %v268
  %v293 = vadd.f32 %v52, %v273
  %v294 = vadd.f32 %v53, %v276
  %295 = vst [vmem:[#allocation2] sm:$0xff] %v279
  %296 = vst [vmem:[#allocation2 + $0x8] sm:$0xff] %v280
  %297 = vst [vmem:[#allocation2 + $0x10] sm:$0xff] %v281
  %298 = vst [vmem:[#allocation2 + $0x18] sm:$0xff] %v282
  %299 = vst [vmem:[#allocation2 + $0x20] sm:$0xff] %v283
  %300 = vst [vmem:[#allocation2 + $0x28] sm:$0xff] %v284
  %301 = vst [vmem:[#allocation2 + $0x30] sm:$0xff] %v285
  %302 = vst [vmem:[#allocation2 + $0x38] sm:$0xff] %v286
  %303 = vst [vmem:[#allocation2 + $0x40] sm:$0xff] %v287
  %304 = vst [vmem:[#allocation2 + $0x48] sm:$0xff] %v288
  %305 = vst [vmem:[#allocation2 + $0x50] sm:$0xff] %v289
  %306 = vst [vmem:[#allocation2 + $0x58] sm:$0xff] %v290
  %307 = vst [vmem:[#allocation2 + $0x60] sm:$0xff] %v291
  %308 = vst [vmem:[#allocation2 + $0x68] sm:$0xff] %v292
  %309 = vst [vmem:[#allocation2 + $0x70] sm:$0xff] %v293
  %310 = vst [vmem:[#allocation2 + $0x78] sm:$0xff] %v294
  // Predicated region
  $region22: #{patch_embed_forward.19} parent=0 // pred_check
    %p311 = pneg %p18
  $region23: #{patch_embed_forward.19} parent=0 // pred_check_branch
    %313 = sbr.rel (%p311) target = $region25
  $region24: #{patch_embed_forward.19} parent=0 // pred_region
    %v314 = vld [vmem:[#allocation2] sm:$0xff]
    %v315 = vld [vmem:[#allocation2 + $0x8] sm:$0xff]
    %v316 = vld [vmem:[#allocation2 + $0x10] sm:$0xff]
    %v317 = vld [vmem:[#allocation2 + $0x18] sm:$0xff]
    %v318 = vld [vmem:[#allocation2 + $0x20] sm:$0xff]
    %v319 = vld [vmem:[#allocation2 + $0x28] sm:$0xff]
    %v320 = vld [vmem:[#allocation2 + $0x30] sm:$0xff]
    %v321 = vld [vmem:[#allocation2 + $0x38] sm:$0xff]
    %v322 = vld [vmem:[#allocation2 + $0x40] sm:$0xff]
    %v323 = vld [vmem:[#allocation2 + $0x48] sm:$0xff]
    %v324 = vld [vmem:[#allocation2 + $0x50] sm:$0xff]
    %v325 = vld [vmem:[#allocation2 + $0x58] sm:$0xff]
    %v326 = vld [vmem:[#allocation2 + $0x60] sm:$0xff]
    %v327 = vld [vmem:[#allocation2 + $0x68] sm:$0xff]
    %v328 = vld [vmem:[#allocation2 + $0x70] sm:$0xff]
    %v329 = vld [vmem:[#allocation2 + $0x78] sm:$0xff]
    %v330 = vld [vmem:[%s2] sm:$0x1]
    %v332 = vlaneseq
    %v333 = vshrl.u32 %v332, 7
    %v334 = vsub.s32 0, %v333
    %v335 = vrot.slane %v330, %v334
    %v337 = vadd.f32 %v314, %v335
    %v338 = vadd.f32 %v315, %v335
    %v339 = vadd.f32 %v316, %v335
    %v340 = vadd.f32 %v317, %v335
    %v341 = vadd.f32 %v318, %v335
    %v342 = vadd.f32 %v319, %v335
    %v343 = vadd.f32 %v320, %v335
    %v344 = vadd.f32 %v321, %v335
    %v345 = vadd.f32 %v322, %v335
    %v346 = vadd.f32 %v323, %v335
    %v347 = vadd.f32 %v324, %v335
    %v348 = vadd.f32 %v325, %v335
    %v349 = vadd.f32 %v326, %v335
    %v350 = vadd.f32 %v327, %v335
    %v351 = vadd.f32 %v328, %v335
    %v352 = vadd.f32 %v329, %v335
    %v353 = vld [vmem:[%s3] sm:$0xff]
    %v354 = vld [vmem:[%s3 + $0x8] sm:$0xff]
    %v355 = vld [vmem:[%s3 + $0x10] sm:$0xff]
    %v356 = vld [vmem:[%s3 + $0x18] sm:$0xff]
    %v357 = vld [vmem:[%s3 + $0x20] sm:$0xff]
    %v358 = vld [vmem:[%s3 + $0x28] sm:$0xff]
    %v359 = vld [vmem:[%s3 + $0x30] sm:$0xff]
    %v360 = vld [vmem:[%s3 + $0x38] sm:$0xff]
    %v361 = vld [vmem:[%s3 + $0x40] sm:$0xff]
    %v362 = vld [vmem:[%s3 + $0x48] sm:$0xff]
    %v363 = vld [vmem:[%s3 + $0x50] sm:$0xff]
    %v364 = vld [vmem:[%s3 + $0x58] sm:$0xff]
    %v365 = vld [vmem:[%s3 + $0x60] sm:$0xff]
    %v366 = vld [vmem:[%s3 + $0x68] sm:$0xff]
    %v367 = vld [vmem:[%s3 + $0x70] sm:$0xff]
    %v368 = vld [vmem:[%s3 + $0x78] sm:$0xff]
    %v369 = vadd.f32 %v337, %v353
    %v370 = vadd.f32 %v338, %v354
    %v371 = vadd.f32 %v339, %v355
    %v372 = vadd.f32 %v340, %v356
    %v373 = vadd.f32 %v341, %v357
    %v374 = vadd.f32 %v342, %v358
    %v375 = vadd.f32 %v343, %v359
    %v376 = vadd.f32 %v344, %v360
    %v377 = vadd.f32 %v345, %v361
    %v378 = vadd.f32 %v346, %v362
    %v379 = vadd.f32 %v347, %v363
    %v380 = vadd.f32 %v348, %v364
    %v381 = vadd.f32 %v349, %v365
    %v382 = vadd.f32 %v350, %v366
    %v383 = vadd.f32 %v351, %v367
    %v384 = vadd.f32 %v352, %v368
    %v385 = vmax.f32 %v369, 0.0
    %v386 = vmax.f32 %v370, 0.0
    %v387 = vmax.f32 %v371, 0.0
    %v388 = vmax.f32 %v372, 0.0
    %v389 = vmax.f32 %v373, 0.0
    %v390 = vmax.f32 %v374, 0.0
    %v391 = vmax.f32 %v375, 0.0
    %v392 = vmax.f32 %v376, 0.0
    %v393 = vmax.f32 %v377, 0.0
    %v394 = vmax.f32 %v378, 0.0
    %v395 = vmax.f32 %v379, 0.0
    %v396 = vmax.f32 %v380, 0.0
    %v397 = vmax.f32 %v381, 0.0
    %v398 = vmax.f32 %v382, 0.0
    %v399 = vmax.f32 %v383, 0.0
    %v400 = vmax.f32 %v384, 0.0
    %401 = vst [vmem:[%s4] sm:$0xff] %v385
    %402 = vst [vmem:[%s4 + $0x8] sm:$0xff] %v386
    %403 = vst [vmem:[%s4 + $0x10] sm:$0xff] %v387
    %404 = vst [vmem:[%s4 + $0x18] sm:$0xff] %v388
    %405 = vst [vmem:[%s4 + $0x20] sm:$0xff] %v389
    %406 = vst [vmem:[%s4 + $0x28] sm:$0xff] %v390
    %407 = vst [vmem:[%s4 + $0x30] sm:$0xff] %v391
    %408 = vst [vmem:[%s4 + $0x38] sm:$0xff] %v392
    %409 = vst [vmem:[%s4 + $0x40] sm:$0xff] %v393
    %410 = vst [vmem:[%s4 + $0x48] sm:$0xff] %v394
    %411 = vst [vmem:[%s4 + $0x50] sm:$0xff] %v395
    %412 = vst [vmem:[%s4 + $0x58] sm:$0xff] %v396
    %413 = vst [vmem:[%s4 + $0x60] sm:$0xff] %v397
    %414 = vst [vmem:[%s4 + $0x68] sm:$0xff] %v398
    %415 = vst [vmem:[%s4 + $0x70] sm:$0xff] %v399
    %416 = vst [vmem:[%s4 + $0x78] sm:$0xff] %v400
  $region25: #{patch_embed_forward.19} parent=0 // pred_fallthru
    _
  // Predicated region
  $region26: #{patch_embed_forward.19} parent=0 // pred_check
    _
  $region27: #{patch_embed_forward.19} parent=0 // pred_check_branch
    %418 = sbr.rel (0) target = $region29
  $region28: #{patch_embed_forward.19} parent=0 // pred_region
    _
  $region29: #{patch_embed_forward.19} parent=0 // pred_fallthru
    _
  // Predicated region
  $region30: #{patch_embed_forward.19} parent=0 // pred_check
    _
  $region31: #{patch_embed_forward.19} parent=0 // pred_check_branch
    %420 = sbr.rel (0) target = $region33
  $region32: #{patch_embed_forward.19} parent=0 // pred_region
    _
  $region33: #{patch_embed_forward.19} parent=0 // pred_fallthru
    _

// kernel: patch_embed_forward.22
$region0: #{patch_embed_forward.22}
  #allocation0 [shape = 'u32[]', space=smem, size = 0x4, offset = 0x4, fixed_abs, tag = 'smem constant byte address 0x4 - core index']
  #allocation1 [shape = 'u32[144,128]{1,0:T(1,128)}', space=vmem, size = 0x12000, scoped, tag = 'internal scratch']
  #allocation2 [shape = 'f32[32,128]{1,0:T(8,128)}', space=vmem, size = 0x4000, scoped, tag = 'scratch operand']
  %s0 = inlined_call_operand.vmem [shape: bf16[32,256], index: 0, kind: input, shape index: {}]
  %s1 = inlined_call_operand.vmem [shape: bf16[256,128], index: 1, kind: input, shape index: {}]
  %s2 = inlined_call_operand.vmem [shape: f32[1,128], index: 2, kind: input, shape index: {}]
  %s3 = inlined_call_operand.vmem [shape: f32[32,128], index: 3, kind: output, shape index: {}]
  %s4 = sld [smem:[#allocation0]]
  $region30: #{patch_embed_forward.22} parent=0
    _
  %s6 = ssub.s32 1, %s4
  %s7 = scalar_select 0, %s6, %s4
  // Predicated region
  $region2: #{patch_embed_forward.22} parent=0 // pred_check
    _
  $region3: #{patch_embed_forward.22} parent=0 // pred_check_branch
    %9 = sbr.rel (0) target = $region5
  $region4: #{patch_embed_forward.22} parent=0 // pred_region
    _
  $region5: #{patch_embed_forward.22} parent=0 // pred_fallthru
    _
  // Predicated region
  $region6: #{patch_embed_forward.22} parent=0 // pred_check
    _
  $region7: #{patch_embed_forward.22} parent=0 // pred_check_branch
    %11 = sbr.rel (0) target = $region9
  $region8: #{patch_embed_forward.22} parent=0 // pred_region
    _
  $region9: #{patch_embed_forward.22} parent=0 // pred_fallthru
    _
  // Predicated region
  $region10: #{patch_embed_forward.22} parent=0 // pred_check
    _
  $region11: #{patch_embed_forward.22} parent=0 // pred_check_branch
    %13 = sbr.rel (0) target = $region13
  $region12: #{patch_embed_forward.22} parent=0 // pred_region
    _
  $region13: #{patch_embed_forward.22} parent=0 // pred_fallthru
    _
  %p15 = scmp.eq.s32.totalorder 0, 0
  // Predicated region
  $region14: #{patch_embed_forward.22} parent=0 // pred_check
    %p16 = pneg %p15
  $region15: #{patch_embed_forward.22} parent=0 // pred_check_branch
    %18 = sbr.rel (%p16) target = $region17
  $region16: #{patch_embed_forward.22} parent=0 // pred_region
    %19 = vst [vmem:[#allocation2] sm:$0xff] 0.0
    %20 = vst [vmem:[#allocation2 + $0x8] sm:$0xff] 0.0
    %21 = vst [vmem:[#allocation2 + $0x10] sm:$0xff] 0.0
    %22 = vst [vmem:[#allocation2 + $0x18] sm:$0xff] 0.0
  $region17: #{patch_embed_forward.22} parent=0 // pred_fallthru
    _
  %v23 = vld [vmem:[#allocation2] sm:$0xff]
  %v24 = vld [vmem:[#allocation2 + $0x8] sm:$0xff]
  %v25 = vld [vmem:[#allocation2 + $0x10] sm:$0xff]
  %v26 = vld [vmem:[#allocation2 + $0x18] sm:$0xff]
  %v27 = vld [vmem:[%s0] sm:$0xff]
  %v28 = vld [vmem:[%s0 + $0x8] sm:$0xff]
  %v29 = vld [vmem:[%s0 + $0x10] sm:$0xff]
  %v30 = vld [vmem:[%s0 + $0x18] sm:$0xff]
  %v31 = vld [vmem:[%s1] sm:$0xf]
  %v32 = vld [vmem:[%s1 + $0x4] sm:$0xf]
  %v33 = vld [vmem:[%s1 + $0x8] sm:$0xf]
  %v34 = vld [vmem:[%s1 + $0xc] sm:$0xf]
  %v35 = vld [vmem:[%s1 + $0x10] sm:$0xf]
  %v36 = vld [vmem:[%s1 + $0x14] sm:$0xf]
  %v37 = vld [vmem:[%s1 + $0x18] sm:$0xf]
  %v38 = vld [vmem:[%s1 + $0x1c] sm:$0xf]
  %v39 = vld [vmem:[%s1 + $0x20] sm:$0xf]
  %v40 = vld [vmem:[%s1 + $0x24] sm:$0xf]
  %v41 = vld [vmem:[%s1 + $0x28] sm:$0xf]
  %v42 = vld [vmem:[%s1 + $0x2c] sm:$0xf]
  %v43 = vld [vmem:[%s1 + $0x30] sm:$0xf]
  %v44 = vld [vmem:[%s1 + $0x34] sm:$0xf]
  %v45 = vld [vmem:[%s1 + $0x38] sm:$0xf]
  %v46 = vld [vmem:[%s1 + $0x3c] sm:$0xf]
  %v47 = vld [vmem:[%s1 + $0x40] sm:$0xf]
  %v48 = vld [vmem:[%s1 + $0x44] sm:$0xf]
  %v49 = vld [vmem:[%s1 + $0x48] sm:$0xf]
  %v50 = vld [vmem:[%s1 + $0x4c] sm:$0xf]
  %v51 = vld [vmem:[%s1 + $0x50] sm:$0xf]
  %v52 = vld [vmem:[%s1 + $0x54] sm:$0xf]
  %v53 = vld [vmem:[%s1 + $0x58] sm:$0xf]
  %v54 = vld [vmem:[%s1 + $0x5c] sm:$0xf]
  %v55 = vld [vmem:[%s1 + $0x60] sm:$0xf]
  %v56 = vld [vmem:[%s1 + $0x64] sm:$0xf]
  %v57 = vld [vmem:[%s1 + $0x68] sm:$0xf]
  %v58 = vld [vmem:[%s1 + $0x6c] sm:$0xf]
  %v59 = vld [vmem:[%s1 + $0x70] sm:$0xf]
  %v60 = vld [vmem:[%s1 + $0x74] sm:$0xf]
  %v61 = vld [vmem:[%s1 + $0x78] sm:$0xf]
  %v62 = vld [vmem:[%s1 + $0x7c] sm:$0xf]
  %v67 = vunpack.c.l.b16 %v27
  %v68 = vunpack.c.h.b16 %v27
  %v69 = vunpack.c.l.b16 %v28
  %v70 = vunpack.c.h.b16 %v28
  %v71 = vunpack.c.l.b16 %v29
  %v72 = vunpack.c.h.b16 %v29
  %v73 = vunpack.c.l.b16 %v30
  %v74 = vunpack.c.h.b16 %v30
  %v75 = vpack.c.b16 %v69, %v67
  %v76 = vpack.c.b16 %v70, %v68
  %v77 = vpack.c.b16 %v73, %v71
  %v78 = vpack.c.b16 %v74, %v72
  %v115 = vunpack.c.l.b16 %v31
  %v116 = vunpack.c.l.b16 %v32
  %v117 = vunpack.c.l.b16 %v33
  %v118 = vunpack.c.l.b16 %v34
  %v119 = vunpack.c.l.b16 %v35
  %v120 = vunpack.c.l.b16 %v36
  %v121 = vunpack.c.l.b16 %v37
  %v122 = vunpack.c.l.b16 %v38
  %v123 = vunpack.c.l.b16 %v39
  %v124 = vunpack.c.l.b16 %v40
  %v125 = vunpack.c.l.b16 %v41
  %v126 = vunpack.c.l.b16 %v42
  %v127 = vunpack.c.l.b16 %v43
  %v128 = vunpack.c.l.b16 %v44
  %v129 = vunpack.c.l.b16 %v45
  %v130 = vunpack.c.l.b16 %v46
  %v131 = vunpack.c.l.b16 %v47
  %v132 = vunpack.c.l.b16 %v48
  %v133 = vunpack.c.l.b16 %v49
  %v134 = vunpack.c.l.b16 %v50
  %v135 = vunpack.c.l.b16 %v51
  %v136 = vunpack.c.l.b16 %v52
  %v137 = vunpack.c.l.b16 %v53
  %v138 = vunpack.c.l.b16 %v54
  %v139 = vunpack.c.l.b16 %v55
  %v140 = vunpack.c.l.b16 %v56
  %v141 = vunpack.c.l.b16 %v57
  %v142 = vunpack.c.l.b16 %v58
  %v143 = vunpack.c.l.b16 %v59
  %v144 = vunpack.c.l.b16 %v60
  %v145 = vunpack.c.l.b16 %v61
  %v146 = vunpack.c.l.b16 %v62
  %v147 = vpack.c.b16 %v116, %v115
  %v148 = vpack.c.b16 %v118, %v117
  %v149 = vpack.c.b16 %v120, %v119
  %v150 = vpack.c.b16 %v122, %v121
  %v151 = vpack.c.b16 %v124, %v123
  %v152 = vpack.c.b16 %v126, %v125
  %v153 = vpack.c.b16 %v128, %v127
  %v154 = vpack.c.b16 %v130, %v129
  %v155 = vpack.c.b16 %v132, %v131
  %v156 = vpack.c.b16 %v134, %v133
  %v157 = vpack.c.b16 %v136, %v135
  %v158 = vpack.c.b16 %v138, %v137
  %v159 = vpack.c.b16 %v140, %v139
  %v160 = vpack.c.b16 %v142, %v141
  %v161 = vpack.c.b16 %v144, %v143
  %v162 = vpack.c.b16 %v146, %v145
  %179 = vmatprep.subr.bf16.mxu0 0
  %180 = vmatpush1.bf16.msra.mxu0 %v147
  %181 = vmatprep.subr.bf16.mxu0 0
  %182 = vmatpush1.bf16.msra.mxu0 %v148
  %183 = vmatprep.subr.bf16.mxu0 0
  %184 = vmatpush1.bf16.msra.mxu0 %v149
  %185 = vmatprep.subr.bf16.mxu0 0
  %186 = vmatpush1.bf16.msra.mxu0 %v150
  %187 = vmatprep.subr.bf16.mxu0 0
  %188 = vmatpush1.bf16.msra.mxu0 %v151
  %189 = vmatprep.subr.bf16.mxu0 0
  %190 = vmatpush1.bf16.msra.mxu0 %v152
  %191 = vmatprep.subr.bf16.mxu0 0
  %192 = vmatpush1.bf16.msra.mxu0 %v153
  %193 = vmatprep.subr.bf16.mxu0 0
  %194 = vmatpush1.bf16.msra.mxu0 %v154
  %195 = vmatprep.subr.bf16.mxu0 0
  %196 = vmatpush1.bf16.msra.mxu0 %v155
  %197 = vmatprep.subr.bf16.mxu0 0
  %198 = vmatpush1.bf16.msra.mxu0 %v156
  %199 = vmatprep.subr.bf16.mxu0 0
  %200 = vmatpush1.bf16.msra.mxu0 %v157
  %201 = vmatprep.subr.bf16.mxu0 0
  %202 = vmatpush1.bf16.msra.mxu0 %v158
  %203 = vmatprep.subr.bf16.mxu0 0
  %204 = vmatpush1.bf16.msra.mxu0 %v159
  %205 = vmatprep.subr.bf16.mxu0 0
  %206 = vmatpush1.bf16.msra.mxu0 %v160
  %207 = vmatprep.subr.bf16.mxu0 0
  %208 = vmatpush1.bf16.msra.mxu0 %v161
  %209 = vmatprep.subr.bf16.mxu0 0
  %210 = vmatpush1.bf16.msra.mxu0 %v162
  %211 = vmatprep.mubr.bf16.mxu0 %v76
  %212 = vmatmul.mubr.bf16.gmra.mrb[0].mxu0 %v75
  %v213 = vpop.f32.mrb[0].mxu0
  %v214 = vadd.f32 0.0, %v213
  %v215 = vpop.f32.mrb[0].mxu0
  %v216 = vpop.f32.mrb[0].mxu0
  %v217 = vadd.f32 0.0, %v216
  %v218 = vpop.f32.mrb[0].mxu0
  %219 = vmatprep.mubr.bf16.mxu0 %v78
  %220 = vmatmul.mubr.bf16.gmra.mrb[0].mxu0 %v77
  %v221 = vpop.f32.mrb[0].mxu0
  %v222 = vadd.f32 0.0, %v221
  %v223 = vpop.f32.mrb[0].mxu0
  %v224 = vpop.f32.mrb[0].mxu0
  %v225 = vadd.f32 0.0, %v224
  %v226 = vpop.f32.mrb[0].mxu0
  %227 = vdwg.mxu0
  %v228 = vadd.f32 %v23, %v214
  %v229 = vadd.f32 %v24, %v217
  %v230 = vadd.f32 %v25, %v222
  %v231 = vadd.f32 %v26, %v225
  %232 = vst [vmem:[#allocation2] sm:$0xff] %v228
  %233 = vst [vmem:[#allocation2 + $0x8] sm:$0xff] %v229
  %234 = vst [vmem:[#allocation2 + $0x10] sm:$0xff] %v230
  %235 = vst [vmem:[#allocation2 + $0x18] sm:$0xff] %v231
  // Predicated region
  $region18: #{patch_embed_forward.22} parent=0 // pred_check
    %p236 = pneg %p15
  $region19: #{patch_embed_forward.22} parent=0 // pred_check_branch
    %238 = sbr.rel (%p236) target = $region21
  $region20: #{patch_embed_forward.22} parent=0 // pred_region
    %v239 = vld [vmem:[#allocation2] sm:$0xff]
    %v240 = vld [vmem:[#allocation2 + $0x8] sm:$0xff]
    %v241 = vld [vmem:[#allocation2 + $0x10] sm:$0xff]
    %v242 = vld [vmem:[#allocation2 + $0x18] sm:$0xff]
    %v243 = vld [vmem:[%s2] sm:$0x1]
    %v245 = vlaneseq
    %v246 = vshrl.u32 %v245, 7
    %v247 = vsub.s32 0, %v246
    %v248 = vrot.slane %v243, %v247
    %v250 = vadd.f32 %v239, %v248
    %v251 = vadd.f32 %v240, %v248
    %v252 = vadd.f32 %v241, %v248
    %v253 = vadd.f32 %v242, %v248
    %v254 = vmax.f32 %v250, 0.0
    %v255 = vmax.f32 %v251, 0.0
    %v256 = vmax.f32 %v252, 0.0
    %v257 = vmax.f32 %v253, 0.0
    %258 = vst [vmem:[%s3] sm:$0xff] %v254
    %259 = vst [vmem:[%s3 + $0x8] sm:$0xff] %v255
    %260 = vst [vmem:[%s3 + $0x10] sm:$0xff] %v256
    %261 = vst [vmem:[%s3 + $0x18] sm:$0xff] %v257
  $region21: #{patch_embed_forward.22} parent=0 // pred_fallthru
    _
  // Predicated region
  $region22: #{patch_embed_forward.22} parent=0 // pred_check
    _
  $region23: #{patch_embed_forward.22} parent=0 // pred_check_branch
    %263 = sbr.rel (0) target = $region25
  $region24: #{patch_embed_forward.22} parent=0 // pred_region
    _
  $region25: #{patch_embed_forward.22} parent=0 // pred_fallthru
    _
  // Predicated region
  $region26: #{patch_embed_forward.22} parent=0 // pred_check
    _
  $region27: #{patch_embed_forward.22} parent=0 // pred_check_branch
    %265 = sbr.rel (0) target = $region29
  $region28: #{patch_embed_forward.22} parent=0 // pred_region
    _
  $region29: #{patch_embed_forward.22} parent=0 // pred_fallthru
    _

// kernel: patch_embed_forward.20
$region0: #{patch_embed_forward.20}
  #allocation0 [shape = 'u32[]', space=smem, size = 0x4, offset = 0x4, fixed_abs, tag = 'smem constant byte address 0x4 - core index']
  #allocation1 [shape = 'u32[144,128]{1,0:T(1,128)}', space=vmem, size = 0x12000, scoped, tag = 'internal scratch']
  #allocation2 [shape = 'f32[32,128]{1,0:T(8,128)}', space=vmem, size = 0x4000, scoped, tag = 'scratch operand']
  %s0 = inlined_call_operand.vmem [shape: bf16[32,128], index: 0, kind: input, shape index: {}]
  %s1 = inlined_call_operand.vmem [shape: bf16[128,128], index: 1, kind: input, shape index: {}]
  %s2 = inlined_call_operand.vmem [shape: f32[1,128], index: 2, kind: input, shape index: {}]
  %s3 = inlined_call_operand.vmem [shape: f32[32,128], index: 3, kind: output, shape index: {}]
  %s4 = sld [smem:[#allocation0]]
  $region30: #{patch_embed_forward.20} parent=0
    _
  %s6 = ssub.s32 1, %s4
  %s7 = scalar_select 0, %s6, %s4
  // Predicated region
  $region2: #{patch_embed_forward.20} parent=0 // pred_check
    _
  $region3: #{patch_embed_forward.20} parent=0 // pred_check_branch
    %9 = sbr.rel (0) target = $region5
  $region4: #{patch_embed_forward.20} parent=0 // pred_region
    _
  $region5: #{patch_embed_forward.20} parent=0 // pred_fallthru
    _
  // Predicated region
  $region6: #{patch_embed_forward.20} parent=0 // pred_check
    _
  $region7: #{patch_embed_forward.20} parent=0 // pred_check_branch
    %11 = sbr.rel (0) target = $region9
  $region8: #{patch_embed_forward.20} parent=0 // pred_region
    _
  $region9: #{patch_embed_forward.20} parent=0 // pred_fallthru
    _
  // Predicated region
  $region10: #{patch_embed_forward.20} parent=0 // pred_check
    _
  $region11: #{patch_embed_forward.20} parent=0 // pred_check_branch
    %13 = sbr.rel (0) target = $region13
  $region12: #{patch_embed_forward.20} parent=0 // pred_region
    _
  $region13: #{patch_embed_forward.20} parent=0 // pred_fallthru
    _
  %p15 = scmp.eq.s32.totalorder 0, 0
  // Predicated region
  $region14: #{patch_embed_forward.20} parent=0 // pred_check
    %p16 = pneg %p15
  $region15: #{patch_embed_forward.20} parent=0 // pred_check_branch
    %18 = sbr.rel (%p16) target = $region17
  $region16: #{patch_embed_forward.20} parent=0 // pred_region
    %19 = vst [vmem:[#allocation2] sm:$0xff] 0.0
    %20 = vst [vmem:[#allocation2 + $0x8] sm:$0xff] 0.0
    %21 = vst [vmem:[#allocation2 + $0x10] sm:$0xff] 0.0
    %22 = vst [vmem:[#allocation2 + $0x18] sm:$0xff] 0.0
  $region17: #{patch_embed_forward.20} parent=0 // pred_fallthru
    _
  %v23 = vld [vmem:[#allocation2] sm:$0xff]
  %v24 = vld [vmem:[#allocation2 + $0x8] sm:$0xff]
  %v25 = vld [vmem:[#allocation2 + $0x10] sm:$0xff]
  %v26 = vld [vmem:[#allocation2 + $0x18] sm:$0xff]
  %v27 = vld [vmem:[%s0] sm:$0xf]
  %v28 = vld [vmem:[%s0 + $0x4] sm:$0xf]
  %v29 = vld [vmem:[%s0 + $0x8] sm:$0xf]
  %v30 = vld [vmem:[%s0 + $0xc] sm:$0xf]
  %v31 = vld [vmem:[%s1] sm:$0xf]
  %v32 = vld [vmem:[%s1 + $0x4] sm:$0xf]
  %v33 = vld [vmem:[%s1 + $0x8] sm:$0xf]
  %v34 = vld [vmem:[%s1 + $0xc] sm:$0xf]
  %v35 = vld [vmem:[%s1 + $0x10] sm:$0xf]
  %v36 = vld [vmem:[%s1 + $0x14] sm:$0xf]
  %v37 = vld [vmem:[%s1 + $0x18] sm:$0xf]
  %v38 = vld [vmem:[%s1 + $0x1c] sm:$0xf]
  %v39 = vld [vmem:[%s1 + $0x20] sm:$0xf]
  %v40 = vld [vmem:[%s1 + $0x24] sm:$0xf]
  %v41 = vld [vmem:[%s1 + $0x28] sm:$0xf]
  %v42 = vld [vmem:[%s1 + $0x2c] sm:$0xf]
  %v43 = vld [vmem:[%s1 + $0x30] sm:$0xf]
  %v44 = vld [vmem:[%s1 + $0x34] sm:$0xf]
  %v45 = vld [vmem:[%s1 + $0x38] sm:$0xf]
  %v46 = vld [vmem:[%s1 + $0x3c] sm:$0xf]
  %v51 = vunpack.c.l.b16 %v27
  %v52 = vunpack.c.l.b16 %v28
  %v53 = vunpack.c.l.b16 %v29
  %v54 = vunpack.c.l.b16 %v30
  %v55 = vpack.c.b16 %v52, %v51
  %v56 = vpack.c.b16 %v54, %v53
  %v75 = vunpack.c.l.b16 %v31
  %v76 = vunpack.c.l.b16 %v32
  %v77 = vunpack.c.l.b16 %v33
  %v78 = vunpack.c.l.b16 %v34
  %v79 = vunpack.c.l.b16 %v35
  %v80 = vunpack.c.l.b16 %v36
  %v81 = vunpack.c.l.b16 %v37
  %v82 = vunpack.c.l.b16 %v38
  %v83 = vunpack.c.l.b16 %v39
  %v84 = vunpack.c.l.b16 %v40
  %v85 = vunpack.c.l.b16 %v41
  %v86 = vunpack.c.l.b16 %v42
  %v87 = vunpack.c.l.b16 %v43
  %v88 = vunpack.c.l.b16 %v44
  %v89 = vunpack.c.l.b16 %v45
  %v90 = vunpack.c.l.b16 %v46
  %v91 = vpack.c.b16 %v76, %v75
  %v92 = vpack.c.b16 %v78, %v77
  %v93 = vpack.c.b16 %v80, %v79
  %v94 = vpack.c.b16 %v82, %v81
  %v95 = vpack.c.b16 %v84, %v83
  %v96 = vpack.c.b16 %v86, %v85
  %v97 = vpack.c.b16 %v88, %v87
  %v98 = vpack.c.b16 %v90, %v89
  %107 = vmatprep.subr.bf16.mxu0 0
  %108 = vmatpush1.bf16.msra.mxu0 %v91
  %109 = vmatprep.subr.bf16.mxu0 0
  %110 = vmatpush1.bf16.msra.mxu0 %v92
  %111 = vmatprep.subr.bf16.mxu0 0
  %112 = vmatpush1.bf16.msra.mxu0 %v93
  %113 = vmatprep.subr.bf16.mxu0 0
  %114 = vmatpush1.bf16.msra.mxu0 %v94
  %115 = vmatprep.subr.bf16.mxu0 0
  %116 = vmatpush1.bf16.msra.mxu0 %v95
  %117 = vmatprep.subr.bf16.mxu0 0
  %118 = vmatpush1.bf16.msra.mxu0 %v96
  %119 = vmatprep.subr.bf16.mxu0 0
  %120 = vmatpush1.bf16.msra.mxu0 %v97
  %121 = vmatprep.subr.bf16.mxu0 0
  %122 = vmatpush1.bf16.msra.mxu0 %v98
  %123 = vmatprep.subr.bf16.mxu0 0
  %124 = vmatpush1.bf16.msra.mxu0 0
  %125 = vmatprep.subr.bf16.mxu0 0
  %126 = vmatpush1.bf16.msra.mxu0 0
  %127 = vmatprep.subr.bf16.mxu0 0
  %128 = vmatpush1.bf16.msra.mxu0 0
  %129 = vmatprep.subr.bf16.mxu0 0
  %130 = vmatpush1.bf16.msra.mxu0 0
  %131 = vmatprep.subr.bf16.mxu0 0
  %132 = vmatpush1.bf16.msra.mxu0 0
  %133 = vmatprep.subr.bf16.mxu0 0
  %134 = vmatpush1.bf16.msra.mxu0 0
  %135 = vmatprep.subr.bf16.mxu0 0
  %136 = vmatpush1.bf16.msra.mxu0 0
  %137 = vmatprep.subr.bf16.mxu0 0
  %138 = vmatpush1.bf16.msra.mxu0 0
  %139 = vmatprep.mubr.bf16.mxu0 0
  %140 = vmatmul.mubr.bf16.gmra.mrb[0].mxu0 %v55
  %v141 = vpop.f32.mrb[0].mxu0
  %v142 = vadd.f32 0.0, %v141
  %v143 = vpop.f32.mrb[0].mxu0
  %v144 = vpop.f32.mrb[0].mxu0
  %v145 = vadd.f32 0.0, %v144
  %v146 = vpop.f32.mrb[0].mxu0
  %147 = vmatprep.mubr.bf16.mxu0 0
  %148 = vmatmul.mubr.bf16.gmra.mrb[0].mxu0 %v56
  %v149 = vpop.f32.mrb[0].mxu0
  %v150 = vadd.f32 0.0, %v149
  %v151 = vpop.f32.mrb[0].mxu0
  %v152 = vpop.f32.mrb[0].mxu0
  %v153 = vadd.f32 0.0, %v152
  %v154 = vpop.f32.mrb[0].mxu0
  %155 = vdwg.mxu0
  %v156 = vadd.f32 %v23, %v142
  %v157 = vadd.f32 %v24, %v145
  %v158 = vadd.f32 %v25, %v150
  %v159 = vadd.f32 %v26, %v153
  %160 = vst [vmem:[#allocation2] sm:$0xff] %v156
  %161 = vst [vmem:[#allocation2 + $0x8] sm:$0xff] %v157
  %162 = vst [vmem:[#allocation2 + $0x10] sm:$0xff] %v158
  %163 = vst [vmem:[#allocation2 + $0x18] sm:$0xff] %v159
  // Predicated region
  $region18: #{patch_embed_forward.20} parent=0 // pred_check
    %p164 = pneg %p15
  $region19: #{patch_embed_forward.20} parent=0 // pred_check_branch
    %166 = sbr.rel (%p164) target = $region21
  $region20: #{patch_embed_forward.20} parent=0 // pred_region
    %v167 = vld [vmem:[#allocation2] sm:$0xff]
    %v168 = vld [vmem:[#allocation2 + $0x8] sm:$0xff]
    %v169 = vld [vmem:[#allocation2 + $0x10] sm:$0xff]
    %v170 = vld [vmem:[#allocation2 + $0x18] sm:$0xff]
    %v171 = vld [vmem:[%s2] sm:$0x1]
    %v173 = vlaneseq
    %v174 = vshrl.u32 %v173, 7
    %v175 = vsub.s32 0, %v174
    %v176 = vrot.slane %v171, %v175
    %v178 = vadd.f32 %v167, %v176
    %v179 = vadd.f32 %v168, %v176
    %v180 = vadd.f32 %v169, %v176
    %v181 = vadd.f32 %v170, %v176
    %182 = vst [vmem:[%s3] sm:$0xff] %v178
    %183 = vst [vmem:[%s3 + $0x8] sm:$0xff] %v179
    %184 = vst [vmem:[%s3 + $0x10] sm:$0xff] %v180
    %185 = vst [vmem:[%s3 + $0x18] sm:$0xff] %v181
  $region21: #{patch_embed_forward.20} parent=0 // pred_fallthru
    _
  // Predicated region
  $region22: #{patch_embed_forward.20} parent=0 // pred_check
    _
  $region23: #{patch_embed_forward.20} parent=0 // pred_check_branch
    %187 = sbr.rel (0) target = $region25
  $region24: #{patch_embed_forward.20} parent=0 // pred_region
    _
  $region25: #{patch_embed_forward.20} parent=0 // pred_fallthru
    _
  // Predicated region
  $region26: #{patch_embed_forward.20} parent=0 // pred_check
    _
  $region27: #{patch_embed_forward.20} parent=0 // pred_check_branch
    %189 = sbr.rel (0) target = $region29
  $region28: #{patch_embed_forward.20} parent=0 // pred_region
    _
  $region29: #{patch_embed_forward.20} parent=0 // pred_fallthru
    _

// kernel: patch_embed_forward.23
$region0: #{patch_embed_forward.23}
  #allocation0 [shape = 'u32[]', space=smem, size = 0x4, offset = 0x4, fixed_abs, tag = 'smem constant byte address 0x4 - core index']
  #allocation1 [shape = 'u32[144,128]{1,0:T(1,128)}', space=vmem, size = 0x12000, scoped, tag = 'internal scratch']
  #allocation2 [shape = 'f32[32,128]{1,0:T(8,128)}', space=vmem, size = 0x4000, scoped, tag = 'scratch operand']
  %s0 = inlined_call_operand.vmem [shape: bf16[32,128], index: 0, kind: input, shape index: {}]
  %s1 = inlined_call_operand.vmem [shape: bf16[128,128], index: 1, kind: input, shape index: {}]
  %s2 = inlined_call_operand.vmem [shape: f32[1,128], index: 2, kind: input, shape index: {}]
  %s3 = inlined_call_operand.vmem [shape: f32[32,128], index: 3, kind: input, shape index: {}]
  %s4 = inlined_call_operand.vmem [shape: f32[32,128], index: 4, kind: output, shape index: {}]
  %s5 = sld [smem:[#allocation0]]
  $region34: #{patch_embed_forward.23} parent=0
    _
  %s7 = ssub.s32 1, %s5
  %s8 = scalar_select 0, %s7, %s5
  // Predicated region
  $region2: #{patch_embed_forward.23} parent=0 // pred_check
    _
  $region3: #{patch_embed_forward.23} parent=0 // pred_check_branch
    %10 = sbr.rel (0) target = $region5
  $region4: #{patch_embed_forward.23} parent=0 // pred_region
    _
  $region5: #{patch_embed_forward.23} parent=0 // pred_fallthru
    _
  // Predicated region
  $region6: #{patch_embed_forward.23} parent=0 // pred_check
    _
  $region7: #{patch_embed_forward.23} parent=0 // pred_check_branch
    %12 = sbr.rel (0) target = $region9
  $region8: #{patch_embed_forward.23} parent=0 // pred_region
    _
  $region9: #{patch_embed_forward.23} parent=0 // pred_fallthru
    _
  // Predicated region
  $region10: #{patch_embed_forward.23} parent=0 // pred_check
    _
  $region11: #{patch_embed_forward.23} parent=0 // pred_check_branch
    %14 = sbr.rel (0) target = $region13
  $region12: #{patch_embed_forward.23} parent=0 // pred_region
    _
  $region13: #{patch_embed_forward.23} parent=0 // pred_fallthru
    _
  // Predicated region
  $region14: #{patch_embed_forward.23} parent=0 // pred_check
    _
  $region15: #{patch_embed_forward.23} parent=0 // pred_check_branch
    %16 = sbr.rel (0) target = $region17
  $region16: #{patch_embed_forward.23} parent=0 // pred_region
    _
  $region17: #{patch_embed_forward.23} parent=0 // pred_fallthru
    _
  %p18 = scmp.eq.s32.totalorder 0, 0
  // Predicated region
  $region18: #{patch_embed_forward.23} parent=0 // pred_check
    %p19 = pneg %p18
  $region19: #{patch_embed_forward.23} parent=0 // pred_check_branch
    %21 = sbr.rel (%p19) target = $region21
  $region20: #{patch_embed_forward.23} parent=0 // pred_region
    %22 = vst [vmem:[#allocation2] sm:$0xff] 0.0
    %23 = vst [vmem:[#allocation2 + $0x8] sm:$0xff] 0.0
    %24 = vst [vmem:[#allocation2 + $0x10] sm:$0xff] 0.0
    %25 = vst [vmem:[#allocation2 + $0x18] sm:$0xff] 0.0
  $region21: #{patch_embed_forward.23} parent=0 // pred_fallthru
    _
  %v26 = vld [vmem:[#allocation2] sm:$0xff]
  %v27 = vld [vmem:[#allocation2 + $0x8] sm:$0xff]
  %v28 = vld [vmem:[#allocation2 + $0x10] sm:$0xff]
  %v29 = vld [vmem:[#allocation2 + $0x18] sm:$0xff]
  %v30 = vld [vmem:[%s0] sm:$0xf]
  %v31 = vld [vmem:[%s0 + $0x4] sm:$0xf]
  %v32 = vld [vmem:[%s0 + $0x8] sm:$0xf]
  %v33 = vld [vmem:[%s0 + $0xc] sm:$0xf]
  %v34 = vld [vmem:[%s1] sm:$0xf]
  %v35 = vld [vmem:[%s1 + $0x4] sm:$0xf]
  %v36 = vld [vmem:[%s1 + $0x8] sm:$0xf]
  %v37 = vld [vmem:[%s1 + $0xc] sm:$0xf]
  %v38 = vld [vmem:[%s1 + $0x10] sm:$0xf]
  %v39 = vld [vmem:[%s1 + $0x14] sm:$0xf]
  %v40 = vld [vmem:[%s1 + $0x18] sm:$0xf]
  %v41 = vld [vmem:[%s1 + $0x1c] sm:$0xf]
  %v42 = vld [vmem:[%s1 + $0x20] sm:$0xf]
  %v43 = vld [vmem:[%s1 + $0x24] sm:$0xf]
  %v44 = vld [vmem:[%s1 + $0x28] sm:$0xf]
  %v45 = vld [vmem:[%s1 + $0x2c] sm:$0xf]
  %v46 = vld [vmem:[%s1 + $0x30] sm:$0xf]
  %v47 = vld [vmem:[%s1 + $0x34] sm:$0xf]
  %v48 = vld [vmem:[%s1 + $0x38] sm:$0xf]
  %v49 = vld [vmem:[%s1 + $0x3c] sm:$0xf]
  %v54 = vunpack.c.l.b16 %v30
  %v55 = vunpack.c.l.b16 %v31
  %v56 = vunpack.c.l.b16 %v32
  %v57 = vunpack.c.l.b16 %v33
  %v58 = vpack.c.b16 %v55, %v54
  %v59 = vpack.c.b16 %v57, %v56
  %v78 = vunpack.c.l.b16 %v34
  %v79 = vunpack.c.l.b16 %v35
  %v80 = vunpack.c.l.b16 %v36
  %v81 = vunpack.c.l.b16 %v37
  %v82 = vunpack.c.l.b16 %v38
  %v83 = vunpack.c.l.b16 %v39
  %v84 = vunpack.c.l.b16 %v40
  %v85 = vunpack.c.l.b16 %v41
  %v86 = vunpack.c.l.b16 %v42
  %v87 = vunpack.c.l.b16 %v43
  %v88 = vunpack.c.l.b16 %v44
  %v89 = vunpack.c.l.b16 %v45
  %v90 = vunpack.c.l.b16 %v46
  %v91 = vunpack.c.l.b16 %v47
  %v92 = vunpack.c.l.b16 %v48
  %v93 = vunpack.c.l.b16 %v49
  %v94 = vpack.c.b16 %v79, %v78
  %v95 = vpack.c.b16 %v81, %v80
  %v96 = vpack.c.b16 %v83, %v82
  %v97 = vpack.c.b16 %v85, %v84
  %v98 = vpack.c.b16 %v87, %v86
  %v99 = vpack.c.b16 %v89, %v88
  %v100 = vpack.c.b16 %v91, %v90
  %v101 = vpack.c.b16 %v93, %v92
  %110 = vmatprep.subr.bf16.mxu0 0
  %111 = vmatpush1.bf16.msra.mxu0 %v94
  %112 = vmatprep.subr.bf16.mxu0 0
  %113 = vmatpush1.bf16.msra.mxu0 %v95
  %114 = vmatprep.subr.bf16.mxu0 0
  %115 = vmatpush1.bf16.msra.mxu0 %v96
  %116 = vmatprep.subr.bf16.mxu0 0
  %117 = vmatpush1.bf16.msra.mxu0 %v97
  %118 = vmatprep.subr.bf16.mxu0 0
  %119 = vmatpush1.bf16.msra.mxu0 %v98
  %120 = vmatprep.subr.bf16.mxu0 0
  %121 = vmatpush1.bf16.msra.mxu0 %v99
  %122 = vmatprep.subr.bf16.mxu0 0
  %123 = vmatpush1.bf16.msra.mxu0 %v100
  %124 = vmatprep.subr.bf16.mxu0 0
  %125 = vmatpush1.bf16.msra.mxu0 %v101
  %126 = vmatprep.subr.bf16.mxu0 0
  %127 = vmatpush1.bf16.msra.mxu0 0
  %128 = vmatprep.subr.bf16.mxu0 0
  %129 = vmatpush1.bf16.msra.mxu0 0
  %130 = vmatprep.subr.bf16.mxu0 0
  %131 = vmatpush1.bf16.msra.mxu0 0
  %132 = vmatprep.subr.bf16.mxu0 0
  %133 = vmatpush1.bf16.msra.mxu0 0
  %134 = vmatprep.subr.bf16.mxu0 0
  %135 = vmatpush1.bf16.msra.mxu0 0
  %136 = vmatprep.subr.bf16.mxu0 0
  %137 = vmatpush1.bf16.msra.mxu0 0
  %138 = vmatprep.subr.bf16.mxu0 0
  %139 = vmatpush1.bf16.msra.mxu0 0
  %140 = vmatprep.subr.bf16.mxu0 0
  %141 = vmatpush1.bf16.msra.mxu0 0
  %142 = vmatprep.mubr.bf16.mxu0 0
  %143 = vmatmul.mubr.bf16.gmra.mrb[0].mxu0 %v58
  %v144 = vpop.f32.mrb[0].mxu0
  %v145 = vadd.f32 0.0, %v144
  %v146 = vpop.f32.mrb[0].mxu0
  %v147 = vpop.f32.mrb[0].mxu0
  %v148 = vadd.f32 0.0, %v147
  %v149 = vpop.f32.mrb[0].mxu0
  %150 = vmatprep.mubr.bf16.mxu0 0
  %151 = vmatmul.mubr.bf16.gmra.mrb[0].mxu0 %v59
  %v152 = vpop.f32.mrb[0].mxu0
  %v153 = vadd.f32 0.0, %v152
  %v154 = vpop.f32.mrb[0].mxu0
  %v155 = vpop.f32.mrb[0].mxu0
  %v156 = vadd.f32 0.0, %v155
  %v157 = vpop.f32.mrb[0].mxu0
  %158 = vdwg.mxu0
  %v159 = vadd.f32 %v26, %v145
  %v160 = vadd.f32 %v27, %v148
  %v161 = vadd.f32 %v28, %v153
  %v162 = vadd.f32 %v29, %v156
  %163 = vst [vmem:[#allocation2] sm:$0xff] %v159
  %164 = vst [vmem:[#allocation2 + $0x8] sm:$0xff] %v160
  %165 = vst [vmem:[#allocation2 + $0x10] sm:$0xff] %v161
  %166 = vst [vmem:[#allocation2 + $0x18] sm:$0xff] %v162
  // Predicated region
  $region22: #{patch_embed_forward.23} parent=0 // pred_check
    %p167 = pneg %p18
  $region23: #{patch_embed_forward.23} parent=0 // pred_check_branch
    %169 = sbr.rel (%p167) target = $region25
  $region24: #{patch_embed_forward.23} parent=0 // pred_region
    %v170 = vld [vmem:[#allocation2] sm:$0xff]
    %v171 = vld [vmem:[#allocation2 + $0x8] sm:$0xff]
    %v172 = vld [vmem:[#allocation2 + $0x10] sm:$0xff]
    %v173 = vld [vmem:[#allocation2 + $0x18] sm:$0xff]
    %v174 = vld [vmem:[%s2] sm:$0x1]
    %v176 = vlaneseq
    %v177 = vshrl.u32 %v176, 7
    %v178 = vsub.s32 0, %v177
    %v179 = vrot.slane %v174, %v178
    %v181 = vadd.f32 %v170, %v179
    %v182 = vadd.f32 %v171, %v179
    %v183 = vadd.f32 %v172, %v179
    %v184 = vadd.f32 %v173, %v179
    %v185 = vld [vmem:[%s3] sm:$0xff]
    %v186 = vld [vmem:[%s3 + $0x8] sm:$0xff]
    %v187 = vld [vmem:[%s3 + $0x10] sm:$0xff]
    %v188 = vld [vmem:[%s3 + $0x18] sm:$0xff]
    %v189 = vadd.f32 %v181, %v185
    %v190 = vadd.f32 %v182, %v186
    %v191 = vadd.f32 %v183, %v187
    %v192 = vadd.f32 %v184, %v188
    %v193 = vmax.f32 %v189, 0.0
    %v194 = vmax.f32 %v190, 0.0
    %v195 = vmax.f32 %v191, 0.0
    %v196 = vmax.f32 %v192, 0.0
    %197 = vst [vmem:[%s4] sm:$0xff] %v193
    %198 = vst [vmem:[%s4 + $0x8] sm:$0xff] %v194
    %199 = vst [vmem:[%s4 + $0x10] sm:$0xff] %v195
    %200 = vst [vmem:[%s4 + $0x18] sm:$0xff] %v196
  $region25: #{patch_embed_forward.23} parent=0 // pred_fallthru
    _
  // Predicated region
  $region26: #{patch_embed_forward.23} parent=0 // pred_check
    _
  $region27: #{patch_embed_forward.23} parent=0 // pred_check_branch
    %202 = sbr.rel (0) target = $region29
  $region28: #{patch_embed_forward.23} parent=0 // pred_region
    _
  $region29: #{patch_embed_forward.23} parent=0 // pred_fallthru
    _
  // Predicated region
  $region30: #{patch_embed_forward.23} parent=0 // pred_check
    _
  $region31: #{patch_embed_forward.23} parent=0 // pred_check_branch
    %204 = sbr.rel (0) target = $region33
  $region32: #{patch_embed_forward.23} parent=0 // pred_region
    _
  $region33: #{patch_embed_forward.23} parent=0 // pred_fallthru
    _

// kernel: patch_embed_forward.25
$region0: #{patch_embed_forward.25}
  #allocation0 [shape = 'u32[]', space=smem, size = 0x4, offset = 0x4, fixed_abs, tag = 'smem constant byte address 0x4 - core index']
  #allocation1 [shape = 'u32[144,128]{1,0:T(1,128)}', space=vmem, size = 0x12000, scoped, tag = 'internal scratch']
  #allocation2 [shape = 'f32[32,128]{1,0:T(8,128)}', space=vmem, size = 0x4000, scoped, tag = 'scratch operand']
  %s0 = inlined_call_operand.vmem [shape: bf16[32,128], index: 0, kind: input, shape index: {}]
  %s1 = inlined_call_operand.vmem [shape: bf16[128,128], index: 1, kind: input, shape index: {}]
  %s2 = inlined_call_operand.vmem [shape: f32[1,128], index: 2, kind: input, shape index: {}]
  %s3 = inlined_call_operand.vmem [shape: f32[32,128], index: 3, kind: output, shape index: {}]
  %s4 = sld [smem:[#allocation0]]
  $region30: #{patch_embed_forward.25} parent=0
    _
  %s6 = ssub.s32 1, %s4
  %s7 = scalar_select 0, %s6, %s4
  // Predicated region
  $region2: #{patch_embed_forward.25} parent=0 // pred_check
    _
  $region3: #{patch_embed_forward.25} parent=0 // pred_check_branch
    %9 = sbr.rel (0) target = $region5
  $region4: #{patch_embed_forward.25} parent=0 // pred_region
    _
  $region5: #{patch_embed_forward.25} parent=0 // pred_fallthru
    _
  // Predicated region
  $region6: #{patch_embed_forward.25} parent=0 // pred_check
    _
  $region7: #{patch_embed_forward.25} parent=0 // pred_check_branch
    %11 = sbr.rel (0) target = $region9
  $region8: #{patch_embed_forward.25} parent=0 // pred_region
    _
  $region9: #{patch_embed_forward.25} parent=0 // pred_fallthru
    _
  // Predicated region
  $region10: #{patch_embed_forward.25} parent=0 // pred_check
    _
  $region11: #{patch_embed_forward.25} parent=0 // pred_check_branch
    %13 = sbr.rel (0) target = $region13
  $region12: #{patch_embed_forward.25} parent=0 // pred_region
    _
  $region13: #{patch_embed_forward.25} parent=0 // pred_fallthru
    _
  %p15 = scmp.eq.s32.totalorder 0, 0
  // Predicated region
  $region14: #{patch_embed_forward.25} parent=0 // pred_check
    %p16 = pneg %p15
  $region15: #{patch_embed_forward.25} parent=0 // pred_check_branch
    %18 = sbr.rel (%p16) target = $region17
  $region16: #{patch_embed_forward.25} parent=0 // pred_region
    %19 = vst [vmem:[#allocation2] sm:$0xff] 0.0
    %20 = vst [vmem:[#allocation2 + $0x8] sm:$0xff] 0.0
    %21 = vst [vmem:[#allocation2 + $0x10] sm:$0xff] 0.0
    %22 = vst [vmem:[#allocation2 + $0x18] sm:$0xff] 0.0
  $region17: #{patch_embed_forward.25} parent=0 // pred_fallthru
    _
  %v23 = vld [vmem:[#allocation2] sm:$0xff]
  %v24 = vld [vmem:[#allocation2 + $0x8] sm:$0xff]
  %v25 = vld [vmem:[#allocation2 + $0x10] sm:$0xff]
  %v26 = vld [vmem:[#allocation2 + $0x18] sm:$0xff]
  %v27 = vld [vmem:[%s0] sm:$0xf]
  %v28 = vld [vmem:[%s0 + $0x4] sm:$0xf]
  %v29 = vld [vmem:[%s0 + $0x8] sm:$0xf]
  %v30 = vld [vmem:[%s0 + $0xc] sm:$0xf]
  %v31 = vld [vmem:[%s1] sm:$0xf]
  %v32 = vld [vmem:[%s1 + $0x4] sm:$0xf]
  %v33 = vld [vmem:[%s1 + $0x8] sm:$0xf]
  %v34 = vld [vmem:[%s1 + $0xc] sm:$0xf]
  %v35 = vld [vmem:[%s1 + $0x10] sm:$0xf]
  %v36 = vld [vmem:[%s1 + $0x14] sm:$0xf]
  %v37 = vld [vmem:[%s1 + $0x18] sm:$0xf]
  %v38 = vld [vmem:[%s1 + $0x1c] sm:$0xf]
  %v39 = vld [vmem:[%s1 + $0x20] sm:$0xf]
  %v40 = vld [vmem:[%s1 + $0x24] sm:$0xf]
  %v41 = vld [vmem:[%s1 + $0x28] sm:$0xf]
  %v42 = vld [vmem:[%s1 + $0x2c] sm:$0xf]
  %v43 = vld [vmem:[%s1 + $0x30] sm:$0xf]
  %v44 = vld [vmem:[%s1 + $0x34] sm:$0xf]
  %v45 = vld [vmem:[%s1 + $0x38] sm:$0xf]
  %v46 = vld [vmem:[%s1 + $0x3c] sm:$0xf]
  %v51 = vunpack.c.l.b16 %v27
  %v52 = vunpack.c.l.b16 %v28
  %v53 = vunpack.c.l.b16 %v29
  %v54 = vunpack.c.l.b16 %v30
  %v55 = vpack.c.b16 %v52, %v51
  %v56 = vpack.c.b16 %v54, %v53
  %v75 = vunpack.c.l.b16 %v31
  %v76 = vunpack.c.l.b16 %v32
  %v77 = vunpack.c.l.b16 %v33
  %v78 = vunpack.c.l.b16 %v34
  %v79 = vunpack.c.l.b16 %v35
  %v80 = vunpack.c.l.b16 %v36
  %v81 = vunpack.c.l.b16 %v37
  %v82 = vunpack.c.l.b16 %v38
  %v83 = vunpack.c.l.b16 %v39
  %v84 = vunpack.c.l.b16 %v40
  %v85 = vunpack.c.l.b16 %v41
  %v86 = vunpack.c.l.b16 %v42
  %v87 = vunpack.c.l.b16 %v43
  %v88 = vunpack.c.l.b16 %v44
  %v89 = vunpack.c.l.b16 %v45
  %v90 = vunpack.c.l.b16 %v46
  %v91 = vpack.c.b16 %v76, %v75
  %v92 = vpack.c.b16 %v78, %v77
  %v93 = vpack.c.b16 %v80, %v79
  %v94 = vpack.c.b16 %v82, %v81
  %v95 = vpack.c.b16 %v84, %v83
  %v96 = vpack.c.b16 %v86, %v85
  %v97 = vpack.c.b16 %v88, %v87
  %v98 = vpack.c.b16 %v90, %v89
  %107 = vmatprep.subr.bf16.mxu0 0
  %108 = vmatpush1.bf16.msra.mxu0 %v91
  %109 = vmatprep.subr.bf16.mxu0 0
  %110 = vmatpush1.bf16.msra.mxu0 %v92
  %111 = vmatprep.subr.bf16.mxu0 0
  %112 = vmatpush1.bf16.msra.mxu0 %v93
  %113 = vmatprep.subr.bf16.mxu0 0
  %114 = vmatpush1.bf16.msra.mxu0 %v94
  %115 = vmatprep.subr.bf16.mxu0 0
  %116 = vmatpush1.bf16.msra.mxu0 %v95
  %117 = vmatprep.subr.bf16.mxu0 0
  %118 = vmatpush1.bf16.msra.mxu0 %v96
  %119 = vmatprep.subr.bf16.mxu0 0
  %120 = vmatpush1.bf16.msra.mxu0 %v97
  %121 = vmatprep.subr.bf16.mxu0 0
  %122 = vmatpush1.bf16.msra.mxu0 %v98
  %123 = vmatprep.subr.bf16.mxu0 0
  %124 = vmatpush1.bf16.msra.mxu0 0
  %125 = vmatprep.subr.bf16.mxu0 0
  %126 = vmatpush1.bf16.msra.mxu0 0
  %127 = vmatprep.subr.bf16.mxu0 0
  %128 = vmatpush1.bf16.msra.mxu0 0
  %129 = vmatprep.subr.bf16.mxu0 0
  %130 = vmatpush1.bf16.msra.mxu0 0
  %131 = vmatprep.subr.bf16.mxu0 0
  %132 = vmatpush1.bf16.msra.mxu0 0
  %133 = vmatprep.subr.bf16.mxu0 0
  %134 = vmatpush1.bf16.msra.mxu0 0
  %135 = vmatprep.subr.bf16.mxu0 0
  %136 = vmatpush1.bf16.msra.mxu0 0
  %137 = vmatprep.subr.bf16.mxu0 0
  %138 = vmatpush1.bf16.msra.mxu0 0
  %139 = vmatprep.mubr.bf16.mxu0 0
  %140 = vmatmul.mubr.bf16.gmra.mrb[0].mxu0 %v55
  %v141 = vpop.f32.mrb[0].mxu0
  %v142 = vadd.f32 0.0, %v141
  %v143 = vpop.f32.mrb[0].mxu0
  %v144 = vpop.f32.mrb[0].mxu0
  %v145 = vadd.f32 0.0, %v144
  %v146 = vpop.f32.mrb[0].mxu0
  %147 = vmatprep.mubr.bf16.mxu0 0
  %148 = vmatmul.mubr.bf16.gmra.mrb[0].mxu0 %v56
  %v149 = vpop.f32.mrb[0].mxu0
  %v150 = vadd.f32 0.0, %v149
  %v151 = vpop.f32.mrb[0].mxu0
  %v152 = vpop.f32.mrb[0].mxu0
  %v153 = vadd.f32 0.0, %v152
  %v154 = vpop.f32.mrb[0].mxu0
  %155 = vdwg.mxu0
  %v156 = vadd.f32 %v23, %v142
  %v157 = vadd.f32 %v24, %v145
  %v158 = vadd.f32 %v25, %v150
  %v159 = vadd.f32 %v26, %v153
  %160 = vst [vmem:[#allocation2] sm:$0xff] %v156
  %161 = vst [vmem:[#allocation2 + $0x8] sm:$0xff] %v157
  %162 = vst [vmem:[#allocation2 + $0x10] sm:$0xff] %v158
  %163 = vst [vmem:[#allocation2 + $0x18] sm:$0xff] %v159
  // Predicated region
  $region18: #{patch_embed_forward.25} parent=0 // pred_check
    %p164 = pneg %p15
  $region19: #{patch_embed_forward.25} parent=0 // pred_check_branch
    %166 = sbr.rel (%p164) target = $region21
  $region20: #{patch_embed_forward.25} parent=0 // pred_region
    %v167 = vld [vmem:[#allocation2] sm:$0xff]
    %v168 = vld [vmem:[#allocation2 + $0x8] sm:$0xff]
    %v169 = vld [vmem:[#allocation2 + $0x10] sm:$0xff]
    %v170 = vld [vmem:[#allocation2 + $0x18] sm:$0xff]
    %v171 = vld [vmem:[%s2] sm:$0x1]
    %v173 = vlaneseq
    %v174 = vshrl.u32 %v173, 7
    %v175 = vsub.s32 0, %v174
    %v176 = vrot.slane %v171, %v175
    %v178 = vadd.f32 %v167, %v176
    %v179 = vadd.f32 %v168, %v176
    %v180 = vadd.f32 %v169, %v176
    %v181 = vadd.f32 %v170, %v176
    %v182 = vmax.f32 %v178, 0.0
    %v183 = vmax.f32 %v179, 0.0
    %v184 = vmax.f32 %v180, 0.0
    %v185 = vmax.f32 %v181, 0.0
    %186 = vst [vmem:[%s3] sm:$0xff] %v182
    %187 = vst [vmem:[%s3 + $0x8] sm:$0xff] %v183
    %188 = vst [vmem:[%s3 + $0x10] sm:$0xff] %v184
    %189 = vst [vmem:[%s3 + $0x18] sm:$0xff] %v185
  $region21: #{patch_embed_forward.25} parent=0 // pred_fallthru
    _
  // Predicated region
  $region22: #{patch_embed_forward.25} parent=0 // pred_check
    _
  $region23: #{patch_embed_forward.25} parent=0 // pred_check_branch
    %191 = sbr.rel (0) target = $region25
  $region24: #{patch_embed_forward.25} parent=0 // pred_region
    _
  $region25: #{patch_embed_forward.25} parent=0 // pred_fallthru
    _
  // Predicated region
  $region26: #{patch_embed_forward.25} parent=0 // pred_check
    _
  $region27: #{patch_embed_forward.25} parent=0 // pred_check_branch
    %193 = sbr.rel (0) target = $region29
  $region28: #{patch_embed_forward.25} parent=0 // pred_region
    _
  $region29: #{patch_embed_forward.25} parent=0 // pred_fallthru
    _

// kernel: patch_embed_forward.26
$region0: #{patch_embed_forward.26}
  #allocation0 [shape = 'u32[]', space=smem, size = 0x4, offset = 0x4, fixed_abs, tag = 'smem constant byte address 0x4 - core index']
  #allocation1 [shape = 'u32[144,128]{1,0:T(1,128)}', space=vmem, size = 0x12000, scoped, tag = 'internal scratch']
  #allocation2 [shape = 'f32[8,128]{1,0:T(8,128)}', space=vmem, size = 0x1000, scoped, tag = 'scratch operand']
  %s0 = inlined_call_operand.vmem [shape: bf16[8,384], index: 0, kind: input, shape index: {}]
  %s1 = inlined_call_operand.vmem [shape: bf16[384,128], index: 1, kind: input, shape index: {}]
  %s2 = inlined_call_operand.vmem [shape: f32[1,128], index: 2, kind: input, shape index: {}]
  %s3 = inlined_call_operand.vmem [shape: f32[8,128], index: 3, kind: output, shape index: {}]
  %s4 = sld [smem:[#allocation0]]
  $region53: #{patch_embed_forward.26} parent=0
    _
  %s6 = ssub.s32 1, %s4
  %s7 = scalar_select 0, %s6, %s4
  loop: start=0, step=1, limit=5
  $region2: #{patch_embed_forward.26} parent=0 // loop_pre_header
    _
  $region3: #{patch_embed_forward.26} parent=0 // loop_header
    %s9 = sphi 0, %s13
    %p10 = scmp.ge.s32.totalorder %s9, 5
    %s16 = sphi 0, %s35
    %s17 = sphi 0, %s31
    %s18 = sphi 0, %s27
    %s19 = sphi 0, %s16
    %s20 = sphi 0, %s17
    %s21 = sphi 0, %s18
    %s22 = sphi 0, %s19
    %s23 = sphi 0, %s20
    %s24 = sphi 0, %s21
    %s40 = sphi 0, %s42
    %s43 = sphi 0, %s40
    %s44 = sphi 0, %s43
    %s60 = sphi 0, %s44
    %s68 = sphi 0, %s70
    %s71 = sphi 0, %s68
    %s72 = sphi 0, %s71
    %s88 = sphi 0, %s72
    %s94 = sphi 0, %s96
    %s97 = sphi 0, %s94
    %s98 = sphi 0, %s97
    %s114 = sphi 0, %s98
    %s122 = sphi 0, %s124
    %s125 = sphi 0, %s122
    %s126 = sphi 0, %s125
    %s142 = sphi 0, %s126
  $region4: #{patch_embed_forward.26} parent=0 // loop_header_branch
    %12 = sbr.rel (%p10) target = $region8
  $region5: #{patch_embed_forward.26} parent=0 // loop_body
    %s14 = ssub.s32 %s9, 1
    %s15 = ssub.s32 %s9, 2
    %s25 = sadd.s32 1, %s18
    %p26 = scmp.ge.s32.totalorder %s25, 3
    %s27 = scalar_select %p26, 0, %s25
    %s28 = sadd.s32 1, %s17
    %s29 = scalar_select %p26, %s28, %s17
    %p30 = scmp.ge.s32.totalorder %s29, 1
    %s31 = scalar_select %p30, 0, %s29
    %s32 = sadd.s32 1, %s16
    %s33 = scalar_select %p30, %s32, %s16
    %p34 = scmp.ge.s32.totalorder %s33, 1
    %s35 = scalar_select %p34, 0, %s33
    %s36 = ssub.s32 %s16, %s35
    %s37 = ssub.s32 %s18, %s27
    %s38 = sor.u32 %s36, %s37
    %p39 = scmp.eq.s32.totalorder %s38, 0
    %s41 = sadd.s32 %s40, 1
    %s42 = scalar_select %p39, %s40, %s41
    %p45 = pneg %p39
    %p46 = scmp.eq.s32.totalorder %s9, 2
    %p47 = por %p45, %p46
    %p48 = scmp.ne.s32.totalorder %s40, %s43
    %p49 = scmp.eq.s32.totalorder %s9, 0
    %p50 = por %p48, %p49
    %p51 = scmp.ne.s32.totalorder %s40, %s43
    %p52 = scmp.eq.s32.totalorder %s14, 2
    %p53 = por %p51, %p52
    %p54 = scmp.ne.s32.totalorder %s43, %s44
    %p55 = scmp.eq.s32.totalorder %s14, 0
    %p56 = por %p54, %p55
    %p57 = scmp.ne.s32.totalorder %s43, %s44
    %p58 = scmp.eq.s32.totalorder %s15, 2
    %p59 = por %p57, %p58
    %p61 = scmp.ne.s32.totalorder %s44, %s60
    %p62 = scmp.eq.s32.totalorder %s15, 0
    %p63 = por %p61, %p62
    %s64 = ssub.s32 %s18, %s27
    %s65 = ssub.s32 %s17, %s31
    %s66 = sor.u32 %s64, %s65
    %p67 = scmp.eq.s32.totalorder %s66, 0
    %s69 = sadd.s32 %s68, 1
    %s70 = scalar_select %p67, %s68, %s69
    %p73 = pneg %p67
    %p74 = scmp.eq.s32.totalorder %s9, 2
    %p75 = por %p73, %p74
    %p76 = scmp.ne.s32.totalorder %s68, %s71
    %p77 = scmp.eq.s32.totalorder %s9, 0
    %p78 = por %p76, %p77
    %p79 = scmp.ne.s32.totalorder %s68, %s71
    %p80 = scmp.eq.s32.totalorder %s14, 2
    %p81 = por %p79, %p80
    %p82 = scmp.ne.s32.totalorder %s71, %s72
    %p83 = scmp.eq.s32.totalorder %s14, 0
    %p84 = por %p82, %p83
    %p85 = scmp.ne.s32.totalorder %s71, %s72
    %p86 = scmp.eq.s32.totalorder %s15, 2
    %p87 = por %p85, %p86
    %p89 = scmp.ne.s32.totalorder %s72, %s88
    %p90 = scmp.eq.s32.totalorder %s15, 0
    %p91 = por %p89, %p90
    %s92 = ssub.s32 %s17, %s31
    %p93 = scmp.eq.s32.totalorder %s92, 0
    %s95 = sadd.s32 %s94, 1
    %s96 = scalar_select %p93, %s94, %s95
    %p99 = pneg %p93
    %p100 = scmp.eq.s32.totalorder %s9, 2
    %p101 = por %p99, %p100
    %p102 = scmp.ne.s32.totalorder %s94, %s97
    %p103 = scmp.eq.s32.totalorder %s9, 0
    %p104 = por %p102, %p103
    %p105 = scmp.ne.s32.totalorder %s94, %s97
    %p106 = scmp.eq.s32.totalorder %s14, 2
    %p107 = por %p105, %p106
    %p108 = scmp.ne.s32.totalorder %s97, %s98
    %p109 = scmp.eq.s32.totalorder %s14, 0
    %p110 = por %p108, %p109
    %p111 = scmp.ne.s32.totalorder %s97, %s98
    %p112 = scmp.eq.s32.totalorder %s15, 2
    %p113 = por %p111, %p112
    %p115 = scmp.ne.s32.totalorder %s98, %s114
    %p116 = scmp.eq.s32.totalorder %s15, 0
    %p117 = por %p115, %p116
    %s118 = ssub.s32 %s16, %s35
    %s119 = ssub.s32 %s17, %s31
    %s120 = sor.u32 %s118, %s119
    %p121 = scmp.eq.s32.totalorder %s120, 0
    %s123 = sadd.s32 %s122, 1
    %s124 = scalar_select %p121, %s122, %s123
    %p127 = pneg %p121
    %p128 = scmp.eq.s32.totalorder %s9, 2
    %p129 = por %p127, %p128
    %p130 = scmp.ne.s32.totalorder %s122, %s125
    %p131 = scmp.eq.s32.totalorder %s9, 0
    %p132 = por %p130, %p131
    %p133 = scmp.ne.s32.totalorder %s122, %s125
    %p134 = scmp.eq.s32.totalorder %s14, 2
    %p135 = por %p133, %p134
    %p136 = scmp.ne.s32.totalorder %s125, %s126
    %p137 = scmp.eq.s32.totalorder %s14, 0
    %p138 = por %p136, %p137
    %p139 = scmp.ne.s32.totalorder %s125, %s126
    %p140 = scmp.eq.s32.totalorder %s15, 2
    %p141 = por %p139, %p140
    %p143 = scmp.ne.s32.totalorder %s126, %s142
    %p144 = scmp.eq.s32.totalorder %s15, 0
    %p145 = por %p143, %p144
    %p146 = scmp.le.s32.totalorder 1, %s9
    %p147 = scmp.lt.s32.totalorder %s9, 4
    %p148 = pnand %p146, %p147
    %p149 = pneg %p148
    // Predicated region
    $region9: #{patch_embed_forward.26} parent=5 // pred_check
      _
    $region10: #{patch_embed_forward.26} parent=5 // pred_check_branch
      %151 = sbr.rel (%p148) target = $region12
    $region11: #{patch_embed_forward.26} parent=5 // pred_region
      %s152 = ssub.s32 %s9, 1
      // Predicated region
      $region13: #{patch_embed_forward.26} parent=11 // pred_check
        %p153 = pneg %p110
      $region14: #{patch_embed_forward.26} parent=11 // pred_check_branch
        %155 = sbr.rel (%p153) target = $region16
      $region15: #{patch_embed_forward.26} parent=11 // pred_region
        %p156 = scmp.lt.s32.totalorder %s20, 0
        %s157 = scalar_select %p156, %s20, 0
        %s158 = scalar_lea.vmem %s2, %s157
      $region16: #{patch_embed_forward.26} parent=11 // pred_fallthru
        _
    $region12: #{patch_embed_forward.26} parent=5 // pred_fallthru
      _
    %p159 = scmp.lt.s32.totalorder %s9, 3
    // Predicated region
    $region17: #{patch_embed_forward.26} parent=5 // pred_check
      %p160 = pneg %p159
    $region18: #{patch_embed_forward.26} parent=5 // pred_check_branch
      %162 = sbr.rel (%p160) target = $region20
    $region19: #{patch_embed_forward.26} parent=5 // pred_region
      // Predicated region
      $region21: #{patch_embed_forward.26} parent=19 // pred_check
        %p163 = pneg %p50
      $region22: #{patch_embed_forward.26} parent=19 // pred_check_branch
        %165 = sbr.rel (%p163) target = $region24
      $region23: #{patch_embed_forward.26} parent=19 // pred_region
        %p166 = scmp.lt.s32.totalorder %s16, 0
        %s167 = scalar_select %p166, %s16, 0
        %p168 = scmp.lt.s32.totalorder %s18, 2
        %s169 = scalar_select %p168, %s18, 2
        %s170 = smul.addr %s167, 3
        %s171 = sadd.s32 %s169, %s170
        %s172 = smul.addr %s171, 4
        %s173 = scalar_lea.vmem %s0, %s172
      $region24: #{patch_embed_forward.26} parent=19 // pred_fallthru
        _
      // Predicated region
      $region25: #{patch_embed_forward.26} parent=19 // pred_check
        %p174 = pneg %p78
      $region26: #{patch_embed_forward.26} parent=19 // pred_check_branch
        %176 = sbr.rel (%p174) target = $region28
      $region27: #{patch_embed_forward.26} parent=19 // pred_region
        %s177 = smul.u32 16, %s18
        %p178 = scmp.lt.s32.totalorder %s177, 47
        %s179 = scalar_select %p178, %s177, 47
        %p180 = scmp.lt.s32.totalorder %s17, 0
        %s181 = scalar_select %p180, %s17, 0
        %s182 = sadd.s32 %s181, %s179
        %s183 = smul.addr %s182, 4
        %s184 = scalar_lea.vmem %s1, %s183
        %s185 = smul.u32 16, %s18
      $region28: #{patch_embed_forward.26} parent=19 // pred_fallthru
        _
    $region20: #{patch_embed_forward.26} parent=5 // pred_fallthru
      _
    %p186 = scmp.le.s32.totalorder 1, %s9
    %p187 = scmp.lt.s32.totalorder %s9, 4
    %p188 = pnand %p186, %p187
    %p189 = pneg %p188
    // Predicated region
    $region29: #{patch_embed_forward.26} parent=5 // pred_check
      _
    $region30: #{patch_embed_forward.26} parent=5 // pred_check_branch
      %191 = sbr.rel (%p188) target = $region32
    $region31: #{patch_embed_forward.26} parent=5 // pred_region
      %s192 = ssub.s32 %s9, 1
      %p193 = scmp.lt.s32.totalorder %s19, 0
      %s194 = scalar_select %p193, %s19, 0
      %p195 = scmp.lt.s32.totalorder %s21, 2
      %s196 = scalar_select %p195, %s21, 2
      %s197 = smul.addr %s194, 3
      %s198 = sadd.s32 %s196, %s197
      %s199 = smul.addr %s198, 4
      %s200 = scalar_lea.vmem %s0, %s199
      %p201 = pneg %p56
      %p202 = pneg %p53
      %s203 = smul.u32 16, %s21
      %p204 = scmp.lt.s32.totalorder %s203, 47
      %s205 = scalar_select %p204, %s203, 47
      %p206 = scmp.lt.s32.totalorder %s20, 0
      %s207 = scalar_select %p206, %s20, 0
      %s208 = sadd.s32 %s207, %s205
      %s209 = smul.addr %s208, 4
      %s210 = scalar_lea.vmem %s1, %s209
      %p211 = pneg %p84
      %p212 = pneg %p81
      %p213 = scmp.lt.s32.totalorder %s20, 0
      %s214 = scalar_select %p213, %s20, 0
      %s215 = scalar_lea.vmem %s2, %s214
      %p216 = pneg %p110
      %p217 = pneg %p107
      %p218 = pneg %p138
      %p219 = pneg %p135
      %p220 = scmp.lt.s32.totalorder %s19, 0
      %s221 = scalar_select %p220, %s19, 0
      %p222 = scmp.lt.s32.totalorder %s20, 0
      %s223 = scalar_select %p222, %s20, 0
      %s224 = sadd.s32 %s223, %s221
      %s225 = smul.addr %s224, 8
      %s226 = scalar_lea.vmem %s3, %s225
      %p227 = scmp.lt.s32.totalorder %s19, 0
      %s228 = scalar_select %p227, %s19, 0
      %p229 = scmp.lt.s32.totalorder %s21, 2
      %s230 = scalar_select %p229, %s21, 2
      %s231 = smul.addr %s228, 3
      %s232 = sadd.s32 %s230, %s231
      %s233 = smul.addr %s232, 4
      %s234 = scalar_lea.vmem %s0, %s233
      %s235 = smul.u32 16, %s21
      %p236 = scmp.lt.s32.totalorder %s235, 47
      %s237 = scalar_select %p236, %s235, 47
      %p238 = scmp.lt.s32.totalorder %s20, 0
      %s239 = scalar_select %p238, %s20, 0
      %s240 = sadd.s32 %s239, %s237
      %s241 = smul.addr %s240, 4
      %s242 = scalar_lea.vmem %s1, %s241
      %s243 = smul.u32 16, %s21
      %p244 = scmp.lt.s32.totalorder %s20, 0
      %s245 = scalar_select %p244, %s20, 0
      %s246 = scalar_lea.vmem %s2, %s245
      %p247 = scmp.lt.s32.totalorder %s19, 0
      %s248 = scalar_select %p247, %s19, 0
      %p249 = scmp.lt.s32.totalorder %s20, 0
      %s250 = scalar_select %p249, %s20, 0
      %s251 = sadd.s32 %s250, %s248
      %s252 = smul.addr %s251, 8
      %s253 = scalar_lea.vmem %s3, %s252
      %p255 = scmp.eq.s32.totalorder %s21, 0
      // Predicated region
      $region33: #{patch_embed_forward.26} parent=31 // pred_check
        %p256 = pneg %p255
      $region34: #{patch_embed_forward.26} parent=31 // pred_check_branch
        %258 = sbr.rel (%p256) target = $region36
      $region35: #{patch_embed_forward.26} parent=31 // pred_region
        %259 = vst [vmem:[#allocation2] sm:$0xff] 0.0
      $region36: #{patch_embed_forward.26} parent=31 // pred_fallthru
        _
      %v260 = vld [vmem:[#allocation2] sm:$0xff]
      %v261 = vld [vmem:[%s234] sm:$0xf]
      %v262 = vld [vmem:[%s242] sm:$0xf]
      %v263 = vld [vmem:[%s242 + $0x4] sm:$0xf]
      %v264 = vld [vmem:[%s242 + $0x8] sm:$0xf]
      %v265 = vld [vmem:[%s242 + $0xc] sm:$0xf]
      %v266 = vld [vmem:[%s242 + $0x10] sm:$0xf]
      %v267 = vld [vmem:[%s242 + $0x14] sm:$0xf]
      %v268 = vld [vmem:[%s242 + $0x18] sm:$0xf]
      %v269 = vld [vmem:[%s242 + $0x1c] sm:$0xf]
      %v270 = vld [vmem:[%s242 + $0x20] sm:$0xf]
      %v271 = vld [vmem:[%s242 + $0x24] sm:$0xf]
      %v272 = vld [vmem:[%s242 + $0x28] sm:$0xf]
      %v273 = vld [vmem:[%s242 + $0x2c] sm:$0xf]
      %v274 = vld [vmem:[%s242 + $0x30] sm:$0xf]
      %v275 = vld [vmem:[%s242 + $0x34] sm:$0xf]
      %v276 = vld [vmem:[%s242 + $0x38] sm:$0xf]
      %v277 = vld [vmem:[%s242 + $0x3c] sm:$0xf]
      %v294 = vunpack.c.l.b16 %v262
      %v295 = vunpack.c.l.b16 %v263
      %v296 = vunpack.c.l.b16 %v264
      %v297 = vunpack.c.l.b16 %v265
      %v298 = vunpack.c.l.b16 %v266
      %v299 = vunpack.c.l.b16 %v267
      %v300 = vunpack.c.l.b16 %v268
      %v301 = vunpack.c.l.b16 %v269
      %v302 = vunpack.c.l.b16 %v270
      %v303 = vunpack.c.l.b16 %v271
      %v304 = vunpack.c.l.b16 %v272
      %v305 = vunpack.c.l.b16 %v273
      %v306 = vunpack.c.l.b16 %v274
      %v307 = vunpack.c.l.b16 %v275
      %v308 = vunpack.c.l.b16 %v276
      %v309 = vunpack.c.l.b16 %v277
      %v310 = vpack.c.b16 %v295, %v294
      %v311 = vpack.c.b16 %v297, %v296
      %v312 = vpack.c.b16 %v299, %v298
      %v313 = vpack.c.b16 %v301, %v300
      %v314 = vpack.c.b16 %v303, %v302
      %v315 = vpack.c.b16 %v305, %v304
      %v316 = vpack.c.b16 %v307, %v306
      %v317 = vpack.c.b16 %v309, %v308
      %326 = vmatprep.subr.bf16.mxu0 0
      %327 = vmatpush1.bf16.msra.mxu0 %v310
      %328 = vmatprep.subr.bf16.mxu0 0
      %329 = vmatpush1.bf16.msra.mxu0 %v311
      %330 = vmatprep.subr.bf16.mxu0 0
      %331 = vmatpush1.bf16.msra.mxu0 %v312
      %332 = vmatprep.subr.bf16.mxu0 0
      %333 = vmatpush1.bf16.msra.mxu0 %v313
      %334 = vmatprep.subr.bf16.mxu0 0
      %335 = vmatpush1.bf16.msra.mxu0 %v314
      %336 = vmatprep.subr.bf16.mxu0 0
      %337 = vmatpush1.bf16.msra.mxu0 %v315
      %338 = vmatprep.subr.bf16.mxu0 0
      %339 = vmatpush1.bf16.msra.mxu0 %v316
      %340 = vmatprep.subr.bf16.mxu0 0
      %341 = vmatpush1.bf16.msra.mxu0 %v317
      %342 = vmatprep.subr.bf16.mxu0 0
      %343 = vmatpush1.bf16.msra.mxu0 0
      %344 = vmatprep.subr.bf16.mxu0 0
      %345 = vmatpush1.bf16.msra.mxu0 0
      %346 = vmatprep.subr.bf16.mxu0 0
      %347 = vmatpush1.bf16.msra.mxu0 0
      %348 = vmatprep.subr.bf16.mxu0 0
      %349 = vmatpush1.bf16.msra.mxu0 0
      %350 = vmatprep.subr.bf16.mxu0 0
      %351 = vmatpush1.bf16.msra.mxu0 0
      %352 = vmatprep.subr.bf16.mxu0 0
      %353 = vmatpush1.bf16.msra.mxu0 0
      %354 = vmatprep.subr.bf16.mxu0 0
      %355 = vmatpush1.bf16.msra.mxu0 0
      %356 = vmatprep.subr.bf16.mxu0 0
      %357 = vmatpush1.bf16.msra.mxu0 0
      %358 = vmatprep.mubr.bf16.mxu0 0
      %359 = vmatmul.mubr.bf16.gmra.mrb[0].mxu0 %v261
      %v360 = vpop.f32.mrb[0].mxu0
      %v361 = vadd.f32 0.0, %v360
      %v362 = vpop.f32.mrb[0].mxu0
      %v363 = vpop.f32.mrb[0].mxu0
      %v364 = vpop.f32.mrb[0].mxu0
      %365 = vdwg.mxu0
      %v366 = vadd.f32 %v260, %v361
      %367 = vst [vmem:[#allocation2] sm:$0xff] %v366
      %p368 = scmp.eq.s32.totalorder %s21, 2
      // Predicated region
      $region37: #{patch_embed_forward.26} parent=31 // pred_check
        %p369 = pneg %p368
      $region38: #{patch_embed_forward.26} parent=31 // pred_check_branch
        %371 = sbr.rel (%p369) target = $region40
      $region39: #{patch_embed_forward.26} parent=31 // pred_region
        %v372 = vld [vmem:[#allocation2] sm:$0xff]
        %v373 = vld [vmem:[%s246] sm:$0x1]
        %v375 = vlaneseq
        %v376 = vshrl.u32 %v375, 7
        %v377 = vsub.s32 0, %v376
        %v378 = vrot.slane %v373, %v377
        %v380 = vadd.f32 %v372, %v378
        %v381 = vmax.f32 %v380, 0.0
        %382 = vst [vmem:[%s253] sm:$0xff] %v381
      $region40: #{patch_embed_forward.26} parent=31 // pred_fallthru
        _
      %p383 = scmp.lt.s32.totalorder %s19, 0
      %s384 = scalar_select %p383, %s19, 0
      %p385 = scmp.lt.s32.totalorder %s20, 0
      %s386 = scalar_select %p385, %s20, 0
      %s387 = sadd.s32 %s386, %s384
      %s388 = smul.addr %s387, 8
      %s389 = scalar_lea.vmem %s3, %s388
      // Predicated region
      $region41: #{patch_embed_forward.26} parent=31 // pred_check
        %p390 = pneg %p135
      $region42: #{patch_embed_forward.26} parent=31 // pred_check_branch
        %392 = sbr.rel (%p390) target = $region44
      $region43: #{patch_embed_forward.26} parent=31 // pred_region
        _
      $region44: #{patch_embed_forward.26} parent=31 // pred_fallthru
        _
      // Predicated region
      $region45: #{patch_embed_forward.26} parent=31 // pred_check
        %p393 = pneg %p135
      $region46: #{patch_embed_forward.26} parent=31 // pred_check_branch
        %395 = sbr.rel (%p393) target = $region48
      $region47: #{patch_embed_forward.26} parent=31 // pred_region
        %p396 = scmp.lt.s32.totalorder %s19, 0
        %s397 = scalar_select %p396, %s19, 0
        %p398 = scmp.lt.s32.totalorder %s20, 0
        %s399 = scalar_select %p398, %s20, 0
        %s400 = sadd.s32 %s399, %s397
        %s401 = smul.addr %s400, 8
        %s402 = scalar_lea.vmem %s3, %s401
      $region48: #{patch_embed_forward.26} parent=31 // pred_fallthru
        _
    $region32: #{patch_embed_forward.26} parent=5 // pred_fallthru
      _
    %p403 = scmp.le.s32.totalorder 2, %s9
    // Predicated region
    $region49: #{patch_embed_forward.26} parent=5 // pred_check
      %p404 = pneg %p403
    $region50: #{patch_embed_forward.26} parent=5 // pred_check_branch
      %406 = sbr.rel (%p404) target = $region52
    $region51: #{patch_embed_forward.26} parent=5 // pred_region
      %s407 = ssub.s32 %s9, 2
    $region52: #{patch_embed_forward.26} parent=5 // pred_fallthru
      _
  $region6: #{patch_embed_forward.26} parent=0 // loop_footer
    %s13 = sadd.s32 1, %s9
  $region7: #{patch_embed_forward.26} parent=0 // loop_footer_branch
    %8 = sbr.rel target = $region3
  $region8: #{patch_embed_forward.26} parent=0 // loop_exit
    _

// kernel: patch_embed_forward.24
$region0: #{patch_embed_forward.24}
  #allocation0 [shape = 'u32[]', space=smem, size = 0x4, offset = 0x4, fixed_abs, tag = 'smem constant byte address 0x4 - core index']
  #allocation1 [shape = 'u32[144,128]{1,0:T(1,128)}', space=vmem, size = 0x12000, scoped, tag = 'internal scratch']
  #allocation2 [shape = 'f32[8,128]{1,0:T(8,128)}', space=vmem, size = 0x1000, scoped, tag = 'scratch operand']
  %s0 = inlined_call_operand.vmem [shape: bf16[8,128], index: 0, kind: input, shape index: {}]
  %s1 = inlined_call_operand.vmem [shape: bf16[128,128], index: 1, kind: input, shape index: {}]
  %s2 = inlined_call_operand.vmem [shape: f32[1,128], index: 2, kind: input, shape index: {}]
  %s3 = inlined_call_operand.vmem [shape: f32[8,128], index: 3, kind: output, shape index: {}]
  %s4 = sld [smem:[#allocation0]]
  $region30: #{patch_embed_forward.24} parent=0
    _
  %s6 = ssub.s32 1, %s4
  %s7 = scalar_select 0, %s6, %s4
  // Predicated region
  $region2: #{patch_embed_forward.24} parent=0 // pred_check
    _
  $region3: #{patch_embed_forward.24} parent=0 // pred_check_branch
    %9 = sbr.rel (0) target = $region5
  $region4: #{patch_embed_forward.24} parent=0 // pred_region
    _
  $region5: #{patch_embed_forward.24} parent=0 // pred_fallthru
    _
  // Predicated region
  $region6: #{patch_embed_forward.24} parent=0 // pred_check
    _
  $region7: #{patch_embed_forward.24} parent=0 // pred_check_branch
    %11 = sbr.rel (0) target = $region9
  $region8: #{patch_embed_forward.24} parent=0 // pred_region
    _
  $region9: #{patch_embed_forward.24} parent=0 // pred_fallthru
    _
  // Predicated region
  $region10: #{patch_embed_forward.24} parent=0 // pred_check
    _
  $region11: #{patch_embed_forward.24} parent=0 // pred_check_branch
    %13 = sbr.rel (0) target = $region13
  $region12: #{patch_embed_forward.24} parent=0 // pred_region
    _
  $region13: #{patch_embed_forward.24} parent=0 // pred_fallthru
    _
  %p15 = scmp.eq.s32.totalorder 0, 0
  // Predicated region
  $region14: #{patch_embed_forward.24} parent=0 // pred_check
    %p16 = pneg %p15
  $region15: #{patch_embed_forward.24} parent=0 // pred_check_branch
    %18 = sbr.rel (%p16) target = $region17
  $region16: #{patch_embed_forward.24} parent=0 // pred_region
    %19 = vst [vmem:[#allocation2] sm:$0xff] 0.0
  $region17: #{patch_embed_forward.24} parent=0 // pred_fallthru
    _
  %v20 = vld [vmem:[#allocation2] sm:$0xff]
  %v21 = vld [vmem:[%s0] sm:$0xf]
  %v22 = vld [vmem:[%s1] sm:$0xf]
  %v23 = vld [vmem:[%s1 + $0x4] sm:$0xf]
  %v24 = vld [vmem:[%s1 + $0x8] sm:$0xf]
  %v25 = vld [vmem:[%s1 + $0xc] sm:$0xf]
  %v26 = vld [vmem:[%s1 + $0x10] sm:$0xf]
  %v27 = vld [vmem:[%s1 + $0x14] sm:$0xf]
  %v28 = vld [vmem:[%s1 + $0x18] sm:$0xf]
  %v29 = vld [vmem:[%s1 + $0x1c] sm:$0xf]
  %v30 = vld [vmem:[%s1 + $0x20] sm:$0xf]
  %v31 = vld [vmem:[%s1 + $0x24] sm:$0xf]
  %v32 = vld [vmem:[%s1 + $0x28] sm:$0xf]
  %v33 = vld [vmem:[%s1 + $0x2c] sm:$0xf]
  %v34 = vld [vmem:[%s1 + $0x30] sm:$0xf]
  %v35 = vld [vmem:[%s1 + $0x34] sm:$0xf]
  %v36 = vld [vmem:[%s1 + $0x38] sm:$0xf]
  %v37 = vld [vmem:[%s1 + $0x3c] sm:$0xf]
  %v54 = vunpack.c.l.b16 %v22
  %v55 = vunpack.c.l.b16 %v23
  %v56 = vunpack.c.l.b16 %v24
  %v57 = vunpack.c.l.b16 %v25
  %v58 = vunpack.c.l.b16 %v26
  %v59 = vunpack.c.l.b16 %v27
  %v60 = vunpack.c.l.b16 %v28
  %v61 = vunpack.c.l.b16 %v29
  %v62 = vunpack.c.l.b16 %v30
  %v63 = vunpack.c.l.b16 %v31
  %v64 = vunpack.c.l.b16 %v32
  %v65 = vunpack.c.l.b16 %v33
  %v66 = vunpack.c.l.b16 %v34
  %v67 = vunpack.c.l.b16 %v35
  %v68 = vunpack.c.l.b16 %v36
  %v69 = vunpack.c.l.b16 %v37
  %v70 = vpack.c.b16 %v55, %v54
  %v71 = vpack.c.b16 %v57, %v56
  %v72 = vpack.c.b16 %v59, %v58
  %v73 = vpack.c.b16 %v61, %v60
  %v74 = vpack.c.b16 %v63, %v62
  %v75 = vpack.c.b16 %v65, %v64
  %v76 = vpack.c.b16 %v67, %v66
  %v77 = vpack.c.b16 %v69, %v68
  %86 = vmatprep.subr.bf16.mxu0 0
  %87 = vmatpush1.bf16.msra.mxu0 %v70
  %88 = vmatprep.subr.bf16.mxu0 0
  %89 = vmatpush1.bf16.msra.mxu0 %v71
  %90 = vmatprep.subr.bf16.mxu0 0
  %91 = vmatpush1.bf16.msra.mxu0 %v72
  %92 = vmatprep.subr.bf16.mxu0 0
  %93 = vmatpush1.bf16.msra.mxu0 %v73
  %94 = vmatprep.subr.bf16.mxu0 0
  %95 = vmatpush1.bf16.msra.mxu0 %v74
  %96 = vmatprep.subr.bf16.mxu0 0
  %97 = vmatpush1.bf16.msra.mxu0 %v75
  %98 = vmatprep.subr.bf16.mxu0 0
  %99 = vmatpush1.bf16.msra.mxu0 %v76
  %100 = vmatprep.subr.bf16.mxu0 0
  %101 = vmatpush1.bf16.msra.mxu0 %v77
  %102 = vmatprep.subr.bf16.mxu0 0
  %103 = vmatpush1.bf16.msra.mxu0 0
  %104 = vmatprep.subr.bf16.mxu0 0
  %105 = vmatpush1.bf16.msra.mxu0 0
  %106 = vmatprep.subr.bf16.mxu0 0
  %107 = vmatpush1.bf16.msra.mxu0 0
  %108 = vmatprep.subr.bf16.mxu0 0
  %109 = vmatpush1.bf16.msra.mxu0 0
  %110 = vmatprep.subr.bf16.mxu0 0
  %111 = vmatpush1.bf16.msra.mxu0 0
  %112 = vmatprep.subr.bf16.mxu0 0
  %113 = vmatpush1.bf16.msra.mxu0 0
  %114 = vmatprep.subr.bf16.mxu0 0
  %115 = vmatpush1.bf16.msra.mxu0 0
  %116 = vmatprep.subr.bf16.mxu0 0
  %117 = vmatpush1.bf16.msra.mxu0 0
  %118 = vmatprep.mubr.bf16.mxu0 0
  %119 = vmatmul.mubr.bf16.gmra.mrb[0].mxu0 %v21
  %v120 = vpop.f32.mrb[0].mxu0
  %v121 = vadd.f32 0.0, %v120
  %v122 = vpop.f32.mrb[0].mxu0
  %v123 = vpop.f32.mrb[0].mxu0
  %v124 = vpop.f32.mrb[0].mxu0
  %125 = vdwg.mxu0
  %v126 = vadd.f32 %v20, %v121
  %127 = vst [vmem:[#allocation2] sm:$0xff] %v126
  // Predicated region
  $region18: #{patch_embed_forward.24} parent=0 // pred_check
    %p128 = pneg %p15
  $region19: #{patch_embed_forward.24} parent=0 // pred_check_branch
    %130 = sbr.rel (%p128) target = $region21
  $region20: #{patch_embed_forward.24} parent=0 // pred_region
    %v131 = vld [vmem:[#allocation2] sm:$0xff]
    %v132 = vld [vmem:[%s2] sm:$0x1]
    %v134 = vlaneseq
    %v135 = vshrl.u32 %v134, 7
    %v136 = vsub.s32 0, %v135
    %v137 = vrot.slane %v132, %v136
    %v139 = vadd.f32 %v131, %v137
    %140 = vst [vmem:[%s3] sm:$0xff] %v139
  $region21: #{patch_embed_forward.24} parent=0 // pred_fallthru
    _
  // Predicated region
  $region22: #{patch_embed_forward.24} parent=0 // pred_check
    _
  $region23: #{patch_embed_forward.24} parent=0 // pred_check_branch
    %142 = sbr.rel (0) target = $region25
  $region24: #{patch_embed_forward.24} parent=0 // pred_region
    _
  $region25: #{patch_embed_forward.24} parent=0 // pred_fallthru
    _
  // Predicated region
  $region26: #{patch_embed_forward.24} parent=0 // pred_check
    _
  $region27: #{patch_embed_forward.24} parent=0 // pred_check_branch
    %144 = sbr.rel (0) target = $region29
  $region28: #{patch_embed_forward.24} parent=0 // pred_region
    _
  $region29: #{patch_embed_forward.24} parent=0 // pred_fallthru
    _

// kernel: patch_embed_forward.27
$region0: #{patch_embed_forward.27}
  #allocation0 [shape = 'u32[]', space=smem, size = 0x4, offset = 0x4, fixed_abs, tag = 'smem constant byte address 0x4 - core index']
  #allocation1 [shape = 'u32[144,128]{1,0:T(1,128)}', space=vmem, size = 0x12000, scoped, tag = 'internal scratch']
  #allocation2 [shape = 'f32[8,128]{1,0:T(8,128)}', space=vmem, size = 0x1000, scoped, tag = 'scratch operand']
  %s0 = inlined_call_operand.vmem [shape: bf16[8,128], index: 0, kind: input, shape index: {}]
  %s1 = inlined_call_operand.vmem [shape: bf16[128,128], index: 1, kind: input, shape index: {}]
  %s2 = inlined_call_operand.vmem [shape: f32[1,128], index: 2, kind: input, shape index: {}]
  %s3 = inlined_call_operand.vmem [shape: f32[8,128], index: 3, kind: input, shape index: {}]
  %s4 = inlined_call_operand.hbm [shape: f32[8,128], index: 4, kind: output, shape index: {}]
  %s5 = sld [smem:[#allocation0]]
  $region34: #{patch_embed_forward.27} parent=0
    _
  %s7 = ssub.s32 1, %s5
  %s8 = scalar_select 0, %s7, %s5
  $region1: #{patch_embed_forward.27} parent=0
    #allocation3 [shape = 'u8[4096]{0}', space=vmem, size = 0x1000, scoped, tag = 'output window, operand 0, single buffered']
    #allocation4 [shape = 's32[1]{0}', space=sflag, size = 0x4, scoped, tag = 'scoped memory for patch_embed_forward.27']
    %9 = vsyncpa [#allocation4], 0
    // Predicated region
    $region2: #{patch_embed_forward.27} parent=1 // pred_check
      _
    $region3: #{patch_embed_forward.27} parent=1 // pred_check_branch
      %11 = sbr.rel (0) target = $region5
    $region4: #{patch_embed_forward.27} parent=1 // pred_region
      _
    $region5: #{patch_embed_forward.27} parent=1 // pred_fallthru
      _
    // Predicated region
    $region6: #{patch_embed_forward.27} parent=1 // pred_check
      _
    $region7: #{patch_embed_forward.27} parent=1 // pred_check_branch
      %13 = sbr.rel (0) target = $region9
    $region8: #{patch_embed_forward.27} parent=1 // pred_region
      _
    $region9: #{patch_embed_forward.27} parent=1 // pred_fallthru
      _
    // Predicated region
    $region10: #{patch_embed_forward.27} parent=1 // pred_check
      _
    $region11: #{patch_embed_forward.27} parent=1 // pred_check_branch
      %15 = sbr.rel (0) target = $region13
    $region12: #{patch_embed_forward.27} parent=1 // pred_region
      _
    $region13: #{patch_embed_forward.27} parent=1 // pred_fallthru
      _
    // Predicated region
    $region14: #{patch_embed_forward.27} parent=1 // pred_check
      _
    $region15: #{patch_embed_forward.27} parent=1 // pred_check_branch
      %17 = sbr.rel (0) target = $region17
    $region16: #{patch_embed_forward.27} parent=1 // pred_region
      _
    $region17: #{patch_embed_forward.27} parent=1 // pred_fallthru
      _
    %p19 = scmp.eq.s32.totalorder 0, 0
    // Predicated region
    $region18: #{patch_embed_forward.27} parent=1 // pred_check
      %p20 = pneg %p19
    $region19: #{patch_embed_forward.27} parent=1 // pred_check_branch
      %22 = sbr.rel (%p20) target = $region21
    $region20: #{patch_embed_forward.27} parent=1 // pred_region
      %23 = vst [vmem:[#allocation2] sm:$0xff] 0.0
    $region21: #{patch_embed_forward.27} parent=1 // pred_fallthru
      _
    %v24 = vld [vmem:[#allocation2] sm:$0xff]
    %v25 = vld [vmem:[%s0] sm:$0xf]
    %v26 = vld [vmem:[%s1] sm:$0xf]
    %v27 = vld [vmem:[%s1 + $0x4] sm:$0xf]
    %v28 = vld [vmem:[%s1 + $0x8] sm:$0xf]
    %v29 = vld [vmem:[%s1 + $0xc] sm:$0xf]
    %v30 = vld [vmem:[%s1 + $0x10] sm:$0xf]
    %v31 = vld [vmem:[%s1 + $0x14] sm:$0xf]
    %v32 = vld [vmem:[%s1 + $0x18] sm:$0xf]
    %v33 = vld [vmem:[%s1 + $0x1c] sm:$0xf]
    %v34 = vld [vmem:[%s1 + $0x20] sm:$0xf]
    %v35 = vld [vmem:[%s1 + $0x24] sm:$0xf]
    %v36 = vld [vmem:[%s1 + $0x28] sm:$0xf]
    %v37 = vld [vmem:[%s1 + $0x2c] sm:$0xf]
    %v38 = vld [vmem:[%s1 + $0x30] sm:$0xf]
    %v39 = vld [vmem:[%s1 + $0x34] sm:$0xf]
    %v40 = vld [vmem:[%s1 + $0x38] sm:$0xf]
    %v41 = vld [vmem:[%s1 + $0x3c] sm:$0xf]
    %v58 = vunpack.c.l.b16 %v26
    %v59 = vunpack.c.l.b16 %v27
    %v60 = vunpack.c.l.b16 %v28
    %v61 = vunpack.c.l.b16 %v29
    %v62 = vunpack.c.l.b16 %v30
    %v63 = vunpack.c.l.b16 %v31
    %v64 = vunpack.c.l.b16 %v32
    %v65 = vunpack.c.l.b16 %v33
    %v66 = vunpack.c.l.b16 %v34
    %v67 = vunpack.c.l.b16 %v35
    %v68 = vunpack.c.l.b16 %v36
    %v69 = vunpack.c.l.b16 %v37
    %v70 = vunpack.c.l.b16 %v38
    %v71 = vunpack.c.l.b16 %v39
    %v72 = vunpack.c.l.b16 %v40
    %v73 = vunpack.c.l.b16 %v41
    %v74 = vpack.c.b16 %v59, %v58
    %v75 = vpack.c.b16 %v61, %v60
    %v76 = vpack.c.b16 %v63, %v62
    %v77 = vpack.c.b16 %v65, %v64
    %v78 = vpack.c.b16 %v67, %v66
    %v79 = vpack.c.b16 %v69, %v68
    %v80 = vpack.c.b16 %v71, %v70
    %v81 = vpack.c.b16 %v73, %v72
    %90 = vmatprep.subr.bf16.mxu0 0
    %91 = vmatpush1.bf16.msra.mxu0 %v74
    %92 = vmatprep.subr.bf16.mxu0 0
    %93 = vmatpush1.bf16.msra.mxu0 %v75
    %94 = vmatprep.subr.bf16.mxu0 0
    %95 = vmatpush1.bf16.msra.mxu0 %v76
    %96 = vmatprep.subr.bf16.mxu0 0
    %97 = vmatpush1.bf16.msra.mxu0 %v77
    %98 = vmatprep.subr.bf16.mxu0 0
    %99 = vmatpush1.bf16.msra.mxu0 %v78
    %100 = vmatprep.subr.bf16.mxu0 0
    %101 = vmatpush1.bf16.msra.mxu0 %v79
    %102 = vmatprep.subr.bf16.mxu0 0
    %103 = vmatpush1.bf16.msra.mxu0 %v80
    %104 = vmatprep.subr.bf16.mxu0 0
    %105 = vmatpush1.bf16.msra.mxu0 %v81
    %106 = vmatprep.subr.bf16.mxu0 0
    %107 = vmatpush1.bf16.msra.mxu0 0
    %108 = vmatprep.subr.bf16.mxu0 0
    %109 = vmatpush1.bf16.msra.mxu0 0
    %110 = vmatprep.subr.bf16.mxu0 0
    %111 = vmatpush1.bf16.msra.mxu0 0
    %112 = vmatprep.subr.bf16.mxu0 0
    %113 = vmatpush1.bf16.msra.mxu0 0
    %114 = vmatprep.subr.bf16.mxu0 0
    %115 = vmatpush1.bf16.msra.mxu0 0
    %116 = vmatprep.subr.bf16.mxu0 0
    %117 = vmatpush1.bf16.msra.mxu0 0
    %118 = vmatprep.subr.bf16.mxu0 0
    %119 = vmatpush1.bf16.msra.mxu0 0
    %120 = vmatprep.subr.bf16.mxu0 0
    %121 = vmatpush1.bf16.msra.mxu0 0
    %122 = vmatprep.mubr.bf16.mxu0 0
    %123 = vmatmul.mubr.bf16.gmra.mrb[0].mxu0 %v25
    %v124 = vpop.f32.mrb[0].mxu0
    %v125 = vadd.f32 0.0, %v124
    %v126 = vpop.f32.mrb[0].mxu0
    %v127 = vpop.f32.mrb[0].mxu0
    %v128 = vpop.f32.mrb[0].mxu0
    %129 = vdwg.mxu0
    %v130 = vadd.f32 %v24, %v125
    %131 = vst [vmem:[#allocation2] sm:$0xff] %v130
    // Predicated region
    $region22: #{patch_embed_forward.27} parent=1 // pred_check
      %p132 = pneg %p19
    $region23: #{patch_embed_forward.27} parent=1 // pred_check_branch
      %134 = sbr.rel (%p132) target = $region25
    $region24: #{patch_embed_forward.27} parent=1 // pred_region
      %v135 = vld [vmem:[#allocation2] sm:$0xff]
      %v136 = vld [vmem:[%s2] sm:$0x1]
      %v138 = vlaneseq
      %v139 = vshrl.u32 %v138, 7
      %v140 = vsub.s32 0, %v139
      %v141 = vrot.slane %v136, %v140
      %v143 = vadd.f32 %v135, %v141
      %v144 = vld [vmem:[%s3] sm:$0xff]
      %v145 = vadd.f32 %v143, %v144
      %v146 = vmax.f32 %v145, 0.0
      %147 = vst [vmem:[#allocation3] sm:$0xff] %v146
    $region25: #{patch_embed_forward.27} parent=1 // pred_fallthru
      _
    // Predicated region
    $region26: #{patch_embed_forward.27} parent=1 // pred_check
      _
    $region27: #{patch_embed_forward.27} parent=1 // pred_check_branch
      %149 = sbr.rel (0) target = $region29
    $region28: #{patch_embed_forward.27} parent=1 // pred_region
      %s151 = ssub.s32 128, 128
      %152 = vsyncadd [#allocation4], %s151
      %s154 = sshll.u32 [#allocation3], 4
      %s155 = int_to_ptr.vmem [resolvable:$true] %s154
      %157 = dma.vmem_to_hbm [thread:$0]  %s155, 128, %s4, [#allocation4]
    $region29: #{patch_embed_forward.27} parent=1 // pred_fallthru
      _
    // Predicated region
    $region30: #{patch_embed_forward.27} parent=1 // pred_check
      _
    $region31: #{patch_embed_forward.27} parent=1 // pred_check_branch
      %159 = sbr.rel (0) target = $region33
    $region32: #{patch_embed_forward.27} parent=1 // pred_region
      %160 = dma.done [#allocation4], 128
    $region33: #{patch_embed_forward.27} parent=1 // pred_fallthru
      _
    %161 = vsyncpa [#allocation4], 1

</llo_original>
